<compile_context>
chip_gen: v6e
topology: v6e:2x2x1
jax: 0.10.0
libtpu: 0.0.40
codegen_flags: <defaults>
</compile_context>

<pallas_src>
import functools

import jax
import jax.numpy as jnp
from jax.experimental import pallas as pl
from jax.experimental.pallas import tpu as pltpu

KSIZE = 7
PAD = 3  # kernel_size - 1 - padding = 7 - 1 - 3

# Row/col groupings of the 7 original taps into the 4 effective polyphase
# taps, for output phase 0 (even rows/cols) and phase 1 (odd rows/cols).
_PHASE_GROUPS = (
    ((0,), (1, 2), (3, 4), (5, 6)),   # phase a/b == 0
    ((0, 1), (2, 3), (4, 5), (6,)),   # phase a/b == 1
)


# ----------------------------------------------------------------------------
# Wrapper-side weight packing: 7x7 same-conv weight -> polyphase weights
# ----------------------------------------------------------------------------
def _pack_polyphase(wk_hwio, dtype=jnp.bfloat16):
    """(7,7,Cin,Cout) same-conv weight -> (5, 5*Cin, 4*Cout) polyphase weight.

    Wfull[m, n*Cin+c, (2a+b)*Cout+co] = sum of wk[kh, kw, c, co] over the
    original taps (kh, kw) that hit input pixel offset (m, n) (in coordinates
    of the input padded by 2) for output phase (a, b).  Upsample+conv then
    reduces to:  y[2i+a, 2j+b] = sum_{m,n,c} xp[i+m, j+n, c] * Wfull[...].
    """
    kh, kw, cin, cout = wk_hwio.shape
    assert kh == KSIZE and kw == KSIZE
    wfull = jnp.zeros((5, 5, cin, 4, cout), jnp.float32)
    wk32 = wk_hwio.astype(jnp.float32)
    for a in (0, 1):
        for b in (0, 1):
            for r in range(4):
                for s in range(4):
                    ke = jnp.zeros((cin, cout), jnp.float32)
                    for i in _PHASE_GROUPS[a][r]:
                        for j in _PHASE_GROUPS[b][s]:
                            ke = ke + wk32[i, j]
                    wfull = wfull.at[r + a, s + b, :, 2 * a + b, :].set(ke)
    return wfull.reshape(5, 5 * cin, 4 * cout).astype(dtype)


# ----------------------------------------------------------------------------
# In-kernel helpers (operate on traced VMEM values, never touch HBM)
# ----------------------------------------------------------------------------
def _poly_upconv_relu(x, wk, bk):
    """Fused Upsample(2x, nearest) + ConvTranspose2d(7,1,3) + bias + ReLU.

    x : (H, W, Cin) bf16 activation at ORIGINAL (pre-upsample) resolution.
    wk: (5, 5*Cin, 4*Cout) bf16 pre-summed polyphase weights.
    bk: (1, 4*Cout) f32 bias (tiled over the 4 phases).
    Returns (2H, 2W*Cout) f32 -- rows already 2x interleaved, lanes carry
    (output column, channel) so the result is lane-dense.
    """
    h, w, cin = x.shape
    cout = wk.shape[-1] // 4
    # Zero-pad by 2 in H and W (polyphase halo) -- entirely in VMEM.
    zc = jnp.zeros((h, 2, cin), x.dtype)
    xp = jnp.concatenate([zc, x, zc], axis=1)                  # (h, w+4, cin)
    zr = jnp.zeros((2, w + 4, cin), x.dtype)
    xp = jnp.concatenate([zr, xp, zr], axis=0)                 # (h+4, w+4, cin)
    # One-time column-tap im2col slab: e[t, j, n*cin + c] = xp[t, j+n, c].
    e = jnp.concatenate([xp[:, n:n + w, :] for n in range(5)], axis=-1)
    acc = jnp.zeros((h * w, 4 * cout), jnp.float32)
    for m in range(5):                                         # row taps
        lhs = e[m:m + h].reshape(h * w, 5 * cin)               # free leading-dim view
        acc = acc + jnp.dot(lhs, wk[m], preferred_element_type=jnp.float32)
    acc = jnp.maximum(acc + bk, 0.0)                           # bias + ReLU in f32
    # 2x2 pixel shuffle.  Phase layout along lanes is (a, b, co), so each
    # row-phase half is already column-interleaved after a lane merge; rows
    # interleave with one 2-way sublane stack.
    po = acc.reshape(h, w, 4 * cout)
    row0 = po[:, :, :2 * cout].reshape(h, w * 2 * cout)        # output rows 2i
    row1 = po[:, :, 2 * cout:].reshape(h, w * 2 * cout)        # output rows 2i+1
    return jnp.stack([row0, row1], axis=1).reshape(2 * h, 2 * w * cout)


def _make_decoder_kernel(n_blocks):
    def kernel(z_ref, w0_ref, b0_ref, *refs):
        o_ref = refs[-1]
        blk_refs = refs[:-1]
        _, h, w, cin = z_ref.shape
        c0 = w0_ref.shape[1]
        # decoder[0]: Conv2d(hidden, channels[-1], 1) + ReLU (pointwise matmul)
        x = z_ref[0].reshape(h * w, cin)                       # bf16
        x = jnp.dot(x, w0_ref[...], preferred_element_type=jnp.float32)
        x = jnp.maximum(x + b0_ref[...], 0.0)                  # (h*w, c0) f32
        if n_blocks == 0:
            o_ref[0] = x.reshape(h, w * c0).astype(o_ref.dtype)
        else:
            x = x.astype(jnp.bfloat16).reshape(h, w, c0)
            y = None
            for bi in range(n_blocks):
                wk = blk_refs[2 * bi][...]                     # (5, 5*Cin, 4*Cout)
                bk = blk_refs[2 * bi + 1][...]                 # (1, 4*Cout)
                cout = bk.shape[1] // 4
                y = _poly_upconv_relu(x, wk, bk)               # (2h', 2w'*cout) f32
                if bi < n_blocks - 1:
                    x = y.astype(jnp.bfloat16).reshape(
                        2 * x.shape[0], 2 * x.shape[1], cout)
            o_ref[0] = y.astype(o_ref.dtype)                   # lane-dense store
    return kernel


# ----------------------------------------------------------------------------
# Wrapper: single fused pallas_call for the whole decoder
# ----------------------------------------------------------------------------
def convolutional_decoder_forward(z_nchw, params, image_h, image_w):
    n, hidden, h0, w0 = z_nchw.shape
    z = jnp.transpose(z_nchw, (0, 2, 3, 1)).astype(jnp.bfloat16)  # NCHW -> NHWC
    w0m = params["w0"].astype(jnp.bfloat16)                       # (hidden, C0)
    b0 = params["b0"].reshape(1, -1).astype(jnp.float32)
    n_blocks = len(params["blocks"])

    # Pre-sum each block's same-conv weight into polyphase form (bf16) and
    # tile its bias over the 4 phases.
    packed = []
    for wk_hwio, bk in params["blocks"]:
        cout = bk.shape[0]
        wkp = _pack_polyphase(wk_hwio)                             # (5,5*Cin,4*Cout)
        bkp = jnp.tile(bk.astype(jnp.float32), 4).reshape(1, 4 * cout)
        packed.append((wkp, bkp))

    hf = h0 * (2 ** n_blocks)
    wf = w0 * (2 ** n_blocks)
    cf = (params["blocks"][-1][1].shape[0] if n_blocks
          else params["w0"].shape[1])

    in_specs = [
        pl.BlockSpec((1, h0, w0, hidden), lambda i: (i, 0, 0, 0)),
        pl.BlockSpec(w0m.shape, lambda i: (0, 0)),
        pl.BlockSpec(b0.shape, lambda i: (0, 0)),
    ]
    operands = [z, w0m, b0]
    for wkp, bkp in packed:
        in_specs.append(pl.BlockSpec(wkp.shape, lambda i: (0, 0, 0)))
        in_specs.append(pl.BlockSpec(bkp.shape, lambda i: (0, 0)))
        operands += [wkp, bkp]

    out = pl.pallas_call(
        _make_decoder_kernel(n_blocks),
        out_shape=jax.ShapeDtypeStruct((n, hf, wf * cf), jnp.float32),
        grid=(n,),
        in_specs=in_specs,
        out_specs=pl.BlockSpec((1, hf, wf * cf), lambda i: (i, 0, 0)),
        compiler_params=pltpu.CompilerParams(
            dimension_semantics=("parallel",),
            # Comfortably above this kernel's working set, below v7x's 64 MiB.
            vmem_limit_bytes=48 * 1024 * 1024),
    )(*operands)

    out = out.reshape(n, hf, wf, cf)
    # transforms.Resize((image_h, image_w)) -- identity for these shapes, so
    # it is skipped entirely (Python-level check).
    if (image_h, image_w) != (hf, wf):
        # TODO(synk): torchvision Resize defaults to antialiased bilinear;
        # jax.image.resize's plain bilinear differs in the non-identity case.
        out = jax.image.resize(out, (n, image_h, image_w, cf),
                               method="bilinear")
    return jnp.transpose(out, (0, 3, 1, 2))                       # NHWC -> NCHW


# ----------------------------------------------------------------------------
# Pure-JAX reference (silent correctness check)
# ----------------------------------------------------------------------------
def reference_forward(z_nchw, params, image_h, image_w):
    x = jnp.transpose(z_nchw, (0, 2, 3, 1))
    x = jnp.maximum(
        jnp.einsum("nhwc,cd->nhwd", x, params["w0"]) + params["b0"], 0.0)
    for wk, bk in params["blocks"]:
        x = jnp.repeat(jnp.repeat(x, 2, axis=1), 2, axis=2)
        y = jax.lax.conv_general_dilated(
            x, wk, window_strides=(1, 1), padding=((PAD, PAD), (PAD, PAD)),
            dimension_numbers=("NHWC", "HWIO", "NHWC"))
        x = jnp.maximum(y + bk, 0.0)
    if (image_h, image_w) != x.shape[1:3]:
        x = jax.image.resize(
            x, (x.shape[0], image_h, image_w, x.shape[3]), method="bilinear")
    return jnp.transpose(x, (0, 3, 1, 2))


def make_params(key, hidden, channels):
    n_blocks = len(channels) - 1
    keys = jax.random.split(key, 2 + 2 * n_blocks)
    # decoder[0]: Conv2d(hidden, channels[-1], 1) -> stored as (Cin, Cout)
    w0 = 0.1 * jax.random.normal(keys[0], (hidden, channels[-1]), jnp.float32)
    b0 = 0.1 * jax.random.normal(keys[1], (channels[-1],), jnp.float32)
    blocks = []
    ki = 2
    for c_i in reversed(range(1, len(channels))):
        cin, cout = channels[c_i], channels[c_i - 1]
        # PyTorch ConvTranspose2d weight layout: (Cin, Cout, kh, kw)
        wt = jax.random.normal(keys[ki], (cin, cout, KSIZE, KSIZE),
                               jnp.float32) / jnp.sqrt(cin * KSIZE * KSIZE)
        bt = 0.1 * jax.random.normal(keys[ki + 1], (cout,), jnp.float32)
        # Equivalent same-conv weight: wk[kh,kw,ci,co] = wt[ci,co,K-1-kh,K-1-kw]
        wk = jnp.transpose(wt[:, :, ::-1, ::-1], (2, 3, 0, 1))
        blocks.append((wk, bt))
        ki += 2
    return {"w0": w0, "b0": b0, "blocks": blocks}


if __name__ == "__main__":
    image_h = image_w = 16
    channels = [4, 8, 16]   # decoder output has channels[0] channels
    hidden = 32
    batch = 2
    n_blocks = len(channels) - 1
    h0 = image_h // (2 ** n_blocks)   # latent spatial size: 4
    w0 = image_w // (2 ** n_blocks)

    key = jax.random.PRNGKey(0)
    kp, kz = jax.random.split(key)
    params = make_params(kp, hidden, channels)
    z = jax.random.normal(kz, (batch, hidden, h0, w0), jnp.float32)

    fwd = jax.jit(functools.partial(convolutional_decoder_forward,
                                    image_h=image_h, image_w=image_w))
    out = jax.block_until_ready(fwd(z, params))
    assert out.shape == (batch, channels[0], image_h, image_w), out.shape

    ref = jax.block_until_ready(
        reference_forward(z, params, image_h, image_w))
    # bf16 MXU inputs with f32 accumulation: loosened tolerance vs f32 ref.
    assert jnp.allclose(out, ref, rtol=3e-2, atol=3e-2), \
        float(jnp.max(jnp.abs(out - ref)))

    print("KERNEL_OK")
</pallas_src>

<mosaic_0001>
module attributes {stable_mosaic.version = 11 : i64} {
  func.func @kernel(%arg0: i32, %arg1: memref<1x4x4x32xbf16, #tpu.memory_space<vmem>>, %arg2: memref<32x16xbf16, #tpu.memory_space<vmem>>, %arg3: memref<1x16xf32, #tpu.memory_space<vmem>>, %arg4: memref<5x80x32xbf16, #tpu.memory_space<vmem>>, %arg5: memref<1x32xf32, #tpu.memory_space<vmem>>, %arg6: memref<5x40x16xbf16, #tpu.memory_space<vmem>>, %arg7: memref<1x16xf32, #tpu.memory_space<vmem>>, %arg8: memref<1x16x64xf32, #tpu.memory_space<vmem>>) attributes {dimension_semantics = [#tpu.dimension_semantics<parallel>], iteration_bounds = array<i64: 2>, scalar_prefetch = 0 : i64, scratch_operands = 0 : i64, tpu.core_type = #tpu.core_type<tc>, window_params = [{transform_indices = @transform_0, window_bounds = array<i64: 1, 4, 4, 32>}, {pipeline_mode = #tpu.pipeline_mode<synchronous>, transform_indices = @transform_1, window_bounds = array<i64: 32, 16>}, {pipeline_mode = #tpu.pipeline_mode<synchronous>, transform_indices = @transform_2, window_bounds = array<i64: 1, 16>}, {pipeline_mode = #tpu.pipeline_mode<synchronous>, transform_indices = @transform_3, window_bounds = array<i64: 5, 80, 32>}, {pipeline_mode = #tpu.pipeline_mode<synchronous>, transform_indices = @transform_4, window_bounds = array<i64: 1, 32>}, {pipeline_mode = #tpu.pipeline_mode<synchronous>, transform_indices = @transform_5, window_bounds = array<i64: 5, 40, 16>}, {pipeline_mode = #tpu.pipeline_mode<synchronous>, transform_indices = @transform_6, window_bounds = array<i64: 1, 16>}, {transform_indices = @transform_7, window_bounds = array<i64: 1, 16, 64>}]} {
    %c0 = arith.constant 0 : index
    %c0_0 = arith.constant 0 : index
    %c0_1 = arith.constant 0 : index
    %c0_2 = arith.constant 0 : index
    %0 = vector.load %arg1[%c0, %c0_0, %c0_1, %c0_2] : memref<1x4x4x32xbf16, #tpu.memory_space<vmem>>, vector<1x4x4x32xbf16>
    %1 = vector.shape_cast %0 : vector<1x4x4x32xbf16> to vector<4x4x32xbf16>
    %2 = vector.shape_cast %1 : vector<4x4x32xbf16> to vector<16x32xbf16>
    %c0_3 = arith.constant 0 : index
    %c0_4 = arith.constant 0 : index
    %3 = vector.load %arg2[%c0_3, %c0_4] : memref<32x16xbf16, #tpu.memory_space<vmem>>, vector<32x16xbf16>
    %cst = arith.constant dense<0.000000e+00> : vector<16x16xf32>
    %4 = tpu.matmul %2, %3, %cst {dimension_numbers = #tpu.dot_dimension_numbers<[1], [0], [0], [1], [0, 0, 1, 1], [], []>} : vector<16x32xbf16>, vector<32x16xbf16>, vector<16x16xf32> -> vector<16x16xf32>
    %c0_5 = arith.constant 0 : index
    %c0_6 = arith.constant 0 : index
    %5 = vector.load %arg3[%c0_5, %c0_6] : memref<1x16xf32, #tpu.memory_space<vmem>>, vector<1x16xf32>
    %6 = vector.broadcast %5 : vector<1x16xf32> to vector<16x16xf32>
    %7 = arith.addf %4, %6 : vector<16x16xf32>
    %cst_7 = arith.constant 0.000000e+00 : f32
    %8 = vector.broadcast %cst_7 : f32 to vector<16x16xf32>
    %9 = arith.maximumf %7, %8 : vector<16x16xf32>
    %10 = arith.truncf %9 : vector<16x16xf32> to vector<16x16xbf16>
    %11 = vector.shape_cast %10 : vector<16x16xbf16> to vector<4x4x16xbf16>
    %c0_8 = arith.constant 0 : index
    %c0_9 = arith.constant 0 : index
    %c0_10 = arith.constant 0 : index
    %12 = vector.load %arg4[%c0_8, %c0_9, %c0_10] : memref<5x80x32xbf16, #tpu.memory_space<vmem>>, vector<5x80x32xbf16>
    %c0_11 = arith.constant 0 : index
    %c0_12 = arith.constant 0 : index
    %13 = vector.load %arg5[%c0_11, %c0_12] : memref<1x32xf32, #tpu.memory_space<vmem>>, vector<1x32xf32>
    %cst_13 = arith.constant 0.000000e+00 : bf16
    %14 = vector.broadcast %cst_13 : bf16 to vector<4x2x16xbf16>
    %15 = tpu.concatenate %14, %11, %14 in 1 : vector<4x2x16xbf16>, vector<4x4x16xbf16>, vector<4x2x16xbf16> -> vector<4x8x16xbf16>
    %cst_14 = arith.constant 0.000000e+00 : bf16
    %16 = vector.broadcast %cst_14 : bf16 to vector<2x8x16xbf16>
    %17 = tpu.concatenate %16, %15, %16 in 0 : vector<2x8x16xbf16>, vector<4x8x16xbf16>, vector<2x8x16xbf16> -> vector<8x8x16xbf16>
    %18 = vector.extract_strided_slice %17 {offsets = [0, 0, 0], sizes = [8, 4, 16], strides = [1, 1, 1]} : vector<8x8x16xbf16> to vector<8x4x16xbf16>
    %19 = vector.extract_strided_slice %17 {offsets = [0, 1, 0], sizes = [8, 4, 16], strides = [1, 1, 1]} : vector<8x8x16xbf16> to vector<8x4x16xbf16>
    %20 = vector.extract_strided_slice %17 {offsets = [0, 2, 0], sizes = [8, 4, 16], strides = [1, 1, 1]} : vector<8x8x16xbf16> to vector<8x4x16xbf16>
    %21 = vector.extract_strided_slice %17 {offsets = [0, 3, 0], sizes = [8, 4, 16], strides = [1, 1, 1]} : vector<8x8x16xbf16> to vector<8x4x16xbf16>
    %22 = vector.extract_strided_slice %17 {offsets = [0, 4, 0], sizes = [8, 4, 16], strides = [1, 1, 1]} : vector<8x8x16xbf16> to vector<8x4x16xbf16>
    %23 = tpu.concatenate %18, %19, %20, %21, %22 in 2 : vector<8x4x16xbf16>, vector<8x4x16xbf16>, vector<8x4x16xbf16>, vector<8x4x16xbf16>, vector<8x4x16xbf16> -> vector<8x4x80xbf16>
    %cst_15 = arith.constant 0.000000e+00 : f32
    %24 = vector.broadcast %cst_15 : f32 to vector<16x32xf32>
    %25 = vector.extract_strided_slice %23 {offsets = [0, 0, 0], sizes = [4, 4, 80], strides = [1, 1, 1]} : vector<8x4x80xbf16> to vector<4x4x80xbf16>
    %26 = vector.shape_cast %25 : vector<4x4x80xbf16> to vector<16x80xbf16>
    %27 = vector.extract_strided_slice %12 {offsets = [0, 0, 0], sizes = [1, 80, 32], strides = [1, 1, 1]} : vector<5x80x32xbf16> to vector<1x80x32xbf16>
    %28 = vector.shape_cast %27 : vector<1x80x32xbf16> to vector<80x32xbf16>
    %cst_16 = arith.constant dense<0.000000e+00> : vector<16x32xf32>
    %29 = tpu.matmul %26, %28, %cst_16 {dimension_numbers = #tpu.dot_dimension_numbers<[1], [0], [0], [1], [0, 0, 1, 1], [], []>} : vector<16x80xbf16>, vector<80x32xbf16>, vector<16x32xf32> -> vector<16x32xf32>
    %30 = arith.addf %24, %29 : vector<16x32xf32>
    %31 = vector.extract_strided_slice %23 {offsets = [1, 0, 0], sizes = [4, 4, 80], strides = [1, 1, 1]} : vector<8x4x80xbf16> to vector<4x4x80xbf16>
    %32 = vector.shape_cast %31 : vector<4x4x80xbf16> to vector<16x80xbf16>
    %33 = vector.extract_strided_slice %12 {offsets = [1, 0, 0], sizes = [1, 80, 32], strides = [1, 1, 1]} : vector<5x80x32xbf16> to vector<1x80x32xbf16>
    %34 = vector.shape_cast %33 : vector<1x80x32xbf16> to vector<80x32xbf16>
    %cst_17 = arith.constant dense<0.000000e+00> : vector<16x32xf32>
    %35 = tpu.matmul %32, %34, %cst_17 {dimension_numbers = #tpu.dot_dimension_numbers<[1], [0], [0], [1], [0, 0, 1, 1], [], []>} : vector<16x80xbf16>, vector<80x32xbf16>, vector<16x32xf32> -> vector<16x32xf32>
    %36 = arith.addf %30, %35 : vector<16x32xf32>
    %37 = vector.extract_strided_slice %23 {offsets = [2, 0, 0], sizes = [4, 4, 80], strides = [1, 1, 1]} : vector<8x4x80xbf16> to vector<4x4x80xbf16>
    %38 = vector.shape_cast %37 : vector<4x4x80xbf16> to vector<16x80xbf16>
    %39 = vector.extract_strided_slice %12 {offsets = [2, 0, 0], sizes = [1, 80, 32], strides = [1, 1, 1]} : vector<5x80x32xbf16> to vector<1x80x32xbf16>
    %40 = vector.shape_cast %39 : vector<1x80x32xbf16> to vector<80x32xbf16>
    %cst_18 = arith.constant dense<0.000000e+00> : vector<16x32xf32>
    %41 = tpu.matmul %38, %40, %cst_18 {dimension_numbers = #tpu.dot_dimension_numbers<[1], [0], [0], [1], [0, 0, 1, 1], [], []>} : vector<16x80xbf16>, vector<80x32xbf16>, vector<16x32xf32> -> vector<16x32xf32>
    %42 = arith.addf %36, %41 : vector<16x32xf32>
    %43 = vector.extract_strided_slice %23 {offsets = [3, 0, 0], sizes = [4, 4, 80], strides = [1, 1, 1]} : vector<8x4x80xbf16> to vector<4x4x80xbf16>
    %44 = vector.shape_cast %43 : vector<4x4x80xbf16> to vector<16x80xbf16>
    %45 = vector.extract_strided_slice %12 {offsets = [3, 0, 0], sizes = [1, 80, 32], strides = [1, 1, 1]} : vector<5x80x32xbf16> to vector<1x80x32xbf16>
    %46 = vector.shape_cast %45 : vector<1x80x32xbf16> to vector<80x32xbf16>
    %cst_19 = arith.constant dense<0.000000e+00> : vector<16x32xf32>
    %47 = tpu.matmul %44, %46, %cst_19 {dimension_numbers = #tpu.dot_dimension_numbers<[1], [0], [0], [1], [0, 0, 1, 1], [], []>} : vector<16x80xbf16>, vector<80x32xbf16>, vector<16x32xf32> -> vector<16x32xf32>
    %48 = arith.addf %42, %47 : vector<16x32xf32>
    %49 = vector.extract_strided_slice %23 {offsets = [4, 0, 0], sizes = [4, 4, 80], strides = [1, 1, 1]} : vector<8x4x80xbf16> to vector<4x4x80xbf16>
    %50 = vector.shape_cast %49 : vector<4x4x80xbf16> to vector<16x80xbf16>
    %51 = vector.extract_strided_slice %12 {offsets = [4, 0, 0], sizes = [1, 80, 32], strides = [1, 1, 1]} : vector<5x80x32xbf16> to vector<1x80x32xbf16>
    %52 = vector.shape_cast %51 : vector<1x80x32xbf16> to vector<80x32xbf16>
    %cst_20 = arith.constant dense<0.000000e+00> : vector<16x32xf32>
    %53 = tpu.matmul %50, %52, %cst_20 {dimension_numbers = #tpu.dot_dimension_numbers<[1], [0], [0], [1], [0, 0, 1, 1], [], []>} : vector<16x80xbf16>, vector<80x32xbf16>, vector<16x32xf32> -> vector<16x32xf32>
    %54 = arith.addf %48, %53 : vector<16x32xf32>
    %55 = vector.broadcast %13 : vector<1x32xf32> to vector<16x32xf32>
    %56 = arith.addf %54, %55 : vector<16x32xf32>
    %cst_21 = arith.constant 0.000000e+00 : f32
    %57 = vector.broadcast %cst_21 : f32 to vector<16x32xf32>
    %58 = arith.maximumf %56, %57 : vector<16x32xf32>
    %59 = vector.shape_cast %58 : vector<16x32xf32> to vector<4x4x32xf32>
    %60 = vector.extract_strided_slice %59 {offsets = [0, 0, 0], sizes = [4, 4, 16], strides = [1, 1, 1]} : vector<4x4x32xf32> to vector<4x4x16xf32>
    %61 = vector.shape_cast %60 : vector<4x4x16xf32> to vector<4x64xf32>
    %62 = vector.extract_strided_slice %59 {offsets = [0, 0, 16], sizes = [4, 4, 16], strides = [1, 1, 1]} : vector<4x4x32xf32> to vector<4x4x16xf32>
    %63 = vector.shape_cast %62 : vector<4x4x16xf32> to vector<4x64xf32>
    %64 = vector.shape_cast %61 : vector<4x64xf32> to vector<4x1x64xf32>
    %65 = vector.shape_cast %63 : vector<4x64xf32> to vector<4x1x64xf32>
    %66 = tpu.concatenate %64, %65 in 1 : vector<4x1x64xf32>, vector<4x1x64xf32> -> vector<4x2x64xf32>
    %67 = vector.shape_cast %66 : vector<4x2x64xf32> to vector<8x64xf32>
    %68 = arith.truncf %67 : vector<8x64xf32> to vector<8x64xbf16>
    %69 = vector.shape_cast %68 : vector<8x64xbf16> to vector<8x8x8xbf16>
    %c0_22 = arith.constant 0 : index
    %c0_23 = arith.constant 0 : index
    %c0_24 = arith.constant 0 : index
    %70 = vector.load %arg6[%c0_22, %c0_23, %c0_24] : memref<5x40x16xbf16, #tpu.memory_space<vmem>>, vector<5x40x16xbf16>
    %c0_25 = arith.constant 0 : index
    %c0_26 = arith.constant 0 : index
    %71 = vector.load %arg7[%c0_25, %c0_26] : memref<1x16xf32, #tpu.memory_space<vmem>>, vector<1x16xf32>
    %cst_27 = arith.constant 0.000000e+00 : bf16
    %72 = vector.broadcast %cst_27 : bf16 to vector<8x2x8xbf16>
    %73 = tpu.concatenate %72, %69, %72 in 1 : vector<8x2x8xbf16>, vector<8x8x8xbf16>, vector<8x2x8xbf16> -> vector<8x12x8xbf16>
    %cst_28 = arith.constant 0.000000e+00 : bf16
    %74 = vector.broadcast %cst_28 : bf16 to vector<2x12x8xbf16>
    %75 = tpu.concatenate %74, %73, %74 in 0 : vector<2x12x8xbf16>, vector<8x12x8xbf16>, vector<2x12x8xbf16> -> vector<12x12x8xbf16>
    %76 = vector.extract_strided_slice %75 {offsets = [0, 0, 0], sizes = [12, 8, 8], strides = [1, 1, 1]} : vector<12x12x8xbf16> to vector<12x8x8xbf16>
    %77 = vector.extract_strided_slice %75 {offsets = [0, 1, 0], sizes = [12, 8, 8], strides = [1, 1, 1]} : vector<12x12x8xbf16> to vector<12x8x8xbf16>
    %78 = vector.extract_strided_slice %75 {offsets = [0, 2, 0], sizes = [12, 8, 8], strides = [1, 1, 1]} : vector<12x12x8xbf16> to vector<12x8x8xbf16>
    %79 = vector.extract_strided_slice %75 {offsets = [0, 3, 0], sizes = [12, 8, 8], strides = [1, 1, 1]} : vector<12x12x8xbf16> to vector<12x8x8xbf16>
    %80 = vector.extract_strided_slice %75 {offsets = [0, 4, 0], sizes = [12, 8, 8], strides = [1, 1, 1]} : vector<12x12x8xbf16> to vector<12x8x8xbf16>
    %81 = tpu.concatenate %76, %77, %78, %79, %80 in 2 : vector<12x8x8xbf16>, vector<12x8x8xbf16>, vector<12x8x8xbf16>, vector<12x8x8xbf16>, vector<12x8x8xbf16> -> vector<12x8x40xbf16>
    %cst_29 = arith.constant 0.000000e+00 : f32
    %82 = vector.broadcast %cst_29 : f32 to vector<64x16xf32>
    %83 = vector.extract_strided_slice %81 {offsets = [0, 0, 0], sizes = [8, 8, 40], strides = [1, 1, 1]} : vector<12x8x40xbf16> to vector<8x8x40xbf16>
    %84 = vector.shape_cast %83 : vector<8x8x40xbf16> to vector<64x40xbf16>
    %85 = vector.extract_strided_slice %70 {offsets = [0, 0, 0], sizes = [1, 40, 16], strides = [1, 1, 1]} : vector<5x40x16xbf16> to vector<1x40x16xbf16>
    %86 = vector.shape_cast %85 : vector<1x40x16xbf16> to vector<40x16xbf16>
    %cst_30 = arith.constant dense<0.000000e+00> : vector<64x16xf32>
    %87 = tpu.matmul %84, %86, %cst_30 {dimension_numbers = #tpu.dot_dimension_numbers<[1], [0], [0], [1], [0, 0, 1, 1], [], []>} : vector<64x40xbf16>, vector<40x16xbf16>, vector<64x16xf32> -> vector<64x16xf32>
    %88 = arith.addf %82, %87 : vector<64x16xf32>
    %89 = vector.extract_strided_slice %81 {offsets = [1, 0, 0], sizes = [8, 8, 40], strides = [1, 1, 1]} : vector<12x8x40xbf16> to vector<8x8x40xbf16>
    %90 = vector.shape_cast %89 : vector<8x8x40xbf16> to vector<64x40xbf16>
    %91 = vector.extract_strided_slice %70 {offsets = [1, 0, 0], sizes = [1, 40, 16], strides = [1, 1, 1]} : vector<5x40x16xbf16> to vector<1x40x16xbf16>
    %92 = vector.shape_cast %91 : vector<1x40x16xbf16> to vector<40x16xbf16>
    %cst_31 = arith.constant dense<0.000000e+00> : vector<64x16xf32>
    %93 = tpu.matmul %90, %92, %cst_31 {dimension_numbers = #tpu.dot_dimension_numbers<[1], [0], [0], [1], [0, 0, 1, 1], [], []>} : vector<64x40xbf16>, vector<40x16xbf16>, vector<64x16xf32> -> vector<64x16xf32>
    %94 = arith.addf %88, %93 : vector<64x16xf32>
    %95 = vector.extract_strided_slice %81 {offsets = [2, 0, 0], sizes = [8, 8, 40], strides = [1, 1, 1]} : vector<12x8x40xbf16> to vector<8x8x40xbf16>
    %96 = vector.shape_cast %95 : vector<8x8x40xbf16> to vector<64x40xbf16>
    %97 = vector.extract_strided_slice %70 {offsets = [2, 0, 0], sizes = [1, 40, 16], strides = [1, 1, 1]} : vector<5x40x16xbf16> to vector<1x40x16xbf16>
    %98 = vector.shape_cast %97 : vector<1x40x16xbf16> to vector<40x16xbf16>
    %cst_32 = arith.constant dense<0.000000e+00> : vector<64x16xf32>
    %99 = tpu.matmul %96, %98, %cst_32 {dimension_numbers = #tpu.dot_dimension_numbers<[1], [0], [0], [1], [0, 0, 1, 1], [], []>} : vector<64x40xbf16>, vector<40x16xbf16>, vector<64x16xf32> -> vector<64x16xf32>
    %100 = arith.addf %94, %99 : vector<64x16xf32>
    %101 = vector.extract_strided_slice %81 {offsets = [3, 0, 0], sizes = [8, 8, 40], strides = [1, 1, 1]} : vector<12x8x40xbf16> to vector<8x8x40xbf16>
    %102 = vector.shape_cast %101 : vector<8x8x40xbf16> to vector<64x40xbf16>
    %103 = vector.extract_strided_slice %70 {offsets = [3, 0, 0], sizes = [1, 40, 16], strides = [1, 1, 1]} : vector<5x40x16xbf16> to vector<1x40x16xbf16>
    %104 = vector.shape_cast %103 : vector<1x40x16xbf16> to vector<40x16xbf16>
    %cst_33 = arith.constant dense<0.000000e+00> : vector<64x16xf32>
    %105 = tpu.matmul %102, %104, %cst_33 {dimension_numbers = #tpu.dot_dimension_numbers<[1], [0], [0], [1], [0, 0, 1, 1], [], []>} : vector<64x40xbf16>, vector<40x16xbf16>, vector<64x16xf32> -> vector<64x16xf32>
    %106 = arith.addf %100, %105 : vector<64x16xf32>
    %107 = vector.extract_strided_slice %81 {offsets = [4, 0, 0], sizes = [8, 8, 40], strides = [1, 1, 1]} : vector<12x8x40xbf16> to vector<8x8x40xbf16>
    %108 = vector.shape_cast %107 : vector<8x8x40xbf16> to vector<64x40xbf16>
    %109 = vector.extract_strided_slice %70 {offsets = [4, 0, 0], sizes = [1, 40, 16], strides = [1, 1, 1]} : vector<5x40x16xbf16> to vector<1x40x16xbf16>
    %110 = vector.shape_cast %109 : vector<1x40x16xbf16> to vector<40x16xbf16>
    %cst_34 = arith.constant dense<0.000000e+00> : vector<64x16xf32>
    %111 = tpu.matmul %108, %110, %cst_34 {dimension_numbers = #tpu.dot_dimension_numbers<[1], [0], [0], [1], [0, 0, 1, 1], [], []>} : vector<64x40xbf16>, vector<40x16xbf16>, vector<64x16xf32> -> vector<64x16xf32>
    %112 = arith.addf %106, %111 : vector<64x16xf32>
    %113 = vector.broadcast %71 : vector<1x16xf32> to vector<64x16xf32>
    %114 = arith.addf %112, %113 : vector<64x16xf32>
    %cst_35 = arith.constant 0.000000e+00 : f32
    %115 = vector.broadcast %cst_35 : f32 to vector<64x16xf32>
    %116 = arith.maximumf %114, %115 : vector<64x16xf32>
    %117 = vector.shape_cast %116 : vector<64x16xf32> to vector<8x8x16xf32>
    %118 = vector.extract_strided_slice %117 {offsets = [0, 0, 0], sizes = [8, 8, 8], strides = [1, 1, 1]} : vector<8x8x16xf32> to vector<8x8x8xf32>
    %119 = vector.shape_cast %118 : vector<8x8x8xf32> to vector<8x64xf32>
    %120 = vector.extract_strided_slice %117 {offsets = [0, 0, 8], sizes = [8, 8, 8], strides = [1, 1, 1]} : vector<8x8x16xf32> to vector<8x8x8xf32>
    %121 = vector.shape_cast %120 : vector<8x8x8xf32> to vector<8x64xf32>
    %122 = vector.shape_cast %119 : vector<8x64xf32> to vector<8x1x64xf32>
    %123 = vector.shape_cast %121 : vector<8x64xf32> to vector<8x1x64xf32>
    %124 = tpu.concatenate %122, %123 in 1 : vector<8x1x64xf32>, vector<8x1x64xf32> -> vector<8x2x64xf32>
    %125 = vector.shape_cast %124 : vector<8x2x64xf32> to vector<16x64xf32>
    %c0_36 = arith.constant 0 : index
    %c0_37 = arith.constant 0 : index
    %c0_38 = arith.constant 0 : index
    %126 = vector.load %arg8[%c0_36, %c0_37, %c0_38] : memref<1x16x64xf32, #tpu.memory_space<vmem>>, vector<1x16x64xf32>
    %127 = vector.shape_cast %126 : vector<1x16x64xf32> to vector<16x64xf32>
    %128 = vector.shape_cast %125 : vector<16x64xf32> to vector<1x16x64xf32>
    tpu.vector_store %arg8[%c0_36, %c0_37, %c0_38], %128 {strides = array<i32>} : memref<1x16x64xf32, #tpu.memory_space<vmem>>, vector<1x16x64xf32>,
    return
  }
  func.func @transform_0(%arg0: i32) -> (i32, i32, i32, i32) {
    %c0_i32 = arith.constant 0 : i32
    %c0_i32_0 = arith.constant 0 : i32
    %c0_i32_1 = arith.constant 0 : i32
    %c0_i32_2 = arith.constant 0 : i32
    return %arg0, %c0_i32, %c0_i32_0, %c0_i32_1 : i32, i32, i32, i32
  }
  func.func @transform_1(%arg0: i32) -> (i32, i32) {
    %c0_i32 = arith.constant 0 : i32
    %c0_i32_0 = arith.constant 0 : i32
    %c0_i32_1 = arith.constant 0 : i32
    return %c0_i32, %c0_i32_0 : i32, i32
  }
  func.func @transform_2(%arg0: i32) -> (i32, i32) {
    %c0_i32 = arith.constant 0 : i32
    %c0_i32_0 = arith.constant 0 : i32
    %c0_i32_1 = arith.constant 0 : i32
    return %c0_i32, %c0_i32_0 : i32, i32
  }
  func.func @transform_3(%arg0: i32) -> (i32, i32, i32) {
    %c0_i32 = arith.constant 0 : i32
    %c0_i32_0 = arith.constant 0 : i32
    %c0_i32_1 = arith.constant 0 : i32
    %c0_i32_2 = arith.constant 0 : i32
    return %c0_i32, %c0_i32_0, %c0_i32_1 : i32, i32, i32
  }
  func.func @transform_4(%arg0: i32) -> (i32, i32) {
    %c0_i32 = arith.constant 0 : i32
    %c0_i32_0 = arith.constant 0 : i32
    %c0_i32_1 = arith.constant 0 : i32
    return %c0_i32, %c0_i32_0 : i32, i32
  }
  func.func @transform_5(%arg0: i32) -> (i32, i32, i32) {
    %c0_i32 = arith.constant 0 : i32
    %c0_i32_0 = arith.constant 0 : i32
    %c0_i32_1 = arith.constant 0 : i32
    %c0_i32_2 = arith.constant 0 : i32
    return %c0_i32, %c0_i32_0, %c0_i32_1 : i32, i32, i32
  }
  func.func @transform_6(%arg0: i32) -> (i32, i32) {
    %c0_i32 = arith.constant 0 : i32
    %c0_i32_0 = arith.constant 0 : i32
    %c0_i32_1 = arith.constant 0 : i32
    return %c0_i32, %c0_i32_0 : i32, i32
  }
  func.func @transform_7(%arg0: i32) -> (i32, i32, i32) {
    %c0_i32 = arith.constant 0 : i32
    %c0_i32_0 = arith.constant 0 : i32
    %c0_i32_1 = arith.constant 0 : i32
    return %arg0, %c0_i32, %c0_i32_0 : i32, i32, i32
  }
}

</mosaic_0001>

<llo_original>
// kernel: tile.13
$region0: #{tile.13}
  #allocation0 [shape = 's32[1]{0}', space=sflag, size = 0x4, scoped, tag = 'scoped memory for tile.13']
  %s0 = inlined_call_operand.vmem [shape: f32[8], index: 0, kind: input, shape index: {}]
  %s1 = inlined_call_operand.vmem [shape: f32[4,8], index: 1, kind: output, shape index: {}]
  // Predicated region
  $region2: #{tile.13} parent=0 // pred_check
    _
  $region3: #{tile.13} parent=0 // pred_check_branch
    %3 = sbr.rel (0) target = $region5
  $region4: #{tile.13} parent=0 // pred_region
    _
  $region5: #{tile.13} parent=0 // pred_fallthru
    _
  %v4 = vld [vmem:[%s0] ss:$0 sm:$0xff]
  %5 = vst [vmem:[%s1] sm:$0xf] %v4

// kernel: tile.14
$region0: #{tile.14}
  %s0 = inlined_call_operand.vmem [shape: f32[4,8], index: 0, kind: input, shape index: {}]
  %s1 = inlined_call_operand.vmem [shape: f32[1,32], index: 1, kind: output, shape index: {}]
  $region1: #{tile.14} parent=0
    #allocation0 [shape = 'u8[4096]{0}', space=vmem, size = 0x1000, scoped, tag = 'scoped mem for output reshape']
    #allocation1 [shape = 'u8[4096]{0}', space=vmem, size = 0x1000, scoped, tag = 'scoped mem for input reshape']
    %s3 = sshll.u32 1, 4
    %s4 = ssub.s32 %s3, 1
    %v5 = vld [vmem:[%s0] sm:%s4]
    %6 = vst [vmem:[#allocation1] sm:%s4] %v5
    %v7 = vld [vmem:[#allocation1] sm:$0x1]
    %vm8 = vcmask 64512
    %9 = vst.msk [vmem:[#allocation0] sm:$0x1] %vm8, %v7
    %s10 = scalar_lea.vmem [#allocation1], 3
    %v11 = vld [vmem:[%s10] sm:$0x1]
    %12 = vrot.lane.b32.xlu0 %v11, 24
    %v13 = vpop.permute.xlu0 %12
    %vm14 = vcmask 261312
    %15 = vst.msk [vmem:[#allocation0] sm:$0x1] %vm14, %v13
    %s16 = scalar_lea.vmem [#allocation1], 2
    %v17 = vld [vmem:[%s16] sm:$0x1]
    %18 = vrot.lane.b32.xlu0 %v17, 16
    %v19 = vpop.permute.xlu0 %18
    %vm20 = vcmask 195712
    %21 = vst.msk [vmem:[#allocation0] sm:$0x1] %vm20, %v19
    %s22 = scalar_lea.vmem [#allocation1], 1
    %v23 = vld [vmem:[%s22] sm:$0x1]
    %24 = vrot.lane.b32.xlu0 %v23, 8
    %v25 = vpop.permute.xlu0 %24
    %vm26 = vcmask 130112
    %27 = vst.msk [vmem:[#allocation0] sm:$0x1] %vm26, %v25
    %s29 = sshll.u32 1, 1
    %s30 = ssub.s32 %s29, 1
    %v32 = vld [vmem:[#allocation0] sm:%s30]
    %s33 = sshll.u32 1, 1
    %s34 = ssub.s32 %s33, 1
    %35 = vst [vmem:[%s1] sm:%s34] %v32

// kernel: tile.18
$region0: #{tile.18}
  #allocation0 [shape = 's32[1]{0}', space=sflag, size = 0x4, scoped, tag = 'scoped memory for tile.18']
  %s0 = inlined_call_operand.vmem [shape: f32[4], index: 0, kind: input, shape index: {}]
  %s1 = inlined_call_operand.vmem [shape: f32[4,4], index: 1, kind: output, shape index: {}]
  // Predicated region
  $region2: #{tile.18} parent=0 // pred_check
    _
  $region3: #{tile.18} parent=0 // pred_check_branch
    %3 = sbr.rel (0) target = $region5
  $region4: #{tile.18} parent=0 // pred_region
    _
  $region5: #{tile.18} parent=0 // pred_fallthru
    _
  %v4 = vld [vmem:[%s0] ss:$0 sm:$0xff]
  %5 = vst [vmem:[%s1] sm:$0xf] %v4

// kernel: tile.19
$region0: #{tile.19}
  %s0 = inlined_call_operand.vmem [shape: f32[4,4], index: 0, kind: input, shape index: {}]
  %s1 = inlined_call_operand.vmem [shape: f32[1,16], index: 1, kind: output, shape index: {}]
  $region1: #{tile.19} parent=0
    #allocation0 [shape = 'u8[4096]{0}', space=vmem, size = 0x1000, scoped, tag = 'scoped mem for output reshape']
    #allocation1 [shape = 'u8[4096]{0}', space=vmem, size = 0x1000, scoped, tag = 'scoped mem for input reshape']
    %s3 = sshll.u32 1, 4
    %s4 = ssub.s32 %s3, 1
    %v5 = vld [vmem:[%s0] sm:%s4]
    %6 = vst [vmem:[#allocation1] sm:%s4] %v5
    %v7 = vld [vmem:[#allocation1] sm:$0x1]
    %vm8 = vcmask 31744
    %9 = vst.msk [vmem:[#allocation0] sm:$0x1] %vm8, %v7
    %s10 = scalar_lea.vmem [#allocation1], 3
    %v11 = vld [vmem:[%s10] sm:$0x1]
    %12 = vrot.lane.b32.xlu0 %v11, 12
    %v13 = vpop.permute.xlu0 %12
    %vm14 = vcmask 130144
    %15 = vst.msk [vmem:[#allocation0] sm:$0x1] %vm14, %v13
    %s16 = scalar_lea.vmem [#allocation1], 2
    %v17 = vld [vmem:[%s16] sm:$0x1]
    %18 = vrot.lane.b32.xlu0 %v17, 8
    %v19 = vpop.permute.xlu0 %18
    %vm20 = vcmask 97344
    %21 = vst.msk [vmem:[#allocation0] sm:$0x1] %vm20, %v19
    %s22 = scalar_lea.vmem [#allocation1], 1
    %v23 = vld [vmem:[%s22] sm:$0x1]
    %24 = vrot.lane.b32.xlu0 %v23, 4
    %v25 = vpop.permute.xlu0 %24
    %vm26 = vcmask 64544
    %27 = vst.msk [vmem:[#allocation0] sm:$0x1] %vm26, %v25
    %s29 = sshll.u32 1, 1
    %s30 = ssub.s32 %s29, 1
    %v32 = vld [vmem:[#allocation0] sm:%s30]
    %s33 = sshll.u32 1, 1
    %s34 = ssub.s32 %s33, 1
    %35 = vst [vmem:[%s1] sm:%s34] %v32

// kernel: convolutional_decoder_forward.1
$region0: #{convolutional_decoder_forward.1}
  #allocation0 [shape = 'u32[]', space=smem, size = 0x4, offset = 0x4, fixed_abs, tag = 'smem constant byte address 0x4 - core index']
  #allocation1 [shape = 'u32[144,128]{1,0:T(1,128)}', space=vmem, size = 0x12000, scoped, tag = 'internal scratch']
  %s0 = inlined_call_operand.vmem [shape: bf16[2,4,4,32], index: 0, kind: input, shape index: {}]
  %s1 = inlined_call_operand.vmem [shape: bf16[32,16], index: 1, kind: input, shape index: {}]
  %s2 = inlined_call_operand.vmem [shape: f32[1,16], index: 2, kind: input, shape index: {}]
  %s3 = inlined_call_operand.vmem [shape: bf16[5,80,32], index: 3, kind: input, shape index: {}]
  %s4 = inlined_call_operand.vmem [shape: f32[1,32], index: 4, kind: input, shape index: {}]
  %s5 = inlined_call_operand.vmem [shape: bf16[5,40,16], index: 5, kind: input, shape index: {}]
  %s6 = inlined_call_operand.vmem [shape: f32[1,16], index: 6, kind: input, shape index: {}]
  %s7 = inlined_call_operand.vmem [shape: f32[2,16,64], index: 7, kind: output, shape index: {}]
  %s8 = sld [smem:[#allocation0]]
  $region61: #{convolutional_decoder_forward.1} parent=0
    _
  %s10 = ssub.s32 1, %s8
  %s11 = scalar_select 0, %s10, %s8
  loop: start=0, step=1, limit=4
  $region2: #{convolutional_decoder_forward.1} parent=0 // loop_pre_header
    _
  $region3: #{convolutional_decoder_forward.1} parent=0 // loop_header
    %s13 = sphi 0, %s17
    %p14 = scmp.ge.s32.totalorder %s13, 4
    %s23 = sphi 0, %s25
    %s26 = sphi 0, %s23
    %s27 = sphi 0, %s26
    %s43 = sphi 0, %s27
    %s47 = sphi 0, %s47
    %s49 = sphi 0, %s47
    %s50 = sphi 0, %s49
    %s64 = sphi 0, %s50
    %s68 = sphi 0, %s68
    %s70 = sphi 0, %s68
    %s71 = sphi 0, %s70
    %s85 = sphi 0, %s71
    %s89 = sphi 0, %s89
    %s91 = sphi 0, %s89
    %s92 = sphi 0, %s91
    %s106 = sphi 0, %s92
    %s110 = sphi 0, %s110
    %s112 = sphi 0, %s110
    %s113 = sphi 0, %s112
    %s127 = sphi 0, %s113
    %s131 = sphi 0, %s131
    %s133 = sphi 0, %s131
    %s134 = sphi 0, %s133
    %s148 = sphi 0, %s134
    %s152 = sphi 0, %s152
    %s154 = sphi 0, %s152
    %s155 = sphi 0, %s154
    %s169 = sphi 0, %s155
    %s175 = sphi 0, %s177
    %s178 = sphi 0, %s175
    %s179 = sphi 0, %s178
    %s195 = sphi 0, %s179
  $region4: #{convolutional_decoder_forward.1} parent=0 // loop_header_branch
    %16 = sbr.rel (%p14) target = $region8
  $region5: #{convolutional_decoder_forward.1} parent=0 // loop_body
    %s18 = ssub.s32 %s13, 1
    %s19 = ssub.s32 %s13, 2
    %s20 = sadd.s32 %s13, 1
    %s21 = ssub.s32 %s13, %s20
    %p22 = scmp.eq.s32.totalorder %s21, 0
    %s24 = sadd.s32 %s23, 1
    %s25 = scalar_select %p22, %s23, %s24
    %p28 = pneg %p22
    %p29 = scmp.eq.s32.totalorder %s13, 1
    %p30 = por %p28, %p29
    %p31 = scmp.ne.s32.totalorder %s23, %s26
    %p32 = scmp.eq.s32.totalorder %s13, 0
    %p33 = por %p31, %p32
    %p34 = scmp.ne.s32.totalorder %s23, %s26
    %p35 = scmp.eq.s32.totalorder %s18, 1
    %p36 = por %p34, %p35
    %p37 = scmp.ne.s32.totalorder %s26, %s27
    %p38 = scmp.eq.s32.totalorder %s18, 0
    %p39 = por %p37, %p38
    %p40 = scmp.ne.s32.totalorder %s26, %s27
    %p41 = scmp.eq.s32.totalorder %s19, 1
    %p42 = por %p40, %p41
    %p44 = scmp.ne.s32.totalorder %s27, %s43
    %p45 = scmp.eq.s32.totalorder %s19, 0
    %p46 = por %p44, %p45
    %s48 = sadd.s32 %s47, 1
    %p51 = scmp.eq.s32.totalorder %s13, 1
    %p52 = scmp.ne.s32.totalorder %s47, %s49
    %p53 = scmp.eq.s32.totalorder %s13, 0
    %p54 = por %p52, %p53
    %p55 = scmp.ne.s32.totalorder %s47, %s49
    %p56 = scmp.eq.s32.totalorder %s18, 1
    %p57 = por %p55, %p56
    %p58 = scmp.ne.s32.totalorder %s49, %s50
    %p59 = scmp.eq.s32.totalorder %s18, 0
    %p60 = por %p58, %p59
    %p61 = scmp.ne.s32.totalorder %s49, %s50
    %p62 = scmp.eq.s32.totalorder %s19, 1
    %p63 = por %p61, %p62
    %p65 = scmp.ne.s32.totalorder %s50, %s64
    %p66 = scmp.eq.s32.totalorder %s19, 0
    %p67 = por %p65, %p66
    %s69 = sadd.s32 %s68, 1
    %p72 = scmp.eq.s32.totalorder %s13, 1
    %p73 = scmp.ne.s32.totalorder %s68, %s70
    %p74 = scmp.eq.s32.totalorder %s13, 0
    %p75 = por %p73, %p74
    %p76 = scmp.ne.s32.totalorder %s68, %s70
    %p77 = scmp.eq.s32.totalorder %s18, 1
    %p78 = por %p76, %p77
    %p79 = scmp.ne.s32.totalorder %s70, %s71
    %p80 = scmp.eq.s32.totalorder %s18, 0
    %p81 = por %p79, %p80
    %p82 = scmp.ne.s32.totalorder %s70, %s71
    %p83 = scmp.eq.s32.totalorder %s19, 1
    %p84 = por %p82, %p83
    %p86 = scmp.ne.s32.totalorder %s71, %s85
    %p87 = scmp.eq.s32.totalorder %s19, 0
    %p88 = por %p86, %p87
    %s90 = sadd.s32 %s89, 1
    %p93 = scmp.eq.s32.totalorder %s13, 1
    %p94 = scmp.ne.s32.totalorder %s89, %s91
    %p95 = scmp.eq.s32.totalorder %s13, 0
    %p96 = por %p94, %p95
    %p97 = scmp.ne.s32.totalorder %s89, %s91
    %p98 = scmp.eq.s32.totalorder %s18, 1
    %p99 = por %p97, %p98
    %p100 = scmp.ne.s32.totalorder %s91, %s92
    %p101 = scmp.eq.s32.totalorder %s18, 0
    %p102 = por %p100, %p101
    %p103 = scmp.ne.s32.totalorder %s91, %s92
    %p104 = scmp.eq.s32.totalorder %s19, 1
    %p105 = por %p103, %p104
    %p107 = scmp.ne.s32.totalorder %s92, %s106
    %p108 = scmp.eq.s32.totalorder %s19, 0
    %p109 = por %p107, %p108
    %s111 = sadd.s32 %s110, 1
    %p114 = scmp.eq.s32.totalorder %s13, 1
    %p115 = scmp.ne.s32.totalorder %s110, %s112
    %p116 = scmp.eq.s32.totalorder %s13, 0
    %p117 = por %p115, %p116
    %p118 = scmp.ne.s32.totalorder %s110, %s112
    %p119 = scmp.eq.s32.totalorder %s18, 1
    %p120 = por %p118, %p119
    %p121 = scmp.ne.s32.totalorder %s112, %s113
    %p122 = scmp.eq.s32.totalorder %s18, 0
    %p123 = por %p121, %p122
    %p124 = scmp.ne.s32.totalorder %s112, %s113
    %p125 = scmp.eq.s32.totalorder %s19, 1
    %p126 = por %p124, %p125
    %p128 = scmp.ne.s32.totalorder %s113, %s127
    %p129 = scmp.eq.s32.totalorder %s19, 0
    %p130 = por %p128, %p129
    %s132 = sadd.s32 %s131, 1
    %p135 = scmp.eq.s32.totalorder %s13, 1
    %p136 = scmp.ne.s32.totalorder %s131, %s133
    %p137 = scmp.eq.s32.totalorder %s13, 0
    %p138 = por %p136, %p137
    %p139 = scmp.ne.s32.totalorder %s131, %s133
    %p140 = scmp.eq.s32.totalorder %s18, 1
    %p141 = por %p139, %p140
    %p142 = scmp.ne.s32.totalorder %s133, %s134
    %p143 = scmp.eq.s32.totalorder %s18, 0
    %p144 = por %p142, %p143
    %p145 = scmp.ne.s32.totalorder %s133, %s134
    %p146 = scmp.eq.s32.totalorder %s19, 1
    %p147 = por %p145, %p146
    %p149 = scmp.ne.s32.totalorder %s134, %s148
    %p150 = scmp.eq.s32.totalorder %s19, 0
    %p151 = por %p149, %p150
    %s153 = sadd.s32 %s152, 1
    %p156 = scmp.eq.s32.totalorder %s13, 1
    %p157 = scmp.ne.s32.totalorder %s152, %s154
    %p158 = scmp.eq.s32.totalorder %s13, 0
    %p159 = por %p157, %p158
    %p160 = scmp.ne.s32.totalorder %s152, %s154
    %p161 = scmp.eq.s32.totalorder %s18, 1
    %p162 = por %p160, %p161
    %p163 = scmp.ne.s32.totalorder %s154, %s155
    %p164 = scmp.eq.s32.totalorder %s18, 0
    %p165 = por %p163, %p164
    %p166 = scmp.ne.s32.totalorder %s154, %s155
    %p167 = scmp.eq.s32.totalorder %s19, 1
    %p168 = por %p166, %p167
    %p170 = scmp.ne.s32.totalorder %s155, %s169
    %p171 = scmp.eq.s32.totalorder %s19, 0
    %p172 = por %p170, %p171
    %s173 = ssub.s32 %s13, %s20
    %p174 = scmp.eq.s32.totalorder %s173, 0
    %s176 = sadd.s32 %s175, 1
    %s177 = scalar_select %p174, %s175, %s176
    %p180 = pneg %p174
    %p181 = scmp.eq.s32.totalorder %s13, 1
    %p182 = por %p180, %p181
    %p183 = scmp.ne.s32.totalorder %s175, %s178
    %p184 = scmp.eq.s32.totalorder %s13, 0
    %p185 = por %p183, %p184
    %p186 = scmp.ne.s32.totalorder %s175, %s178
    %p187 = scmp.eq.s32.totalorder %s18, 1
    %p188 = por %p186, %p187
    %p189 = scmp.ne.s32.totalorder %s178, %s179
    %p190 = scmp.eq.s32.totalorder %s18, 0
    %p191 = por %p189, %p190
    %p192 = scmp.ne.s32.totalorder %s178, %s179
    %p193 = scmp.eq.s32.totalorder %s19, 1
    %p194 = por %p192, %p193
    %p196 = scmp.ne.s32.totalorder %s179, %s195
    %p197 = scmp.eq.s32.totalorder %s19, 0
    %p198 = por %p196, %p197
    %p199 = scmp.le.s32.totalorder 1, %s13
    %p200 = scmp.lt.s32.totalorder %s13, 3
    %p201 = pnand %p199, %p200
    %p202 = pneg %p201
    // Predicated region
    $region9: #{convolutional_decoder_forward.1} parent=5 // pred_check
      _
    $region10: #{convolutional_decoder_forward.1} parent=5 // pred_check_branch
      %204 = sbr.rel (%p201) target = $region12
    $region11: #{convolutional_decoder_forward.1} parent=5 // pred_region
      %s205 = ssub.s32 %s13, 1
      // Predicated region
      $region13: #{convolutional_decoder_forward.1} parent=11 // pred_check
        %p206 = pneg %p60
      $region14: #{convolutional_decoder_forward.1} parent=11 // pred_check_branch
        %208 = sbr.rel (%p206) target = $region16
      $region15: #{convolutional_decoder_forward.1} parent=11 // pred_region
        _
      $region16: #{convolutional_decoder_forward.1} parent=11 // pred_fallthru
        _
      // Predicated region
      $region17: #{convolutional_decoder_forward.1} parent=11 // pred_check
        %p209 = pneg %p81
      $region18: #{convolutional_decoder_forward.1} parent=11 // pred_check_branch
        %211 = sbr.rel (%p209) target = $region20
      $region19: #{convolutional_decoder_forward.1} parent=11 // pred_region
        _
      $region20: #{convolutional_decoder_forward.1} parent=11 // pred_fallthru
        _
      // Predicated region
      $region21: #{convolutional_decoder_forward.1} parent=11 // pred_check
        %p212 = pneg %p102
      $region22: #{convolutional_decoder_forward.1} parent=11 // pred_check_branch
        %214 = sbr.rel (%p212) target = $region24
      $region23: #{convolutional_decoder_forward.1} parent=11 // pred_region
        _
      $region24: #{convolutional_decoder_forward.1} parent=11 // pred_fallthru
        _
      // Predicated region
      $region25: #{convolutional_decoder_forward.1} parent=11 // pred_check
        %p215 = pneg %p123
      $region26: #{convolutional_decoder_forward.1} parent=11 // pred_check_branch
        %217 = sbr.rel (%p215) target = $region28
      $region27: #{convolutional_decoder_forward.1} parent=11 // pred_region
        _
      $region28: #{convolutional_decoder_forward.1} parent=11 // pred_fallthru
        _
      // Predicated region
      $region29: #{convolutional_decoder_forward.1} parent=11 // pred_check
        %p218 = pneg %p144
      $region30: #{convolutional_decoder_forward.1} parent=11 // pred_check_branch
        %220 = sbr.rel (%p218) target = $region32
      $region31: #{convolutional_decoder_forward.1} parent=11 // pred_region
        _
      $region32: #{convolutional_decoder_forward.1} parent=11 // pred_fallthru
        _
      // Predicated region
      $region33: #{convolutional_decoder_forward.1} parent=11 // pred_check
        %p221 = pneg %p165
      $region34: #{convolutional_decoder_forward.1} parent=11 // pred_check_branch
        %223 = sbr.rel (%p221) target = $region36
      $region35: #{convolutional_decoder_forward.1} parent=11 // pred_region
        _
      $region36: #{convolutional_decoder_forward.1} parent=11 // pred_fallthru
        _
    $region12: #{convolutional_decoder_forward.1} parent=5 // pred_fallthru
      _
    %p224 = scmp.lt.s32.totalorder %s13, 2
    // Predicated region
    $region37: #{convolutional_decoder_forward.1} parent=5 // pred_check
      %p225 = pneg %p224
    $region38: #{convolutional_decoder_forward.1} parent=5 // pred_check_branch
      %227 = sbr.rel (%p225) target = $region40
    $region39: #{convolutional_decoder_forward.1} parent=5 // pred_region
      // Predicated region
      $region41: #{convolutional_decoder_forward.1} parent=39 // pred_check
        %p228 = pneg %p33
      $region42: #{convolutional_decoder_forward.1} parent=39 // pred_check_branch
        %230 = sbr.rel (%p228) target = $region44
      $region43: #{convolutional_decoder_forward.1} parent=39 // pred_region
        %p231 = scmp.lt.s32.totalorder %s13, 1
        %s232 = scalar_select %p231, %s13, 1
        %s233 = smul.addr %s232, 4
        %s234 = smul.addr %s233, 2
        %s235 = scalar_lea.vmem %s0, %s234
      $region44: #{convolutional_decoder_forward.1} parent=39 // pred_fallthru
        _
    $region40: #{convolutional_decoder_forward.1} parent=5 // pred_fallthru
      _
    %p236 = scmp.le.s32.totalorder 1, %s13
    %p237 = scmp.lt.s32.totalorder %s13, 3
    %p238 = pnand %p236, %p237
    %p239 = pneg %p238
    // Predicated region
    $region45: #{convolutional_decoder_forward.1} parent=5 // pred_check
      _
    $region46: #{convolutional_decoder_forward.1} parent=5 // pred_check_branch
      %241 = sbr.rel (%p238) target = $region48
    $region47: #{convolutional_decoder_forward.1} parent=5 // pred_region
      %s242 = ssub.s32 %s13, 1
      %p243 = scmp.lt.s32.totalorder %s18, 1
      %s244 = scalar_select %p243, %s18, 1
      %s245 = smul.addr %s244, 4
      %s246 = smul.addr %s245, 2
      %s247 = scalar_lea.vmem %s0, %s246
      %p248 = pneg %p39
      %p249 = pneg %p36
      %p250 = pneg %p60
      %p251 = pneg %p57
      %p252 = pneg %p81
      %p253 = pneg %p78
      %p254 = pneg %p102
      %p255 = pneg %p99
      %p256 = pneg %p123
      %p257 = pneg %p120
      %p258 = pneg %p144
      %p259 = pneg %p141
      %p260 = pneg %p165
      %p261 = pneg %p162
      %p262 = pneg %p191
      %p263 = pneg %p188
      %p264 = scmp.lt.s32.totalorder %s18, 1
      %s265 = scalar_select %p264, %s18, 1
      %s266 = smul.addr %s265, 2
      %s267 = smul.addr %s266, 8
      %s268 = scalar_lea.vmem %s7, %s267
      %p269 = scmp.lt.s32.totalorder %s18, 1
      %s270 = scalar_select %p269, %s18, 1
      %s271 = smul.addr %s270, 4
      %s272 = smul.addr %s271, 2
      %s273 = scalar_lea.vmem %s0, %s272
      %p274 = scmp.lt.s32.totalorder %s18, 1
      %s275 = scalar_select %p274, %s18, 1
      %s276 = smul.addr %s275, 2
      %s277 = smul.addr %s276, 8
      %s278 = scalar_lea.vmem %s7, %s277
      %v280 = vld [vmem:[%s273] sm:$0x3]
      %v281 = vld [vmem:[%s273 + $0x2] sm:$0x3]
      %v282 = vld [vmem:[%s273 + $0x4] sm:$0x3]
      %v283 = vld [vmem:[%s273 + $0x6] sm:$0x3]
      %v284 = vld [vmem:[%s1] sm:$0xf]
      %v285 = vld [vmem:[%s1 + $0x4] sm:$0xf]
      %v286 = vld [vmem:[%s1 + $0x8] sm:$0xf]
      %v287 = vld [vmem:[%s1 + $0xc] sm:$0xf]
      %v288 = vld [vmem:[%s2] sm:$0x1]
      %v290 = vlaneseq
      %v291 = vshrl.u32 %v290, 7
      %v292 = vsub.s32 0, %v291
      %v293 = vrot.slane %v288, %v292
      %v299 = vcombine.low %v280, %v281
      %v300 = vcombine.low %v282, %v283
      %v302 = vunpack.c.l.s4 1983009808
      %v303 = vunpack.c.0.s8 %v302
      %v304 = vlaneseq
      %v305 = vshrl.u32 %v304, 7
      %v306 = vsub.s32 %v303, %v305
      %v307 = vrot.slane %v299, %v306
      %v309 = vunpack.c.l.s4 1983009808
      %v310 = vunpack.c.0.s8 %v309
      %v311 = vlaneseq
      %v312 = vshrl.u32 %v311, 7
      %v313 = vsub.s32 %v310, %v312
      %v314 = vrot.slane %v300, %v313
      %v315 = vcombine.low %v307, %v314
      %v320 = vunpack.c.l.b16 %v284
      %v321 = vunpack.c.l.b16 %v285
      %v322 = vunpack.c.l.b16 %v286
      %v323 = vunpack.c.l.b16 %v287
      %v324 = vpack.c.b16 %v321, %v320
      %v325 = vpack.c.b16 %v323, %v322
      %vm328 = vcmask 261120
      %v330 = vsel %vm328, %v315, 0
      %332 = vmatprep.subr.bf16.mxu0 0
      %333 = vmatpush1.bf16.msra.mxu0 0
      %334 = vmatprep.subr.bf16.mxu0 0
      %335 = vmatpush1.bf16.msra.mxu0 0
      %336 = vmatprep.subr.bf16.mxu0 0
      %337 = vmatpush1.bf16.msra.mxu0 0
      %338 = vmatprep.subr.bf16.mxu0 0
      %339 = vmatpush1.bf16.msra.mxu0 0
      %340 = vmatprep.subr.bf16.mxu0 0
      %341 = vmatpush1.bf16.msra.mxu0 0
      %342 = vmatprep.subr.bf16.mxu0 0
      %343 = vmatpush1.bf16.msra.mxu0 0
      %344 = vmatprep.subr.bf16.mxu0 0
      %345 = vmatpush1.bf16.msra.mxu0 %v325
      %346 = vmatprep.subr.bf16.mxu0 0
      %347 = vmatpush1.bf16.msra.mxu0 %v324
      %348 = vmatprep.subr.bf16.mxu0 0
      %349 = vmatpush2.bf16.msra.mxu0 0
      %350 = vmatprep.subr.bf16.mxu0 0
      %351 = vmatpush2.bf16.msra.mxu0 0
      %352 = vmatprep.subr.bf16.mxu0 0
      %353 = vmatpush2.bf16.msra.mxu0 0
      %354 = vmatprep.subr.bf16.mxu0 0
      %355 = vmatpush2.bf16.msra.mxu0 0
      %356 = vmatprep.subr.bf16.mxu0 0
      %357 = vmatpush2.bf16.msra.mxu0 0
      %358 = vmatprep.subr.bf16.mxu0 0
      %359 = vmatpush2.bf16.msra.mxu0 0
      %360 = vmatprep.subr.bf16.mxu0 0
      %361 = vmatpush2.bf16.msra.mxu0 0
      %362 = vmatprep.subr.bf16.mxu0 0
      %363 = vmatpush2.bf16.msra.mxu0 0
      %364 = vmatprep.mubr.bf16.mxu0 0
      %365 = vmatmul.mubr.bf16.gmra.mxu0 %v330
      %v366 = vpop.f32.mrf.mxu0
      %v367 = vadd.f32 %v293, %v366
      %v368 = vpop.f32.mrf.mxu0
      %v369 = vpop.f32.mrf.mxu0
      %v370 = vadd.f32 %v293, %v369
      %v371 = vpop.f32.mrf.mxu0
      %372 = vdwg.mxu0
      %v373 = vmax.f32 %v367, 0.0
      %v374 = vmax.f32 %v370, 0.0
      %v375 = vpack.c.bf16 %v374, %v373
      %v377 = vcombine.high %v375, %v375
      %v379 = vunpack.c.l.s4 1983009808
      %v380 = vunpack.c.0.s8 %v379
      %v381 = vlaneseq
      %v382 = vshrl.u32 %v381, 7
      %v383 = vsub.s32 %v380, %v382
      %v384 = vrot.slane %v375, %v383
      %v386 = vunpack.c.l.s4 1983009808
      %v387 = vunpack.c.0.s8 %v386
      %v388 = vlaneseq
      %v389 = vshrl.u32 %v388, 7
      %v390 = vsub.s32 %v387, %v389
      %v391 = vrot.slane %v377, %v390
      %v392 = vcombine.high %v384, %v384
      %v393 = vcombine.high %v391, %v391
      %v394 = vld [vmem:[%s3] sm:$0xf]
      %v395 = vld [vmem:[%s3 + $0x4] sm:$0xf]
      %v396 = vld [vmem:[%s3 + $0x8] sm:$0xf]
      %v397 = vld [vmem:[%s3 + $0xc] sm:$0xf]
      %v398 = vld [vmem:[%s3 + $0x10] sm:$0xf]
      %v399 = vld [vmem:[%s3 + $0x14] sm:$0xf]
      %v400 = vld [vmem:[%s3 + $0x18] sm:$0xf]
      %v401 = vld [vmem:[%s3 + $0x1c] sm:$0xf]
      %v402 = vld [vmem:[%s3 + $0x20] sm:$0xf]
      %v403 = vld [vmem:[%s3 + $0x24] sm:$0xf]
      %v404 = vld [vmem:[%s3 + $0x28] sm:$0xf]
      %v405 = vld [vmem:[%s3 + $0x2c] sm:$0xf]
      %v406 = vld [vmem:[%s3 + $0x30] sm:$0xf]
      %v407 = vld [vmem:[%s3 + $0x34] sm:$0xf]
      %v408 = vld [vmem:[%s3 + $0x38] sm:$0xf]
      %v409 = vld [vmem:[%s3 + $0x3c] sm:$0xf]
      %v410 = vld [vmem:[%s3 + $0x40] sm:$0xf]
      %v411 = vld [vmem:[%s3 + $0x44] sm:$0xf]
      %v412 = vld [vmem:[%s3 + $0x48] sm:$0xf]
      %v413 = vld [vmem:[%s3 + $0x4c] sm:$0xf]
      %v414 = vld [vmem:[%s3 + $0x50] sm:$0xf]
      %v415 = vld [vmem:[%s3 + $0x54] sm:$0xf]
      %v416 = vld [vmem:[%s3 + $0x58] sm:$0xf]
      %v417 = vld [vmem:[%s3 + $0x5c] sm:$0xf]
      %v418 = vld [vmem:[%s3 + $0x60] sm:$0xf]
      %v419 = vld [vmem:[%s3 + $0x64] sm:$0xf]
      %v420 = vld [vmem:[%s3 + $0x68] sm:$0xf]
      %v421 = vld [vmem:[%s3 + $0x6c] sm:$0xf]
      %v422 = vld [vmem:[%s3 + $0x70] sm:$0xf]
      %v423 = vld [vmem:[%s3 + $0x74] sm:$0xf]
      %v424 = vld [vmem:[%s3 + $0x78] sm:$0xf]
      %v425 = vld [vmem:[%s3 + $0x7c] sm:$0xf]
      %v426 = vld [vmem:[%s3 + $0x80] sm:$0xf]
      %v427 = vld [vmem:[%s3 + $0x84] sm:$0xf]
      %v428 = vld [vmem:[%s3 + $0x88] sm:$0xf]
      %v429 = vld [vmem:[%s3 + $0x8c] sm:$0xf]
      %v430 = vld [vmem:[%s3 + $0x90] sm:$0xf]
      %v431 = vld [vmem:[%s3 + $0x94] sm:$0xf]
      %v432 = vld [vmem:[%s3 + $0x98] sm:$0xf]
      %v433 = vld [vmem:[%s3 + $0x9c] sm:$0xf]
      %v434 = vld [vmem:[%s3 + $0xa0] sm:$0xf]
      %v435 = vld [vmem:[%s3 + $0xa4] sm:$0xf]
      %v436 = vld [vmem:[%s3 + $0xa8] sm:$0xf]
      %v437 = vld [vmem:[%s3 + $0xac] sm:$0xf]
      %v438 = vld [vmem:[%s3 + $0xb0] sm:$0xf]
      %v439 = vld [vmem:[%s3 + $0xb4] sm:$0xf]
      %v440 = vld [vmem:[%s3 + $0xb8] sm:$0xf]
      %v441 = vld [vmem:[%s3 + $0xbc] sm:$0xf]
      %v442 = vld [vmem:[%s3 + $0xc0] sm:$0xf]
      %v443 = vld [vmem:[%s3 + $0xc4] sm:$0xf]
      %v444 = vld [vmem:[%s4] sm:$0x1]
      %v446 = vunpack.c.l.s4 1983009808
      %v447 = vunpack.c.0.s8 %v446
      %v448 = vlaneseq
      %v449 = vshrl.u32 %v448, 7
      %v450 = vsub.s32 %v447, %v449
      %v451 = vrot.slane %v384, %v450
      %v453 = vunpack.c.l.s4 1983009808
      %v454 = vunpack.c.0.s8 %v453
      %v455 = vlaneseq
      %v456 = vshrl.u32 %v455, 7
      %v457 = vsub.s32 %v454, %v456
      %v458 = vrot.slane %v392, %v457
      %v460 = vunpack.c.l.s4 1983009808
      %v461 = vunpack.c.0.s8 %v460
      %v462 = vlaneseq
      %v463 = vshrl.u32 %v462, 7
      %v464 = vsub.s32 %v461, %v463
      %v465 = vrot.slane %v391, %v464
      %v467 = vunpack.c.l.s4 1983009808
      %v468 = vunpack.c.0.s8 %v467
      %v469 = vlaneseq
      %v470 = vshrl.u32 %v469, 7
      %v471 = vsub.s32 %v468, %v470
      %v472 = vrot.slane %v393, %v471
      %v473 = vrot.slane %v451, 7
      %v474 = vrot.slane %v458, 7
      %v475 = vrot.slane %v465, 7
      %v476 = vrot.slane %v472, 7
      %vm477 = vcmask 1040384
      %v480 = vsel %vm477, 0, %v473
      %v482 = vsel %vm477, 0, %v474
      %v484 = vsel %vm477, 0, %v475
      %v486 = vsel %vm477, 0, %v476
      %vm487 = vcmask 1042432
      %v488 = vsel %vm487, %v480, 0
      %v489 = vsel %vm487, %v482, 0
      %v490 = vsel %vm487, %v484, 0
      %v491 = vsel %vm487, %v486, 0
      %v492 = vshrl.u32 0, 16
      %v494 = vshll.u32 0, 16
      %v496 = vrot.slane %v494, 1
      %v497 = vor.u32 %v492, %v496
      %v498 = vshrl.u32 %v488, 16
      %v500 = vshll.u32 %v488, 16
      %v502 = vrot.slane %v500, 1
      %v503 = vor.u32 %v498, %v502
      %v504 = vshrl.u32 %v489, 16
      %v506 = vshll.u32 %v489, 16
      %v508 = vrot.slane %v506, 1
      %v509 = vor.u32 %v504, %v508
      %v510 = vshrl.u32 %v490, 16
      %v512 = vshll.u32 %v490, 16
      %v514 = vrot.slane %v512, 1
      %v515 = vor.u32 %v510, %v514
      %v516 = vshrl.u32 %v491, 16
      %v518 = vshll.u32 %v491, 16
      %v520 = vrot.slane %v518, 1
      %v521 = vor.u32 %v516, %v520
      %522 = vrot.lane.b32.xlu0 %v497, 16
      %v523 = vpop.permute.xlu0 %522
      %524 = vrot.lane.b32.xlu0 %v503, 16
      %v525 = vpop.permute.xlu0 %524
      %526 = vrot.lane.b32.xlu0 %v509, 16
      %v527 = vpop.permute.xlu0 %526
      %528 = vrot.lane.b32.xlu0 %v515, 16
      %v529 = vpop.permute.xlu0 %528
      %530 = vrot.lane.b32.xlu0 %v521, 16
      %v531 = vpop.permute.xlu0 %530
      %v537 = vrot.slane 0, 1
      %v538 = vrot.slane %v488, 1
      %v539 = vrot.slane %v489, 1
      %v540 = vrot.slane %v490, 1
      %v541 = vrot.slane %v491, 1
      %542 = vrot.lane.b32.xlu0 %v537, 32
      %v543 = vpop.permute.xlu0 %542
      %544 = vrot.lane.b32.xlu0 %v538, 32
      %v545 = vpop.permute.xlu0 %544
      %546 = vrot.lane.b32.xlu0 %v539, 32
      %v547 = vpop.permute.xlu0 %546
      %548 = vrot.lane.b32.xlu0 %v540, 32
      %v549 = vpop.permute.xlu0 %548
      %550 = vrot.lane.b32.xlu0 %v541, 32
      %v551 = vpop.permute.xlu0 %550
      %v552 = vrot.slane %v492, 1
      %v553 = vrot.slane %v494, 2
      %v554 = vor.u32 %v552, %v553
      %v555 = vrot.slane %v498, 1
      %v556 = vrot.slane %v500, 2
      %v557 = vor.u32 %v555, %v556
      %v558 = vrot.slane %v504, 1
      %v559 = vrot.slane %v506, 2
      %v560 = vor.u32 %v558, %v559
      %v561 = vrot.slane %v510, 1
      %v562 = vrot.slane %v512, 2
      %v563 = vor.u32 %v561, %v562
      %v564 = vrot.slane %v516, 1
      %v565 = vrot.slane %v518, 2
      %v566 = vor.u32 %v564, %v565
      %567 = vrot.lane.b32.xlu0 %v554, 48
      %v568 = vpop.permute.xlu0 %567
      %569 = vrot.lane.b32.xlu0 %v557, 48
      %v570 = vpop.permute.xlu0 %569
      %571 = vrot.lane.b32.xlu0 %v560, 48
      %v572 = vpop.permute.xlu0 %571
      %573 = vrot.lane.b32.xlu0 %v563, 48
      %v574 = vpop.permute.xlu0 %573
      %575 = vrot.lane.b32.xlu0 %v566, 48
      %v576 = vpop.permute.xlu0 %575
      %v577 = vrot.slane 0, 2
      %v578 = vrot.slane %v488, 2
      %v579 = vrot.slane %v489, 2
      %v580 = vrot.slane %v490, 2
      %v581 = vrot.slane %v491, 2
      %582 = vrot.lane.b32.xlu0 %v577, 64
      %v583 = vpop.permute.xlu0 %582
      %584 = vrot.lane.b32.xlu0 %v578, 64
      %v585 = vpop.permute.xlu0 %584
      %586 = vrot.lane.b32.xlu0 %v579, 64
      %v587 = vpop.permute.xlu0 %586
      %588 = vrot.lane.b32.xlu0 %v580, 64
      %v589 = vpop.permute.xlu0 %588
      %590 = vrot.lane.b32.xlu0 %v581, 64
      %v591 = vpop.permute.xlu0 %590
      %vm592 = vcmask 130048
      %v594 = vsel %vm592, 0, %v523
      %v596 = vsel %vm592, %v488, %v525
      %v598 = vsel %vm592, %v489, %v527
      %v600 = vsel %vm592, %v490, %v529
      %v602 = vsel %vm592, %v491, %v531
      %v604 = vsel %vm328, %v594, %v543
      %v606 = vsel %vm328, %v596, %v545
      %v608 = vsel %vm328, %v598, %v547
      %v610 = vsel %vm328, %v600, %v549
      %v612 = vsel %vm328, %v602, %v551
      %vm613 = vcmask 392192
      %v615 = vsel %vm613, %v604, %v568
      %v617 = vsel %vm613, %v606, %v570
      %v619 = vsel %vm613, %v608, %v572
      %v621 = vsel %vm613, %v610, %v574
      %v623 = vsel %vm613, %v612, %v576
      %vm624 = vcmask 523264
      %v626 = vsel %vm624, %v615, %v583
      %v628 = vsel %vm624, %v617, %v585
      %v630 = vsel %vm624, %v619, %v587
      %v632 = vsel %vm624, %v621, %v589
      %v634 = vsel %vm624, %v623, %v591
      %v639 = vcombine.low %v626, %v628
      %v640 = vcombine.low %v630, %v632
      %v642 = vunpack.c.l.s4 1983009808
      %v643 = vunpack.c.0.s8 %v642
      %v644 = vlaneseq
      %v645 = vshrl.u32 %v644, 7
      %v646 = vsub.s32 %v643, %v645
      %v647 = vrot.slane %v639, %v646
      %v649 = vunpack.c.l.s4 1983009808
      %v650 = vunpack.c.0.s8 %v649
      %v651 = vlaneseq
      %v652 = vshrl.u32 %v651, 7
      %v653 = vsub.s32 %v650, %v652
      %v654 = vrot.slane %v640, %v653
      %v655 = vcombine.low %v647, %v654
      %v666 = vunpack.c.l.b16 %v404
      %v667 = vunpack.c.l.b16 %v405
      %v668 = vunpack.c.l.b16 %v406
      %v669 = vunpack.c.l.b16 %v407
      %v670 = vunpack.c.l.b16 %v408
      %v671 = vunpack.c.l.b16 %v409
      %v672 = vunpack.c.l.b16 %v410
      %v673 = vunpack.c.l.b16 %v411
      %v674 = vunpack.c.l.b16 %v412
      %v675 = vunpack.c.l.b16 %v413
      %v676 = vpack.c.b16 %v667, %v666
      %v677 = vpack.c.b16 %v669, %v668
      %v678 = vpack.c.b16 %v671, %v670
      %v679 = vpack.c.b16 %v673, %v672
      %v680 = vpack.c.b16 %v675, %v674
      %vm686 = vcmask 654336
      %v688 = vsel %vm686, %v655, 0
      %690 = vmatprep.subr.bf16.mxu0 0
      %691 = vmatpush1.bf16.msra.mxu0 0
      %692 = vmatprep.subr.bf16.mxu0 0
      %693 = vmatpush1.bf16.msra.mxu0 0
      %694 = vmatprep.subr.bf16.mxu0 0
      %695 = vmatpush1.bf16.msra.mxu0 0
      %696 = vmatprep.subr.bf16.mxu0 0
      %697 = vmatpush1.bf16.msra.mxu0 %v680
      %698 = vmatprep.subr.bf16.mxu0 0
      %699 = vmatpush1.bf16.msra.mxu0 %v679
      %700 = vmatprep.subr.bf16.mxu0 0
      %701 = vmatpush1.bf16.msra.mxu0 %v678
      %702 = vmatprep.subr.bf16.mxu0 0
      %703 = vmatpush1.bf16.msra.mxu0 %v677
      %704 = vmatprep.subr.bf16.mxu0 0
      %705 = vmatpush1.bf16.msra.mxu0 %v676
      %706 = vmatprep.subr.bf16.mxu0 0
      %707 = vmatpush2.bf16.msra.mxu0 0
      %708 = vmatprep.subr.bf16.mxu0 0
      %709 = vmatpush2.bf16.msra.mxu0 0
      %710 = vmatprep.subr.bf16.mxu0 0
      %711 = vmatpush2.bf16.msra.mxu0 0
      %712 = vmatprep.subr.bf16.mxu0 0
      %713 = vmatpush2.bf16.msra.mxu0 0
      %714 = vmatprep.subr.bf16.mxu0 0
      %715 = vmatpush2.bf16.msra.mxu0 0
      %716 = vmatprep.subr.bf16.mxu0 0
      %717 = vmatpush2.bf16.msra.mxu0 0
      %718 = vmatprep.subr.bf16.mxu0 0
      %719 = vmatpush2.bf16.msra.mxu0 0
      %720 = vmatprep.subr.bf16.mxu0 0
      %721 = vmatpush2.bf16.msra.mxu0 0
      %722 = vmatprep.mubr.bf16.mxu0 0
      %723 = vmatmul.mubr.bf16.gmra.mxu0 %v688
      %v724 = vpop.f32.mrf.mxu0
      %v725 = vadd.f32 0.0, %v724
      %v726 = vpop.f32.mrf.mxu0
      %v727 = vpop.f32.mrf.mxu0
      %v728 = vadd.f32 0.0, %v727
      %v729 = vpop.f32.mrf.mxu0
      %730 = vdwg.mxu0
      %v731 = vcombine.low %v626, %v626
      %v732 = vcombine.low %v628, %v630
      %v734 = vunpack.c.l.s4 1983009808
      %v735 = vunpack.c.0.s8 %v734
      %v736 = vlaneseq
      %v737 = vshrl.u32 %v736, 7
      %v738 = vsub.s32 %v735, %v737
      %v739 = vrot.slane %v731, %v738
      %v741 = vunpack.c.l.s4 1983009808
      %v742 = vunpack.c.0.s8 %v741
      %v743 = vlaneseq
      %v744 = vshrl.u32 %v743, 7
      %v745 = vsub.s32 %v742, %v744
      %v746 = vrot.slane %v732, %v745
      %v747 = vcombine.low %v739, %v746
      %v758 = vunpack.c.l.b16 %v394
      %v759 = vunpack.c.l.b16 %v395
      %v760 = vunpack.c.l.b16 %v396
      %v761 = vunpack.c.l.b16 %v397
      %v762 = vunpack.c.l.b16 %v398
      %v763 = vunpack.c.l.b16 %v399
      %v764 = vunpack.c.l.b16 %v400
      %v765 = vunpack.c.l.b16 %v401
      %v766 = vunpack.c.l.b16 %v402
      %v767 = vunpack.c.l.b16 %v403
      %v768 = vpack.c.b16 %v759, %v758
      %v769 = vpack.c.b16 %v761, %v760
      %v770 = vpack.c.b16 %v763, %v762
      %v771 = vpack.c.b16 %v765, %v764
      %v772 = vpack.c.b16 %v767, %v766
      %v779 = vsel %vm686, %v747, 0
      %781 = vmatprep.subr.bf16.mxu0 0
      %782 = vmatpush1.bf16.msra.mxu0 0
      %783 = vmatprep.subr.bf16.mxu0 0
      %784 = vmatpush1.bf16.msra.mxu0 0
      %785 = vmatprep.subr.bf16.mxu0 0
      %786 = vmatpush1.bf16.msra.mxu0 0
      %787 = vmatprep.subr.bf16.mxu0 0
      %788 = vmatpush1.bf16.msra.mxu0 %v772
      %789 = vmatprep.subr.bf16.mxu0 0
      %790 = vmatpush1.bf16.msra.mxu0 %v771
      %791 = vmatprep.subr.bf16.mxu0 0
      %792 = vmatpush1.bf16.msra.mxu0 %v770
      %793 = vmatprep.subr.bf16.mxu0 0
      %794 = vmatpush1.bf16.msra.mxu0 %v769
      %795 = vmatprep.subr.bf16.mxu0 0
      %796 = vmatpush1.bf16.msra.mxu0 %v768
      %797 = vmatprep.subr.bf16.mxu0 0
      %798 = vmatpush2.bf16.msra.mxu0 0
      %799 = vmatprep.subr.bf16.mxu0 0
      %800 = vmatpush2.bf16.msra.mxu0 0
      %801 = vmatprep.subr.bf16.mxu0 0
      %802 = vmatpush2.bf16.msra.mxu0 0
      %803 = vmatprep.subr.bf16.mxu0 0
      %804 = vmatpush2.bf16.msra.mxu0 0
      %805 = vmatprep.subr.bf16.mxu0 0
      %806 = vmatpush2.bf16.msra.mxu0 0
      %807 = vmatprep.subr.bf16.mxu0 0
      %808 = vmatpush2.bf16.msra.mxu0 0
      %809 = vmatprep.subr.bf16.mxu0 0
      %810 = vmatpush2.bf16.msra.mxu0 0
      %811 = vmatprep.subr.bf16.mxu0 0
      %812 = vmatpush2.bf16.msra.mxu0 0
      %813 = vmatprep.mubr.bf16.mxu0 0
      %814 = vmatmul.mubr.bf16.gmra.mxu0 %v779
      %v815 = vpop.f32.mrf.mxu0
      %v816 = vadd.f32 %v725, %v815
      %v817 = vpop.f32.mrf.mxu0
      %v818 = vpop.f32.mrf.mxu0
      %v819 = vadd.f32 %v728, %v818
      %v820 = vpop.f32.mrf.mxu0
      %821 = vdwg.mxu0
      %v823 = vcombine.low %v632, %v634
      %v825 = vunpack.c.l.s4 1983009808
      %v826 = vunpack.c.0.s8 %v825
      %v827 = vlaneseq
      %v828 = vshrl.u32 %v827, 7
      %v829 = vsub.s32 %v826, %v828
      %v830 = vrot.slane %v823, %v829
      %v831 = vcombine.low %v746, %v830
      %v842 = vunpack.c.l.b16 %v414
      %v843 = vunpack.c.l.b16 %v415
      %v844 = vunpack.c.l.b16 %v416
      %v845 = vunpack.c.l.b16 %v417
      %v846 = vunpack.c.l.b16 %v418
      %v847 = vunpack.c.l.b16 %v419
      %v848 = vunpack.c.l.b16 %v420
      %v849 = vunpack.c.l.b16 %v421
      %v850 = vunpack.c.l.b16 %v422
      %v851 = vunpack.c.l.b16 %v423
      %v852 = vpack.c.b16 %v843, %v842
      %v853 = vpack.c.b16 %v845, %v844
      %v854 = vpack.c.b16 %v847, %v846
      %v855 = vpack.c.b16 %v849, %v848
      %v856 = vpack.c.b16 %v851, %v850
      %v863 = vsel %vm686, %v831, 0
      %865 = vmatprep.subr.bf16.mxu0 0
      %866 = vmatpush1.bf16.msra.mxu0 0
      %867 = vmatprep.subr.bf16.mxu0 0
      %868 = vmatpush1.bf16.msra.mxu0 0
      %869 = vmatprep.subr.bf16.mxu0 0
      %870 = vmatpush1.bf16.msra.mxu0 0
      %871 = vmatprep.subr.bf16.mxu0 0
      %872 = vmatpush1.bf16.msra.mxu0 %v856
      %873 = vmatprep.subr.bf16.mxu0 0
      %874 = vmatpush1.bf16.msra.mxu0 %v855
      %875 = vmatprep.subr.bf16.mxu0 0
      %876 = vmatpush1.bf16.msra.mxu0 %v854
      %877 = vmatprep.subr.bf16.mxu0 0
      %878 = vmatpush1.bf16.msra.mxu0 %v853
      %879 = vmatprep.subr.bf16.mxu0 0
      %880 = vmatpush1.bf16.msra.mxu0 %v852
      %881 = vmatprep.subr.bf16.mxu0 0
      %882 = vmatpush2.bf16.msra.mxu0 0
      %883 = vmatprep.subr.bf16.mxu0 0
      %884 = vmatpush2.bf16.msra.mxu0 0
      %885 = vmatprep.subr.bf16.mxu0 0
      %886 = vmatpush2.bf16.msra.mxu0 0
      %887 = vmatprep.subr.bf16.mxu0 0
      %888 = vmatpush2.bf16.msra.mxu0 0
      %889 = vmatprep.subr.bf16.mxu0 0
      %890 = vmatpush2.bf16.msra.mxu0 0
      %891 = vmatprep.subr.bf16.mxu0 0
      %892 = vmatpush2.bf16.msra.mxu0 0
      %893 = vmatprep.subr.bf16.mxu0 0
      %894 = vmatpush2.bf16.msra.mxu0 0
      %895 = vmatprep.subr.bf16.mxu0 0
      %896 = vmatpush2.bf16.msra.mxu0 0
      %897 = vmatprep.mubr.bf16.mxu0 0
      %898 = vmatmul.mubr.bf16.gmra.mxu0 %v863
      %v899 = vpop.f32.mrf.mxu0
      %v900 = vadd.f32 0.0, %v899
      %v901 = vpop.f32.mrf.mxu0
      %v902 = vpop.f32.mrf.mxu0
      %v903 = vadd.f32 0.0, %v902
      %v904 = vpop.f32.mrf.mxu0
      %905 = vdwg.mxu0
      %v906 = vadd.f32 %v816, %v900
      %v907 = vadd.f32 %v819, %v903
      %v908 = vcombine.low %v634, %v626
      %v910 = vunpack.c.l.s4 1983009808
      %v911 = vunpack.c.0.s8 %v910
      %v912 = vlaneseq
      %v913 = vshrl.u32 %v912, 7
      %v914 = vsub.s32 %v911, %v913
      %v915 = vrot.slane %v908, %v914
      %v916 = vcombine.low %v654, %v915
      %v927 = vunpack.c.l.b16 %v424
      %v928 = vunpack.c.l.b16 %v425
      %v929 = vunpack.c.l.b16 %v426
      %v930 = vunpack.c.l.b16 %v427
      %v931 = vunpack.c.l.b16 %v428
      %v932 = vunpack.c.l.b16 %v429
      %v933 = vunpack.c.l.b16 %v430
      %v934 = vunpack.c.l.b16 %v431
      %v935 = vunpack.c.l.b16 %v432
      %v936 = vunpack.c.l.b16 %v433
      %v937 = vpack.c.b16 %v928, %v927
      %v938 = vpack.c.b16 %v930, %v929
      %v939 = vpack.c.b16 %v932, %v931
      %v940 = vpack.c.b16 %v934, %v933
      %v941 = vpack.c.b16 %v936, %v935
      %v948 = vsel %vm686, %v916, 0
      %950 = vmatprep.subr.bf16.mxu0 0
      %951 = vmatpush1.bf16.msra.mxu0 0
      %952 = vmatprep.subr.bf16.mxu0 0
      %953 = vmatpush1.bf16.msra.mxu0 0
      %954 = vmatprep.subr.bf16.mxu0 0
      %955 = vmatpush1.bf16.msra.mxu0 0
      %956 = vmatprep.subr.bf16.mxu0 0
      %957 = vmatpush1.bf16.msra.mxu0 %v941
      %958 = vmatprep.subr.bf16.mxu0 0
      %959 = vmatpush1.bf16.msra.mxu0 %v940
      %960 = vmatprep.subr.bf16.mxu0 0
      %961 = vmatpush1.bf16.msra.mxu0 %v939
      %962 = vmatprep.subr.bf16.mxu0 0
      %963 = vmatpush1.bf16.msra.mxu0 %v938
      %964 = vmatprep.subr.bf16.mxu0 0
      %965 = vmatpush1.bf16.msra.mxu0 %v937
      %966 = vmatprep.subr.bf16.mxu0 0
      %967 = vmatpush2.bf16.msra.mxu0 0
      %968 = vmatprep.subr.bf16.mxu0 0
      %969 = vmatpush2.bf16.msra.mxu0 0
      %970 = vmatprep.subr.bf16.mxu0 0
      %971 = vmatpush2.bf16.msra.mxu0 0
      %972 = vmatprep.subr.bf16.mxu0 0
      %973 = vmatpush2.bf16.msra.mxu0 0
      %974 = vmatprep.subr.bf16.mxu0 0
      %975 = vmatpush2.bf16.msra.mxu0 0
      %976 = vmatprep.subr.bf16.mxu0 0
      %977 = vmatpush2.bf16.msra.mxu0 0
      %978 = vmatprep.subr.bf16.mxu0 0
      %979 = vmatpush2.bf16.msra.mxu0 0
      %980 = vmatprep.subr.bf16.mxu0 0
      %981 = vmatpush2.bf16.msra.mxu0 0
      %982 = vmatprep.mubr.bf16.mxu0 0
      %983 = vmatmul.mubr.bf16.gmra.mxu0 %v948
      %v984 = vpop.f32.mrf.mxu0
      %v985 = vadd.f32 0.0, %v984
      %v986 = vpop.f32.mrf.mxu0
      %v987 = vpop.f32.mrf.mxu0
      %v988 = vadd.f32 0.0, %v987
      %v989 = vpop.f32.mrf.mxu0
      %990 = vdwg.mxu0
      %v991 = vadd.f32 %v906, %v985
      %v992 = vadd.f32 %v907, %v988
      %v993 = vcombine.low %v830, %v739
      %v1004 = vunpack.c.l.b16 %v434
      %v1005 = vunpack.c.l.b16 %v435
      %v1006 = vunpack.c.l.b16 %v436
      %v1007 = vunpack.c.l.b16 %v437
      %v1008 = vunpack.c.l.b16 %v438
      %v1009 = vunpack.c.l.b16 %v439
      %v1010 = vunpack.c.l.b16 %v440
      %v1011 = vunpack.c.l.b16 %v441
      %v1012 = vunpack.c.l.b16 %v442
      %v1013 = vunpack.c.l.b16 %v443
      %v1014 = vpack.c.b16 %v1005, %v1004
      %v1015 = vpack.c.b16 %v1007, %v1006
      %v1016 = vpack.c.b16 %v1009, %v1008
      %v1017 = vpack.c.b16 %v1011, %v1010
      %v1018 = vpack.c.b16 %v1013, %v1012
      %v1025 = vsel %vm686, %v993, 0
      %1027 = vmatprep.subr.bf16.mxu0 0
      %1028 = vmatpush1.bf16.msra.mxu0 0
      %1029 = vmatprep.subr.bf16.mxu0 0
      %1030 = vmatpush1.bf16.msra.mxu0 0
      %1031 = vmatprep.subr.bf16.mxu0 0
      %1032 = vmatpush1.bf16.msra.mxu0 0
      %1033 = vmatprep.subr.bf16.mxu0 0
      %1034 = vmatpush1.bf16.msra.mxu0 %v1018
      %1035 = vmatprep.subr.bf16.mxu0 0
      %1036 = vmatpush1.bf16.msra.mxu0 %v1017
      %1037 = vmatprep.subr.bf16.mxu0 0
      %1038 = vmatpush1.bf16.msra.mxu0 %v1016
      %1039 = vmatprep.subr.bf16.mxu0 0
      %1040 = vmatpush1.bf16.msra.mxu0 %v1015
      %1041 = vmatprep.subr.bf16.mxu0 0
      %1042 = vmatpush1.bf16.msra.mxu0 %v1014
      %1043 = vmatprep.subr.bf16.mxu0 0
      %1044 = vmatpush2.bf16.msra.mxu0 0
      %1045 = vmatprep.subr.bf16.mxu0 0
      %1046 = vmatpush2.bf16.msra.mxu0 0
      %1047 = vmatprep.subr.bf16.mxu0 0
      %1048 = vmatpush2.bf16.msra.mxu0 0
      %1049 = vmatprep.subr.bf16.mxu0 0
      %1050 = vmatpush2.bf16.msra.mxu0 0
      %1051 = vmatprep.subr.bf16.mxu0 0
      %1052 = vmatpush2.bf16.msra.mxu0 0
      %1053 = vmatprep.subr.bf16.mxu0 0
      %1054 = vmatpush2.bf16.msra.mxu0 0
      %1055 = vmatprep.subr.bf16.mxu0 0
      %1056 = vmatpush2.bf16.msra.mxu0 0
      %1057 = vmatprep.subr.bf16.mxu0 0
      %1058 = vmatpush2.bf16.msra.mxu0 0
      %1059 = vmatprep.mubr.bf16.mxu0 0
      %1060 = vmatmul.mubr.bf16.gmra.mxu0 %v1025
      %v1061 = vpop.f32.mrf.mxu0
      %v1062 = vadd.f32 0.0, %v1061
      %v1063 = vpop.f32.mrf.mxu0
      %v1064 = vpop.f32.mrf.mxu0
      %v1065 = vadd.f32 0.0, %v1064
      %v1066 = vpop.f32.mrf.mxu0
      %1067 = vdwg.mxu0
      %v1068 = vadd.f32 %v991, %v1062
      %v1069 = vadd.f32 %v992, %v1065
      %v1071 = vlaneseq
      %v1072 = vshrl.u32 %v1071, 7
      %v1073 = vsub.s32 0, %v1072
      %v1074 = vrot.slane %v444, %v1073
      %v1076 = vadd.f32 %v1068, %v1074
      %v1077 = vadd.f32 %v1069, %v1074
      %v1078 = vmax.f32 %v1076, 0.0
      %v1079 = vmax.f32 %v1077, 0.0
      %v1082 = vcombine.high %v1078, %v1078
      %v1083 = vcombine.high %v1079, %v1079
      %v1085 = vunpack.c.l.s4 1983009808
      %v1086 = vunpack.c.0.s8 %v1085
      %v1087 = vlaneseq
      %v1088 = vshrl.u32 %v1087, 7
      %v1089 = vsub.s32 %v1086, %v1088
      %v1090 = vrot.slane %v1078, %v1089
      %v1091 = vcombine.high %v1090, 0.0
      %v1093 = vunpack.c.l.s4 1934713408
      %v1094 = vunpack.c.0.s8 %v1093
      %v1095 = vlaneseq
      %v1096 = vshrl.u32 %v1095, 7
      %v1097 = vsub.s32 %v1094, %v1096
      %v1098 = vrot.slane %v1090, %v1097
      %v1100 = vunpack.c.l.s4 1934713408
      %v1101 = vunpack.c.0.s8 %v1100
      %v1102 = vlaneseq
      %v1103 = vshrl.u32 %v1102, 7
      %v1104 = vsub.s32 %v1101, %v1103
      %v1105 = vrot.slane %v1091, %v1104
      %v1106 = vcombine.high %v1098, 0.0
      %v1107 = vcombine.high %v1105, 0.0
      %v1110 = vunpack.c.l.s4 1983009808
      %v1111 = vunpack.c.0.s8 %v1110
      %v1112 = vlaneseq
      %v1113 = vshrl.u32 %v1112, 7
      %v1114 = vsub.s32 %v1111, %v1113
      %v1115 = vrot.slane %v1082, %v1114
      %v1116 = vcombine.high %v1115, 0.0
      %v1118 = vunpack.c.l.s4 1934713408
      %v1119 = vunpack.c.0.s8 %v1118
      %v1120 = vlaneseq
      %v1121 = vshrl.u32 %v1120, 7
      %v1122 = vsub.s32 %v1119, %v1121
      %v1123 = vrot.slane %v1115, %v1122
      %v1125 = vunpack.c.l.s4 1934713408
      %v1126 = vunpack.c.0.s8 %v1125
      %v1127 = vlaneseq
      %v1128 = vshrl.u32 %v1127, 7
      %v1129 = vsub.s32 %v1126, %v1128
      %v1130 = vrot.slane %v1116, %v1129
      %v1131 = vcombine.high %v1123, 0.0
      %v1132 = vcombine.high %v1130, 0.0
      %v1134 = vunpack.c.l.s4 1983009808
      %v1135 = vunpack.c.0.s8 %v1134
      %v1136 = vlaneseq
      %v1137 = vshrl.u32 %v1136, 7
      %v1138 = vsub.s32 %v1135, %v1137
      %v1139 = vrot.slane %v1079, %v1138
      %v1140 = vcombine.high %v1139, 0.0
      %v1142 = vunpack.c.l.s4 1934713408
      %v1143 = vunpack.c.0.s8 %v1142
      %v1144 = vlaneseq
      %v1145 = vshrl.u32 %v1144, 7
      %v1146 = vsub.s32 %v1143, %v1145
      %v1147 = vrot.slane %v1139, %v1146
      %v1149 = vunpack.c.l.s4 1934713408
      %v1150 = vunpack.c.0.s8 %v1149
      %v1151 = vlaneseq
      %v1152 = vshrl.u32 %v1151, 7
      %v1153 = vsub.s32 %v1150, %v1152
      %v1154 = vrot.slane %v1140, %v1153
      %v1155 = vcombine.high %v1147, 0.0
      %v1156 = vcombine.high %v1154, 0.0
      %v1159 = vunpack.c.l.s4 1983009808
      %v1160 = vunpack.c.0.s8 %v1159
      %v1161 = vlaneseq
      %v1162 = vshrl.u32 %v1161, 7
      %v1163 = vsub.s32 %v1160, %v1162
      %v1164 = vrot.slane %v1083, %v1163
      %v1165 = vcombine.high %v1164, 0.0
      %v1167 = vunpack.c.l.s4 1934713408
      %v1168 = vunpack.c.0.s8 %v1167
      %v1169 = vlaneseq
      %v1170 = vshrl.u32 %v1169, 7
      %v1171 = vsub.s32 %v1168, %v1170
      %v1172 = vrot.slane %v1164, %v1171
      %v1174 = vunpack.c.l.s4 1934713408
      %v1175 = vunpack.c.0.s8 %v1174
      %v1176 = vlaneseq
      %v1177 = vshrl.u32 %v1176, 7
      %v1178 = vsub.s32 %v1175, %v1177
      %v1179 = vrot.slane %v1165, %v1178
      %v1180 = vcombine.high %v1172, 0.0
      %v1181 = vcombine.high %v1179, 0.0
      %v1186 = vlaneseq
      %v1187 = vshrl.u32 %v1186, 7
      %v1188 = vsub.s32 0, %v1187
      %v1189 = vrot.slane %v1106, %v1188
      %v1190 = vlaneseq
      %v1191 = vshrl.u32 %v1190, 7
      %v1192 = vsub.s32 0, %v1191
      %v1193 = vrot.slane %v1131, %v1192
      %v1194 = vlaneseq
      %v1195 = vshrl.u32 %v1194, 7
      %v1196 = vsub.s32 0, %v1195
      %v1197 = vrot.slane %v1155, %v1196
      %v1198 = vlaneseq
      %v1199 = vshrl.u32 %v1198, 7
      %v1200 = vsub.s32 0, %v1199
      %v1201 = vrot.slane %v1180, %v1200
      %1202 = vrot.lane.b32.xlu0 %v1189, 16
      %v1203 = vpop.permute.xlu0 %1202
      %1204 = vrot.lane.b32.xlu0 %v1193, 16
      %v1205 = vpop.permute.xlu0 %1204
      %1206 = vrot.lane.b32.xlu0 %v1197, 16
      %v1207 = vpop.permute.xlu0 %1206
      %1208 = vrot.lane.b32.xlu0 %v1201, 16
      %v1209 = vpop.permute.xlu0 %1208
      %v1218 = vlaneseq
      %v1219 = vshrl.u32 %v1218, 7
      %v1220 = vsub.s32 0, %v1219
      %v1221 = vrot.slane %v1105, %v1220
      %v1222 = vlaneseq
      %v1223 = vshrl.u32 %v1222, 7
      %v1224 = vsub.s32 0, %v1223
      %v1225 = vrot.slane %v1130, %v1224
      %v1226 = vlaneseq
      %v1227 = vshrl.u32 %v1226, 7
      %v1228 = vsub.s32 0, %v1227
      %v1229 = vrot.slane %v1154, %v1228
      %v1230 = vlaneseq
      %v1231 = vshrl.u32 %v1230, 7
      %v1232 = vsub.s32 0, %v1231
      %v1233 = vrot.slane %v1179, %v1232
      %1234 = vrot.lane.b32.xlu0 %v1221, 32
      %v1235 = vpop.permute.xlu0 %1234
      %1236 = vrot.lane.b32.xlu0 %v1225, 32
      %v1237 = vpop.permute.xlu0 %1236
      %1238 = vrot.lane.b32.xlu0 %v1229, 32
      %v1239 = vpop.permute.xlu0 %1238
      %1240 = vrot.lane.b32.xlu0 %v1233, 32
      %v1241 = vpop.permute.xlu0 %1240
      %v1250 = vlaneseq
      %v1251 = vshrl.u32 %v1250, 7
      %v1252 = vsub.s32 0, %v1251
      %v1253 = vrot.slane %v1107, %v1252
      %v1254 = vlaneseq
      %v1255 = vshrl.u32 %v1254, 7
      %v1256 = vsub.s32 0, %v1255
      %v1257 = vrot.slane %v1132, %v1256
      %v1258 = vlaneseq
      %v1259 = vshrl.u32 %v1258, 7
      %v1260 = vsub.s32 0, %v1259
      %v1261 = vrot.slane %v1156, %v1260
      %v1262 = vlaneseq
      %v1263 = vshrl.u32 %v1262, 7
      %v1264 = vsub.s32 0, %v1263
      %v1265 = vrot.slane %v1181, %v1264
      %1266 = vrot.lane.b32.xlu0 %v1253, 48
      %v1267 = vpop.permute.xlu0 %1266
      %1268 = vrot.lane.b32.xlu0 %v1257, 48
      %v1269 = vpop.permute.xlu0 %1268
      %1270 = vrot.lane.b32.xlu0 %v1261, 48
      %v1271 = vpop.permute.xlu0 %1270
      %1272 = vrot.lane.b32.xlu0 %v1265, 48
      %v1273 = vpop.permute.xlu0 %1272
      %v1278 = vsel %vm592, %v1098, %v1203
      %v1279 = vsel %vm592, %v1123, %v1205
      %v1280 = vsel %vm592, %v1147, %v1207
      %v1281 = vsel %vm592, %v1172, %v1209
      %v1282 = vsel %vm328, %v1278, %v1235
      %v1283 = vsel %vm328, %v1279, %v1237
      %v1284 = vsel %vm328, %v1280, %v1239
      %v1285 = vsel %vm328, %v1281, %v1241
      %v1286 = vsel %vm613, %v1282, %v1267
      %v1287 = vsel %vm613, %v1283, %v1269
      %v1288 = vsel %vm613, %v1284, %v1271
      %v1289 = vsel %vm613, %v1285, %v1273
      %1290 = vrot.lane.b32.xlu0 %v1078, 112
      %v1291 = vpop.permute.xlu0 %1290
      %1292 = vrot.lane.b32.xlu0 %v1082, 112
      %v1293 = vpop.permute.xlu0 %1292
      %1294 = vrot.lane.b32.xlu0 %v1079, 112
      %v1295 = vpop.permute.xlu0 %1294
      %1296 = vrot.lane.b32.xlu0 %v1083, 112
      %v1297 = vpop.permute.xlu0 %1296
      %v1300 = vunpack.c.l.s4 1983009808
      %v1301 = vunpack.c.0.s8 %v1300
      %v1302 = vlaneseq
      %v1303 = vshrl.u32 %v1302, 7
      %v1304 = vsub.s32 %v1301, %v1303
      %v1305 = vrot.slane %v1291, %v1304
      %v1306 = vcombine.high %v1305, 0.0
      %v1308 = vunpack.c.l.s4 1934713408
      %v1309 = vunpack.c.0.s8 %v1308
      %v1310 = vlaneseq
      %v1311 = vshrl.u32 %v1310, 7
      %v1312 = vsub.s32 %v1309, %v1311
      %v1313 = vrot.slane %v1305, %v1312
      %v1315 = vunpack.c.l.s4 1934713408
      %v1316 = vunpack.c.0.s8 %v1315
      %v1317 = vlaneseq
      %v1318 = vshrl.u32 %v1317, 7
      %v1319 = vsub.s32 %v1316, %v1318
      %v1320 = vrot.slane %v1306, %v1319
      %v1321 = vcombine.high %v1313, 0.0
      %v1322 = vcombine.high %v1320, 0.0
      %v1325 = vunpack.c.l.s4 1983009808
      %v1326 = vunpack.c.0.s8 %v1325
      %v1327 = vlaneseq
      %v1328 = vshrl.u32 %v1327, 7
      %v1329 = vsub.s32 %v1326, %v1328
      %v1330 = vrot.slane %v1293, %v1329
      %v1331 = vcombine.high %v1330, 0.0
      %v1333 = vunpack.c.l.s4 1934713408
      %v1334 = vunpack.c.0.s8 %v1333
      %v1335 = vlaneseq
      %v1336 = vshrl.u32 %v1335, 7
      %v1337 = vsub.s32 %v1334, %v1336
      %v1338 = vrot.slane %v1330, %v1337
      %v1340 = vunpack.c.l.s4 1934713408
      %v1341 = vunpack.c.0.s8 %v1340
      %v1342 = vlaneseq
      %v1343 = vshrl.u32 %v1342, 7
      %v1344 = vsub.s32 %v1341, %v1343
      %v1345 = vrot.slane %v1331, %v1344
      %v1346 = vcombine.high %v1338, 0.0
      %v1347 = vcombine.high %v1345, 0.0
      %v1350 = vunpack.c.l.s4 1983009808
      %v1351 = vunpack.c.0.s8 %v1350
      %v1352 = vlaneseq
      %v1353 = vshrl.u32 %v1352, 7
      %v1354 = vsub.s32 %v1351, %v1353
      %v1355 = vrot.slane %v1295, %v1354
      %v1356 = vcombine.high %v1355, 0.0
      %v1358 = vunpack.c.l.s4 1934713408
      %v1359 = vunpack.c.0.s8 %v1358
      %v1360 = vlaneseq
      %v1361 = vshrl.u32 %v1360, 7
      %v1362 = vsub.s32 %v1359, %v1361
      %v1363 = vrot.slane %v1355, %v1362
      %v1365 = vunpack.c.l.s4 1934713408
      %v1366 = vunpack.c.0.s8 %v1365
      %v1367 = vlaneseq
      %v1368 = vshrl.u32 %v1367, 7
      %v1369 = vsub.s32 %v1366, %v1368
      %v1370 = vrot.slane %v1356, %v1369
      %v1371 = vcombine.high %v1363, 0.0
      %v1372 = vcombine.high %v1370, 0.0
      %v1375 = vunpack.c.l.s4 1983009808
      %v1376 = vunpack.c.0.s8 %v1375
      %v1377 = vlaneseq
      %v1378 = vshrl.u32 %v1377, 7
      %v1379 = vsub.s32 %v1376, %v1378
      %v1380 = vrot.slane %v1297, %v1379
      %v1381 = vcombine.high %v1380, 0.0
      %v1383 = vunpack.c.l.s4 1934713408
      %v1384 = vunpack.c.0.s8 %v1383
      %v1385 = vlaneseq
      %v1386 = vshrl.u32 %v1385, 7
      %v1387 = vsub.s32 %v1384, %v1386
      %v1388 = vrot.slane %v1380, %v1387
      %v1390 = vunpack.c.l.s4 1934713408
      %v1391 = vunpack.c.0.s8 %v1390
      %v1392 = vlaneseq
      %v1393 = vshrl.u32 %v1392, 7
      %v1394 = vsub.s32 %v1391, %v1393
      %v1395 = vrot.slane %v1381, %v1394
      %v1396 = vcombine.high %v1388, 0.0
      %v1397 = vcombine.high %v1395, 0.0
      %v1402 = vlaneseq
      %v1403 = vshrl.u32 %v1402, 7
      %v1404 = vsub.s32 0, %v1403
      %v1405 = vrot.slane %v1321, %v1404
      %v1406 = vlaneseq
      %v1407 = vshrl.u32 %v1406, 7
      %v1408 = vsub.s32 0, %v1407
      %v1409 = vrot.slane %v1346, %v1408
      %v1410 = vlaneseq
      %v1411 = vshrl.u32 %v1410, 7
      %v1412 = vsub.s32 0, %v1411
      %v1413 = vrot.slane %v1371, %v1412
      %v1414 = vlaneseq
      %v1415 = vshrl.u32 %v1414, 7
      %v1416 = vsub.s32 0, %v1415
      %v1417 = vrot.slane %v1396, %v1416
      %1418 = vrot.lane.b32.xlu0 %v1405, 16
      %v1419 = vpop.permute.xlu0 %1418
      %1420 = vrot.lane.b32.xlu0 %v1409, 16
      %v1421 = vpop.permute.xlu0 %1420
      %1422 = vrot.lane.b32.xlu0 %v1413, 16
      %v1423 = vpop.permute.xlu0 %1422
      %1424 = vrot.lane.b32.xlu0 %v1417, 16
      %v1425 = vpop.permute.xlu0 %1424
      %v1434 = vlaneseq
      %v1435 = vshrl.u32 %v1434, 7
      %v1436 = vsub.s32 0, %v1435
      %v1437 = vrot.slane %v1320, %v1436
      %v1438 = vlaneseq
      %v1439 = vshrl.u32 %v1438, 7
      %v1440 = vsub.s32 0, %v1439
      %v1441 = vrot.slane %v1345, %v1440
      %v1442 = vlaneseq
      %v1443 = vshrl.u32 %v1442, 7
      %v1444 = vsub.s32 0, %v1443
      %v1445 = vrot.slane %v1370, %v1444
      %v1446 = vlaneseq
      %v1447 = vshrl.u32 %v1446, 7
      %v1448 = vsub.s32 0, %v1447
      %v1449 = vrot.slane %v1395, %v1448
      %1450 = vrot.lane.b32.xlu0 %v1437, 32
      %v1451 = vpop.permute.xlu0 %1450
      %1452 = vrot.lane.b32.xlu0 %v1441, 32
      %v1453 = vpop.permute.xlu0 %1452
      %1454 = vrot.lane.b32.xlu0 %v1445, 32
      %v1455 = vpop.permute.xlu0 %1454
      %1456 = vrot.lane.b32.xlu0 %v1449, 32
      %v1457 = vpop.permute.xlu0 %1456
      %v1466 = vlaneseq
      %v1467 = vshrl.u32 %v1466, 7
      %v1468 = vsub.s32 0, %v1467
      %v1469 = vrot.slane %v1322, %v1468
      %v1470 = vlaneseq
      %v1471 = vshrl.u32 %v1470, 7
      %v1472 = vsub.s32 0, %v1471
      %v1473 = vrot.slane %v1347, %v1472
      %v1474 = vlaneseq
      %v1475 = vshrl.u32 %v1474, 7
      %v1476 = vsub.s32 0, %v1475
      %v1477 = vrot.slane %v1372, %v1476
      %v1478 = vlaneseq
      %v1479 = vshrl.u32 %v1478, 7
      %v1480 = vsub.s32 0, %v1479
      %v1481 = vrot.slane %v1397, %v1480
      %1482 = vrot.lane.b32.xlu0 %v1469, 48
      %v1483 = vpop.permute.xlu0 %1482
      %1484 = vrot.lane.b32.xlu0 %v1473, 48
      %v1485 = vpop.permute.xlu0 %1484
      %1486 = vrot.lane.b32.xlu0 %v1477, 48
      %v1487 = vpop.permute.xlu0 %1486
      %1488 = vrot.lane.b32.xlu0 %v1481, 48
      %v1489 = vpop.permute.xlu0 %1488
      %v1494 = vsel %vm592, %v1313, %v1419
      %v1495 = vsel %vm592, %v1338, %v1421
      %v1496 = vsel %vm592, %v1363, %v1423
      %v1497 = vsel %vm592, %v1388, %v1425
      %v1498 = vsel %vm328, %v1494, %v1451
      %v1499 = vsel %vm328, %v1495, %v1453
      %v1500 = vsel %vm328, %v1496, %v1455
      %v1501 = vsel %vm328, %v1497, %v1457
      %v1502 = vsel %vm613, %v1498, %v1483
      %v1503 = vsel %vm613, %v1499, %v1485
      %v1504 = vsel %vm613, %v1500, %v1487
      %v1505 = vsel %vm613, %v1501, %v1489
      %v1510 = vrot.slane %v1502, 7
      %v1511 = vrot.slane %v1503, 7
      %v1512 = vrot.slane %v1504, 7
      %v1513 = vrot.slane %v1505, 7
      %v1518 = vsel %vm477, %v1286, %v1510
      %v1519 = vsel %vm477, %v1287, %v1511
      %v1520 = vsel %vm477, %v1288, %v1512
      %v1521 = vsel %vm477, %v1289, %v1513
      %v1526 = vcombine.low %v1518, %v1519
      %v1527 = vcombine.low %v1520, %v1521
      %v1529 = vunpack.c.l.s4 1983009808
      %v1530 = vunpack.c.0.s8 %v1529
      %v1531 = vlaneseq
      %v1532 = vshrl.u32 %v1531, 7
      %v1533 = vsub.s32 %v1530, %v1532
      %v1534 = vrot.slane %v1526, %v1533
      %v1536 = vunpack.c.l.s4 1983009808
      %v1537 = vunpack.c.0.s8 %v1536
      %v1538 = vlaneseq
      %v1539 = vshrl.u32 %v1538, 7
      %v1540 = vsub.s32 %v1537, %v1539
      %v1541 = vrot.slane %v1527, %v1540
      %v1542 = vcombine.low %v1534, %v1541
      %v1544 = vpack.c.bf16 %v1542, %v1542
      %1546 = vrot.lane.b32.xlu0 %v1544, 120
      %v1547 = vpop.permute.xlu0 %1546
      %1549 = vrot.lane.b32.xlu0 %v1544, 112
      %v1550 = vpop.permute.xlu0 %1549
      %1552 = vrot.lane.b32.xlu0 %v1544, 104
      %v1553 = vpop.permute.xlu0 %1552
      %1555 = vrot.lane.b32.xlu0 %v1544, 96
      %v1556 = vpop.permute.xlu0 %1555
      %1558 = vrot.lane.b32.xlu0 %v1544, 88
      %v1559 = vpop.permute.xlu0 %1558
      %1561 = vrot.lane.b32.xlu0 %v1544, 80
      %v1562 = vpop.permute.xlu0 %1561
      %1564 = vrot.lane.b32.xlu0 %v1544, 72
      %v1565 = vpop.permute.xlu0 %1564
      %v1567 = vcombine.low %v1544, %v1556
      %v1569 = vunpack.c.l.s4 1983009808
      %v1570 = vunpack.c.0.s8 %v1569
      %v1571 = vlaneseq
      %v1572 = vshrl.u32 %v1571, 7
      %v1573 = vsub.s32 %v1570, %v1572
      %v1574 = vrot.slane %v1567, %v1573
      %v1575 = vcombine.low %v1550, %v1562
      %v1577 = vunpack.c.l.s4 1983009808
      %v1578 = vunpack.c.0.s8 %v1577
      %v1579 = vlaneseq
      %v1580 = vshrl.u32 %v1579, 7
      %v1581 = vsub.s32 %v1578, %v1580
      %v1582 = vrot.slane %v1575, %v1581
      %v1583 = vcombine.low %v1574, %v1582
      %v1584 = vcombine.high %v1574, %v1582
      %v1586 = vunpack.c.l.s4 1934713408
      %v1587 = vunpack.c.0.s8 %v1586
      %v1588 = vlaneseq
      %v1589 = vshrl.u32 %v1588, 7
      %v1590 = vsub.s32 %v1587, %v1589
      %v1591 = vrot.slane %v1583, %v1590
      %v1593 = vunpack.c.l.s4 1934713408
      %v1594 = vunpack.c.0.s8 %v1593
      %v1595 = vlaneseq
      %v1596 = vshrl.u32 %v1595, 7
      %v1597 = vsub.s32 %v1594, %v1596
      %v1598 = vrot.slane %v1584, %v1597
      %v1599 = vcombine.high %v1591, 0
      %v1600 = vcombine.high %v1598, 0
      %v1601 = vcombine.low %v1547, %v1559
      %v1603 = vunpack.c.l.s4 1983009808
      %v1604 = vunpack.c.0.s8 %v1603
      %v1605 = vlaneseq
      %v1606 = vshrl.u32 %v1605, 7
      %v1607 = vsub.s32 %v1604, %v1606
      %v1608 = vrot.slane %v1601, %v1607
      %v1609 = vcombine.low %v1553, %v1565
      %v1611 = vunpack.c.l.s4 1983009808
      %v1612 = vunpack.c.0.s8 %v1611
      %v1613 = vlaneseq
      %v1614 = vshrl.u32 %v1613, 7
      %v1615 = vsub.s32 %v1612, %v1614
      %v1616 = vrot.slane %v1609, %v1615
      %v1617 = vcombine.low %v1608, %v1616
      %v1618 = vcombine.high %v1608, %v1616
      %v1620 = vunpack.c.l.s4 1934713408
      %v1621 = vunpack.c.0.s8 %v1620
      %v1622 = vlaneseq
      %v1623 = vshrl.u32 %v1622, 7
      %v1624 = vsub.s32 %v1621, %v1623
      %v1625 = vrot.slane %v1617, %v1624
      %v1627 = vunpack.c.l.s4 1934713408
      %v1628 = vunpack.c.0.s8 %v1627
      %v1629 = vlaneseq
      %v1630 = vshrl.u32 %v1629, 7
      %v1631 = vsub.s32 %v1628, %v1630
      %v1632 = vrot.slane %v1618, %v1631
      %v1633 = vcombine.high %v1625, 0
      %v1634 = vcombine.high %v1632, 0
      %v1637 = vpack.i.b16 %v1625, %v1591
      %v1638 = vshrl.u32 %v1591, 16
      %v1639 = vshrl.u32 %v1625, 16
      %v1640 = vpack.i.b16 %v1639, %v1638
      %v1643 = vpack.i.b16 %v1633, %v1599
      %v1644 = vshrl.u32 %v1599, 16
      %v1645 = vshrl.u32 %v1633, 16
      %v1646 = vpack.i.b16 %v1645, %v1644
      %v1649 = vpack.i.b16 %v1632, %v1598
      %v1650 = vshrl.u32 %v1598, 16
      %v1651 = vshrl.u32 %v1632, 16
      %v1652 = vpack.i.b16 %v1651, %v1650
      %v1655 = vpack.i.b16 %v1634, %v1600
      %v1656 = vshrl.u32 %v1600, 16
      %v1657 = vshrl.u32 %v1634, 16
      %v1658 = vpack.i.b16 %v1657, %v1656
      %v1659 = vld [vmem:[%s5] sm:$0xf]
      %v1660 = vld [vmem:[%s5 + $0x4] sm:$0xf]
      %v1661 = vld [vmem:[%s5 + $0x8] sm:$0xf]
      %v1662 = vld [vmem:[%s5 + $0xc] sm:$0xf]
      %v1663 = vld [vmem:[%s5 + $0x10] sm:$0xf]
      %v1664 = vld [vmem:[%s5 + $0x14] sm:$0xf]
      %v1665 = vld [vmem:[%s5 + $0x18] sm:$0xf]
      %v1666 = vld [vmem:[%s5 + $0x1c] sm:$0xf]
      %v1667 = vld [vmem:[%s5 + $0x20] sm:$0xf]
      %v1668 = vld [vmem:[%s5 + $0x24] sm:$0xf]
      %v1669 = vld [vmem:[%s5 + $0x28] sm:$0xf]
      %v1670 = vld [vmem:[%s5 + $0x2c] sm:$0xf]
      %v1671 = vld [vmem:[%s5 + $0x30] sm:$0xf]
      %v1672 = vld [vmem:[%s5 + $0x34] sm:$0xf]
      %v1673 = vld [vmem:[%s5 + $0x38] sm:$0xf]
      %v1674 = vld [vmem:[%s5 + $0x3c] sm:$0xf]
      %v1675 = vld [vmem:[%s5 + $0x40] sm:$0xf]
      %v1676 = vld [vmem:[%s5 + $0x44] sm:$0xf]
      %v1677 = vld [vmem:[%s5 + $0x48] sm:$0xf]
      %v1678 = vld [vmem:[%s5 + $0x4c] sm:$0xf]
      %v1679 = vld [vmem:[%s5 + $0x50] sm:$0xf]
      %v1680 = vld [vmem:[%s5 + $0x54] sm:$0xf]
      %v1681 = vld [vmem:[%s5 + $0x58] sm:$0xf]
      %v1682 = vld [vmem:[%s5 + $0x5c] sm:$0xf]
      %v1683 = vld [vmem:[%s5 + $0x60] sm:$0xf]
      %v1684 = vld [vmem:[%s6] sm:$0x1]
      %v1685 = vrot.slane %v1637, 7
      %v1686 = vrot.slane %v1640, 7
      %v1687 = vrot.slane %v1643, 7
      %v1688 = vrot.slane %v1646, 7
      %v1689 = vrot.slane %v1649, 7
      %v1690 = vrot.slane %v1652, 7
      %v1691 = vrot.slane %v1655, 7
      %v1692 = vrot.slane %v1658, 7
      %v1694 = vsel %vm477, 0, %v1685
      %v1696 = vsel %vm477, 0, %v1686
      %v1698 = vsel %vm477, 0, %v1687
      %v1700 = vsel %vm477, 0, %v1688
      %v1702 = vsel %vm477, 0, %v1689
      %v1704 = vsel %vm477, 0, %v1690
      %v1706 = vsel %vm477, 0, %v1691
      %v1708 = vsel %vm477, 0, %v1692
      %vm1709 = vcmask 1044480
      %v1710 = vsel %vm1709, %v1694, 0
      %v1711 = vsel %vm1709, %v1696, 0
      %v1712 = vsel %vm1709, %v1698, 0
      %v1713 = vsel %vm1709, %v1700, 0
      %v1714 = vsel %vm1709, %v1702, 0
      %v1715 = vsel %vm1709, %v1704, 0
      %v1716 = vsel %vm1709, %v1706, 0
      %v1717 = vsel %vm1709, %v1708, 0
      %v1718 = vshrl.u32 %v1710, 16
      %v1720 = vshll.u32 %v1710, 16
      %v1722 = vrot.slane %v1720, 1
      %v1723 = vor.u32 %v1718, %v1722
      %v1724 = vshrl.u32 %v1711, 16
      %v1726 = vshll.u32 %v1711, 16
      %v1728 = vrot.slane %v1726, 1
      %v1729 = vor.u32 %v1724, %v1728
      %v1730 = vshrl.u32 %v1712, 16
      %v1732 = vshll.u32 %v1712, 16
      %v1734 = vrot.slane %v1732, 1
      %v1735 = vor.u32 %v1730, %v1734
      %v1736 = vshrl.u32 %v1713, 16
      %v1738 = vshll.u32 %v1713, 16
      %v1740 = vrot.slane %v1738, 1
      %v1741 = vor.u32 %v1736, %v1740
      %v1742 = vshrl.u32 %v1714, 16
      %v1744 = vshll.u32 %v1714, 16
      %v1746 = vrot.slane %v1744, 1
      %v1747 = vor.u32 %v1742, %v1746
      %v1748 = vshrl.u32 %v1715, 16
      %v1750 = vshll.u32 %v1715, 16
      %v1752 = vrot.slane %v1750, 1
      %v1753 = vor.u32 %v1748, %v1752
      %v1754 = vshrl.u32 %v1716, 16
      %v1756 = vshll.u32 %v1716, 16
      %v1758 = vrot.slane %v1756, 1
      %v1759 = vor.u32 %v1754, %v1758
      %v1760 = vshrl.u32 %v1717, 16
      %v1762 = vshll.u32 %v1717, 16
      %v1764 = vrot.slane %v1762, 1
      %v1765 = vor.u32 %v1760, %v1764
      %1766 = vrot.lane.b32.xlu0 %v497, 8
      %v1767 = vpop.permute.xlu0 %1766
      %1768 = vrot.lane.b32.xlu0 %v1723, 8
      %v1769 = vpop.permute.xlu0 %1768
      %1770 = vrot.lane.b32.xlu0 %v1729, 8
      %v1771 = vpop.permute.xlu0 %1770
      %1772 = vrot.lane.b32.xlu0 %v1735, 8
      %v1773 = vpop.permute.xlu0 %1772
      %1774 = vrot.lane.b32.xlu0 %v1741, 8
      %v1775 = vpop.permute.xlu0 %1774
      %1776 = vrot.lane.b32.xlu0 %v1747, 8
      %v1777 = vpop.permute.xlu0 %1776
      %1778 = vrot.lane.b32.xlu0 %v1753, 8
      %v1779 = vpop.permute.xlu0 %1778
      %1780 = vrot.lane.b32.xlu0 %v1759, 8
      %v1781 = vpop.permute.xlu0 %1780
      %1782 = vrot.lane.b32.xlu0 %v1765, 8
      %v1783 = vpop.permute.xlu0 %1782
      %v1792 = vrot.slane %v1710, 1
      %v1793 = vrot.slane %v1711, 1
      %v1794 = vrot.slane %v1712, 1
      %v1795 = vrot.slane %v1713, 1
      %v1796 = vrot.slane %v1714, 1
      %v1797 = vrot.slane %v1715, 1
      %v1798 = vrot.slane %v1716, 1
      %v1799 = vrot.slane %v1717, 1
      %1800 = vrot.lane.b32.xlu0 %v537, 16
      %v1801 = vpop.permute.xlu0 %1800
      %1802 = vrot.lane.b32.xlu0 %v1792, 16
      %v1803 = vpop.permute.xlu0 %1802
      %1804 = vrot.lane.b32.xlu0 %v1793, 16
      %v1805 = vpop.permute.xlu0 %1804
      %1806 = vrot.lane.b32.xlu0 %v1794, 16
      %v1807 = vpop.permute.xlu0 %1806
      %1808 = vrot.lane.b32.xlu0 %v1795, 16
      %v1809 = vpop.permute.xlu0 %1808
      %1810 = vrot.lane.b32.xlu0 %v1796, 16
      %v1811 = vpop.permute.xlu0 %1810
      %1812 = vrot.lane.b32.xlu0 %v1797, 16
      %v1813 = vpop.permute.xlu0 %1812
      %1814 = vrot.lane.b32.xlu0 %v1798, 16
      %v1815 = vpop.permute.xlu0 %1814
      %1816 = vrot.lane.b32.xlu0 %v1799, 16
      %v1817 = vpop.permute.xlu0 %1816
      %v1818 = vrot.slane %v1718, 1
      %v1819 = vrot.slane %v1720, 2
      %v1820 = vor.u32 %v1818, %v1819
      %v1821 = vrot.slane %v1724, 1
      %v1822 = vrot.slane %v1726, 2
      %v1823 = vor.u32 %v1821, %v1822
      %v1824 = vrot.slane %v1730, 1
      %v1825 = vrot.slane %v1732, 2
      %v1826 = vor.u32 %v1824, %v1825
      %v1827 = vrot.slane %v1736, 1
      %v1828 = vrot.slane %v1738, 2
      %v1829 = vor.u32 %v1827, %v1828
      %v1830 = vrot.slane %v1742, 1
      %v1831 = vrot.slane %v1744, 2
      %v1832 = vor.u32 %v1830, %v1831
      %v1833 = vrot.slane %v1748, 1
      %v1834 = vrot.slane %v1750, 2
      %v1835 = vor.u32 %v1833, %v1834
      %v1836 = vrot.slane %v1754, 1
      %v1837 = vrot.slane %v1756, 2
      %v1838 = vor.u32 %v1836, %v1837
      %v1839 = vrot.slane %v1760, 1
      %v1840 = vrot.slane %v1762, 2
      %v1841 = vor.u32 %v1839, %v1840
      %1842 = vrot.lane.b32.xlu0 %v554, 24
      %v1843 = vpop.permute.xlu0 %1842
      %1844 = vrot.lane.b32.xlu0 %v1820, 24
      %v1845 = vpop.permute.xlu0 %1844
      %1846 = vrot.lane.b32.xlu0 %v1823, 24
      %v1847 = vpop.permute.xlu0 %1846
      %1848 = vrot.lane.b32.xlu0 %v1826, 24
      %v1849 = vpop.permute.xlu0 %1848
      %1850 = vrot.lane.b32.xlu0 %v1829, 24
      %v1851 = vpop.permute.xlu0 %1850
      %1852 = vrot.lane.b32.xlu0 %v1832, 24
      %v1853 = vpop.permute.xlu0 %1852
      %1854 = vrot.lane.b32.xlu0 %v1835, 24
      %v1855 = vpop.permute.xlu0 %1854
      %1856 = vrot.lane.b32.xlu0 %v1838, 24
      %v1857 = vpop.permute.xlu0 %1856
      %1858 = vrot.lane.b32.xlu0 %v1841, 24
      %v1859 = vpop.permute.xlu0 %1858
      %v1860 = vrot.slane %v1710, 2
      %v1861 = vrot.slane %v1711, 2
      %v1862 = vrot.slane %v1712, 2
      %v1863 = vrot.slane %v1713, 2
      %v1864 = vrot.slane %v1714, 2
      %v1865 = vrot.slane %v1715, 2
      %v1866 = vrot.slane %v1716, 2
      %v1867 = vrot.slane %v1717, 2
      %1868 = vrot.lane.b32.xlu0 %v577, 32
      %v1869 = vpop.permute.xlu0 %1868
      %1870 = vrot.lane.b32.xlu0 %v1860, 32
      %v1871 = vpop.permute.xlu0 %1870
      %1872 = vrot.lane.b32.xlu0 %v1861, 32
      %v1873 = vpop.permute.xlu0 %1872
      %1874 = vrot.lane.b32.xlu0 %v1862, 32
      %v1875 = vpop.permute.xlu0 %1874
      %1876 = vrot.lane.b32.xlu0 %v1863, 32
      %v1877 = vpop.permute.xlu0 %1876
      %1878 = vrot.lane.b32.xlu0 %v1864, 32
      %v1879 = vpop.permute.xlu0 %1878
      %1880 = vrot.lane.b32.xlu0 %v1865, 32
      %v1881 = vpop.permute.xlu0 %1880
      %1882 = vrot.lane.b32.xlu0 %v1866, 32
      %v1883 = vpop.permute.xlu0 %1882
      %1884 = vrot.lane.b32.xlu0 %v1867, 32
      %v1885 = vpop.permute.xlu0 %1884
      %vm1886 = vcmask 64512
      %v1888 = vsel %vm1886, 0, %v1767
      %v1890 = vsel %vm1886, %v1710, %v1769
      %v1892 = vsel %vm1886, %v1711, %v1771
      %v1894 = vsel %vm1886, %v1712, %v1773
      %v1896 = vsel %vm1886, %v1713, %v1775
      %v1898 = vsel %vm1886, %v1714, %v1777
      %v1900 = vsel %vm1886, %v1715, %v1779
      %v1902 = vsel %vm1886, %v1716, %v1781
      %v1904 = vsel %vm1886, %v1717, %v1783
      %v1906 = vsel %vm592, %v1888, %v1801
      %v1908 = vsel %vm592, %v1890, %v1803
      %v1910 = vsel %vm592, %v1892, %v1805
      %v1912 = vsel %vm592, %v1894, %v1807
      %v1914 = vsel %vm592, %v1896, %v1809
      %v1916 = vsel %vm592, %v1898, %v1811
      %v1918 = vsel %vm592, %v1900, %v1813
      %v1920 = vsel %vm592, %v1902, %v1815
      %v1922 = vsel %vm592, %v1904, %v1817
      %vm1923 = vcmask 195584
      %v1925 = vsel %vm1923, %v1906, %v1843
      %v1927 = vsel %vm1923, %v1908, %v1845
      %v1929 = vsel %vm1923, %v1910, %v1847
      %v1931 = vsel %vm1923, %v1912, %v1849
      %v1933 = vsel %vm1923, %v1914, %v1851
      %v1935 = vsel %vm1923, %v1916, %v1853
      %v1937 = vsel %vm1923, %v1918, %v1855
      %v1939 = vsel %vm1923, %v1920, %v1857
      %v1941 = vsel %vm1923, %v1922, %v1859
      %v1943 = vsel %vm328, %v1925, %v1869
      %v1945 = vsel %vm328, %v1927, %v1871
      %v1947 = vsel %vm328, %v1929, %v1873
      %v1949 = vsel %vm328, %v1931, %v1875
      %v1951 = vsel %vm328, %v1933, %v1877
      %v1953 = vsel %vm328, %v1935, %v1879
      %v1955 = vsel %vm328, %v1937, %v1881
      %v1957 = vsel %vm328, %v1939, %v1883
      %v1959 = vsel %vm328, %v1941, %v1885
      %v1968 = vunpack.c.l.b16 %v1943
      %v1969 = vunpack.c.l.b16 %v1945
      %v1970 = vunpack.c.l.b16 %v1947
      %v1971 = vunpack.c.l.b16 %v1949
      %v1972 = vunpack.c.l.b16 %v1951
      %v1973 = vunpack.c.l.b16 %v1953
      %v1974 = vunpack.c.l.b16 %v1955
      %v1975 = vunpack.c.l.b16 %v1957
      %v1976 = vpack.c.b16 %v1969, %v1968
      %v1977 = vpack.c.b16 %v1971, %v1970
      %v1978 = vpack.c.b16 %v1973, %v1972
      %v1979 = vpack.c.b16 %v1975, %v1974
      %v1985 = vunpack.c.l.b16 %v1664
      %v1986 = vunpack.c.l.b16 %v1665
      %v1987 = vunpack.c.l.b16 %v1666
      %v1988 = vunpack.c.l.b16 %v1667
      %v1989 = vunpack.c.l.b16 %v1668
      %v1990 = vpack.c.b16 %v1986, %v1985
      %v1991 = vpack.c.b16 %v1988, %v1987
      %v1992 = vpack.c.b16 %v1989, %v1989
      %vm1995 = vcmask 326656
      %v1997 = vsel %vm1995, %v1976, 0
      %v2000 = vsel %vm1995, %v1977, 0
      %v2003 = vsel %vm1995, %v1978, 0
      %v2006 = vsel %vm1995, %v1979, 0
      %vm2008 = vcmask 1043456
      %v2010 = vsel %vm2008, %v1992, 0
      %2012 = vmatprep.subr.bf16.mxu0 0
      %2013 = vmatpush1.bf16.msra.mxu0 0
      %2014 = vmatprep.subr.bf16.mxu0 0
      %2015 = vmatpush1.bf16.msra.mxu0 0
      %2016 = vmatprep.subr.bf16.mxu0 0
      %2017 = vmatpush1.bf16.msra.mxu0 0
      %2018 = vmatprep.subr.bf16.mxu0 0
      %2019 = vmatpush1.bf16.msra.mxu0 0
      %2020 = vmatprep.subr.bf16.mxu0 0
      %2021 = vmatpush1.bf16.msra.mxu0 0
      %2022 = vmatprep.subr.bf16.mxu0 0
      %2023 = vmatpush1.bf16.msra.mxu0 %v2010
      %2024 = vmatprep.subr.bf16.mxu0 0
      %2025 = vmatpush1.bf16.msra.mxu0 %v1991
      %2026 = vmatprep.subr.bf16.mxu0 0
      %2027 = vmatpush1.bf16.msra.mxu0 %v1990
      %2028 = vmatprep.subr.bf16.mxu0 0
      %2029 = vmatpush2.bf16.msra.mxu0 0
      %2030 = vmatprep.subr.bf16.mxu0 0
      %2031 = vmatpush2.bf16.msra.mxu0 0
      %2032 = vmatprep.subr.bf16.mxu0 0
      %2033 = vmatpush2.bf16.msra.mxu0 0
      %2034 = vmatprep.subr.bf16.mxu0 0
      %2035 = vmatpush2.bf16.msra.mxu0 0
      %2036 = vmatprep.subr.bf16.mxu0 0
      %2037 = vmatpush2.bf16.msra.mxu0 0
      %2038 = vmatprep.subr.bf16.mxu0 0
      %2039 = vmatpush2.bf16.msra.mxu0 0
      %2040 = vmatprep.subr.bf16.mxu0 0
      %2041 = vmatpush2.bf16.msra.mxu0 0
      %2042 = vmatprep.subr.bf16.mxu0 0
      %2043 = vmatpush2.bf16.msra.mxu0 0
      %2044 = vmatprep.mubr.bf16.mxu0 0
      %2045 = vmatmul.mubr.bf16.gmra.mxu0 %v1997
      %v2046 = vpop.f32.mrf.mxu0
      %v2047 = vadd.f32 0.0, %v2046
      %v2048 = vpop.f32.mrf.mxu0
      %v2049 = vpop.f32.mrf.mxu0
      %v2050 = vadd.f32 0.0, %v2049
      %v2051 = vpop.f32.mrf.mxu0
      %2052 = vmatprep.mubr.bf16.mxu0 0
      %2053 = vmatmul.mubr.bf16.gmra.mxu0 %v2000
      %v2054 = vpop.f32.mrf.mxu0
      %v2055 = vadd.f32 0.0, %v2054
      %v2056 = vpop.f32.mrf.mxu0
      %v2057 = vpop.f32.mrf.mxu0
      %v2058 = vadd.f32 0.0, %v2057
      %v2059 = vpop.f32.mrf.mxu0
      %2060 = vmatprep.mubr.bf16.mxu0 0
      %2061 = vmatmul.mubr.bf16.gmra.mxu0 %v2003
      %v2062 = vpop.f32.mrf.mxu0
      %v2063 = vadd.f32 0.0, %v2062
      %v2064 = vpop.f32.mrf.mxu0
      %v2065 = vpop.f32.mrf.mxu0
      %v2066 = vadd.f32 0.0, %v2065
      %v2067 = vpop.f32.mrf.mxu0
      %2068 = vmatprep.mubr.bf16.mxu0 0
      %2069 = vmatmul.mubr.bf16.gmra.mxu0 %v2006
      %v2070 = vpop.f32.mrf.mxu0
      %v2071 = vadd.f32 0.0, %v2070
      %v2072 = vpop.f32.mrf.mxu0
      %v2073 = vpop.f32.mrf.mxu0
      %v2074 = vadd.f32 0.0, %v2073
      %v2075 = vpop.f32.mrf.mxu0
      %2076 = vdwg.mxu0
      %v2077 = vpack.c.b16 %v1968, %v1968
      %v2078 = vpack.c.b16 %v1970, %v1969
      %v2079 = vpack.c.b16 %v1972, %v1971
      %v2080 = vpack.c.b16 %v1974, %v1973
      %v2086 = vunpack.c.l.b16 %v1659
      %v2087 = vunpack.c.l.b16 %v1660
      %v2088 = vunpack.c.l.b16 %v1661
      %v2089 = vunpack.c.l.b16 %v1662
      %v2090 = vunpack.c.l.b16 %v1663
      %v2091 = vpack.c.b16 %v2087, %v2086
      %v2092 = vpack.c.b16 %v2089, %v2088
      %v2093 = vpack.c.b16 %v2090, %v2090
      %v2097 = vsel %vm1995, %v2077, 0
      %v2100 = vsel %vm1995, %v2078, 0
      %v2103 = vsel %vm1995, %v2079, 0
      %v2106 = vsel %vm1995, %v2080, 0
      %v2109 = vsel %vm2008, %v2093, 0
      %2111 = vmatprep.subr.bf16.mxu0 0
      %2112 = vmatpush1.bf16.msra.mxu0 0
      %2113 = vmatprep.subr.bf16.mxu0 0
      %2114 = vmatpush1.bf16.msra.mxu0 0
      %2115 = vmatprep.subr.bf16.mxu0 0
      %2116 = vmatpush1.bf16.msra.mxu0 0
      %2117 = vmatprep.subr.bf16.mxu0 0
      %2118 = vmatpush1.bf16.msra.mxu0 0
      %2119 = vmatprep.subr.bf16.mxu0 0
      %2120 = vmatpush1.bf16.msra.mxu0 0
      %2121 = vmatprep.subr.bf16.mxu0 0
      %2122 = vmatpush1.bf16.msra.mxu0 %v2109
      %2123 = vmatprep.subr.bf16.mxu0 0
      %2124 = vmatpush1.bf16.msra.mxu0 %v2092
      %2125 = vmatprep.subr.bf16.mxu0 0
      %2126 = vmatpush1.bf16.msra.mxu0 %v2091
      %2127 = vmatprep.subr.bf16.mxu0 0
      %2128 = vmatpush2.bf16.msra.mxu0 0
      %2129 = vmatprep.subr.bf16.mxu0 0
      %2130 = vmatpush2.bf16.msra.mxu0 0
      %2131 = vmatprep.subr.bf16.mxu0 0
      %2132 = vmatpush2.bf16.msra.mxu0 0
      %2133 = vmatprep.subr.bf16.mxu0 0
      %2134 = vmatpush2.bf16.msra.mxu0 0
      %2135 = vmatprep.subr.bf16.mxu0 0
      %2136 = vmatpush2.bf16.msra.mxu0 0
      %2137 = vmatprep.subr.bf16.mxu0 0
      %2138 = vmatpush2.bf16.msra.mxu0 0
      %2139 = vmatprep.subr.bf16.mxu0 0
      %2140 = vmatpush2.bf16.msra.mxu0 0
      %2141 = vmatprep.subr.bf16.mxu0 0
      %2142 = vmatpush2.bf16.msra.mxu0 0
      %2143 = vmatprep.mubr.bf16.mxu0 0
      %2144 = vmatmul.mubr.bf16.gmra.mxu0 %v2097
      %v2145 = vpop.f32.mrf.mxu0
      %v2146 = vadd.f32 %v2047, %v2145
      %v2147 = vpop.f32.mrf.mxu0
      %v2148 = vpop.f32.mrf.mxu0
      %v2149 = vadd.f32 %v2050, %v2148
      %v2150 = vpop.f32.mrf.mxu0
      %2151 = vmatprep.mubr.bf16.mxu0 0
      %2152 = vmatmul.mubr.bf16.gmra.mxu0 %v2100
      %v2153 = vpop.f32.mrf.mxu0
      %v2154 = vadd.f32 %v2055, %v2153
      %v2155 = vpop.f32.mrf.mxu0
      %v2156 = vpop.f32.mrf.mxu0
      %v2157 = vadd.f32 %v2058, %v2156
      %v2158 = vpop.f32.mrf.mxu0
      %2159 = vmatprep.mubr.bf16.mxu0 0
      %2160 = vmatmul.mubr.bf16.gmra.mxu0 %v2103
      %v2161 = vpop.f32.mrf.mxu0
      %v2162 = vadd.f32 %v2063, %v2161
      %v2163 = vpop.f32.mrf.mxu0
      %v2164 = vpop.f32.mrf.mxu0
      %v2165 = vadd.f32 %v2066, %v2164
      %v2166 = vpop.f32.mrf.mxu0
      %2167 = vmatprep.mubr.bf16.mxu0 0
      %2168 = vmatmul.mubr.bf16.gmra.mxu0 %v2106
      %v2169 = vpop.f32.mrf.mxu0
      %v2170 = vadd.f32 %v2071, %v2169
      %v2171 = vpop.f32.mrf.mxu0
      %v2172 = vpop.f32.mrf.mxu0
      %v2173 = vadd.f32 %v2074, %v2172
      %v2174 = vpop.f32.mrf.mxu0
      %2175 = vdwg.mxu0
      %v2177 = vunpack.c.l.b16 %v1959
      %v2178 = vpack.c.b16 %v2177, %v1975
      %v2184 = vunpack.c.l.b16 %v1669
      %v2185 = vunpack.c.l.b16 %v1670
      %v2186 = vunpack.c.l.b16 %v1671
      %v2187 = vunpack.c.l.b16 %v1672
      %v2188 = vunpack.c.l.b16 %v1673
      %v2189 = vpack.c.b16 %v2185, %v2184
      %v2190 = vpack.c.b16 %v2187, %v2186
      %v2191 = vpack.c.b16 %v2188, %v2188
      %v2195 = vsel %vm1995, %v2178, 0
      %v2198 = vsel %vm2008, %v2191, 0
      %2200 = vmatprep.subr.bf16.mxu0 0
      %2201 = vmatpush1.bf16.msra.mxu0 0
      %2202 = vmatprep.subr.bf16.mxu0 0
      %2203 = vmatpush1.bf16.msra.mxu0 0
      %2204 = vmatprep.subr.bf16.mxu0 0
      %2205 = vmatpush1.bf16.msra.mxu0 0
      %2206 = vmatprep.subr.bf16.mxu0 0
      %2207 = vmatpush1.bf16.msra.mxu0 0
      %2208 = vmatprep.subr.bf16.mxu0 0
      %2209 = vmatpush1.bf16.msra.mxu0 0
      %2210 = vmatprep.subr.bf16.mxu0 0
      %2211 = vmatpush1.bf16.msra.mxu0 %v2198
      %2212 = vmatprep.subr.bf16.mxu0 0
      %2213 = vmatpush1.bf16.msra.mxu0 %v2190
      %2214 = vmatprep.subr.bf16.mxu0 0
      %2215 = vmatpush1.bf16.msra.mxu0 %v2189
      %2216 = vmatprep.subr.bf16.mxu0 0
      %2217 = vmatpush2.bf16.msra.mxu0 0
      %2218 = vmatprep.subr.bf16.mxu0 0
      %2219 = vmatpush2.bf16.msra.mxu0 0
      %2220 = vmatprep.subr.bf16.mxu0 0
      %2221 = vmatpush2.bf16.msra.mxu0 0
      %2222 = vmatprep.subr.bf16.mxu0 0
      %2223 = vmatpush2.bf16.msra.mxu0 0
      %2224 = vmatprep.subr.bf16.mxu0 0
      %2225 = vmatpush2.bf16.msra.mxu0 0
      %2226 = vmatprep.subr.bf16.mxu0 0
      %2227 = vmatpush2.bf16.msra.mxu0 0
      %2228 = vmatprep.subr.bf16.mxu0 0
      %2229 = vmatpush2.bf16.msra.mxu0 0
      %2230 = vmatprep.subr.bf16.mxu0 0
      %2231 = vmatpush2.bf16.msra.mxu0 0
      %2232 = vmatprep.mubr.bf16.mxu0 0
      %2233 = vmatmul.mubr.bf16.gmra.mxu0 %v2100
      %v2234 = vpop.f32.mrf.mxu0
      %v2235 = vadd.f32 0.0, %v2234
      %v2236 = vpop.f32.mrf.mxu0
      %v2237 = vpop.f32.mrf.mxu0
      %v2238 = vadd.f32 0.0, %v2237
      %v2239 = vpop.f32.mrf.mxu0
      %2240 = vmatprep.mubr.bf16.mxu0 0
      %2241 = vmatmul.mubr.bf16.gmra.mxu0 %v2103
      %v2242 = vpop.f32.mrf.mxu0
      %v2243 = vadd.f32 0.0, %v2242
      %v2244 = vpop.f32.mrf.mxu0
      %v2245 = vpop.f32.mrf.mxu0
      %v2246 = vadd.f32 0.0, %v2245
      %v2247 = vpop.f32.mrf.mxu0
      %2248 = vmatprep.mubr.bf16.mxu0 0
      %2249 = vmatmul.mubr.bf16.gmra.mxu0 %v2106
      %v2250 = vpop.f32.mrf.mxu0
      %v2251 = vadd.f32 0.0, %v2250
      %v2252 = vpop.f32.mrf.mxu0
      %v2253 = vpop.f32.mrf.mxu0
      %v2254 = vadd.f32 0.0, %v2253
      %v2255 = vpop.f32.mrf.mxu0
      %2256 = vmatprep.mubr.bf16.mxu0 0
      %2257 = vmatmul.mubr.bf16.gmra.mxu0 %v2195
      %v2258 = vpop.f32.mrf.mxu0
      %v2259 = vadd.f32 0.0, %v2258
      %v2260 = vpop.f32.mrf.mxu0
      %v2261 = vpop.f32.mrf.mxu0
      %v2262 = vadd.f32 0.0, %v2261
      %v2263 = vpop.f32.mrf.mxu0
      %2264 = vdwg.mxu0
      %v2265 = vadd.f32 %v2146, %v2235
      %v2266 = vadd.f32 %v2149, %v2238
      %v2267 = vadd.f32 %v2154, %v2243
      %v2268 = vadd.f32 %v2157, %v2246
      %v2269 = vadd.f32 %v2162, %v2251
      %v2270 = vadd.f32 %v2165, %v2254
      %v2271 = vadd.f32 %v2170, %v2259
      %v2272 = vadd.f32 %v2173, %v2262
      %v2273 = vpack.c.b16 %v1968, %v2177
      %v2279 = vunpack.c.l.b16 %v1674
      %v2280 = vunpack.c.l.b16 %v1675
      %v2281 = vunpack.c.l.b16 %v1676
      %v2282 = vunpack.c.l.b16 %v1677
      %v2283 = vunpack.c.l.b16 %v1678
      %v2284 = vpack.c.b16 %v2280, %v2279
      %v2285 = vpack.c.b16 %v2282, %v2281
      %v2286 = vpack.c.b16 %v2283, %v2283
      %v2290 = vsel %vm1995, %v2273, 0
      %v2293 = vsel %vm2008, %v2286, 0
      %2295 = vmatprep.subr.bf16.mxu0 0
      %2296 = vmatpush1.bf16.msra.mxu0 0
      %2297 = vmatprep.subr.bf16.mxu0 0
      %2298 = vmatpush1.bf16.msra.mxu0 0
      %2299 = vmatprep.subr.bf16.mxu0 0
      %2300 = vmatpush1.bf16.msra.mxu0 0
      %2301 = vmatprep.subr.bf16.mxu0 0
      %2302 = vmatpush1.bf16.msra.mxu0 0
      %2303 = vmatprep.subr.bf16.mxu0 0
      %2304 = vmatpush1.bf16.msra.mxu0 0
      %2305 = vmatprep.subr.bf16.mxu0 0
      %2306 = vmatpush1.bf16.msra.mxu0 %v2293
      %2307 = vmatprep.subr.bf16.mxu0 0
      %2308 = vmatpush1.bf16.msra.mxu0 %v2285
      %2309 = vmatprep.subr.bf16.mxu0 0
      %2310 = vmatpush1.bf16.msra.mxu0 %v2284
      %2311 = vmatprep.subr.bf16.mxu0 0
      %2312 = vmatpush2.bf16.msra.mxu0 0
      %2313 = vmatprep.subr.bf16.mxu0 0
      %2314 = vmatpush2.bf16.msra.mxu0 0
      %2315 = vmatprep.subr.bf16.mxu0 0
      %2316 = vmatpush2.bf16.msra.mxu0 0
      %2317 = vmatprep.subr.bf16.mxu0 0
      %2318 = vmatpush2.bf16.msra.mxu0 0
      %2319 = vmatprep.subr.bf16.mxu0 0
      %2320 = vmatpush2.bf16.msra.mxu0 0
      %2321 = vmatprep.subr.bf16.mxu0 0
      %2322 = vmatpush2.bf16.msra.mxu0 0
      %2323 = vmatprep.subr.bf16.mxu0 0
      %2324 = vmatpush2.bf16.msra.mxu0 0
      %2325 = vmatprep.subr.bf16.mxu0 0
      %2326 = vmatpush2.bf16.msra.mxu0 0
      %2327 = vmatprep.mubr.bf16.mxu0 0
      %2328 = vmatmul.mubr.bf16.gmra.mxu0 %v2000
      %v2329 = vpop.f32.mrf.mxu0
      %v2330 = vadd.f32 0.0, %v2329
      %v2331 = vpop.f32.mrf.mxu0
      %v2332 = vpop.f32.mrf.mxu0
      %v2333 = vadd.f32 0.0, %v2332
      %v2334 = vpop.f32.mrf.mxu0
      %2335 = vmatprep.mubr.bf16.mxu0 0
      %2336 = vmatmul.mubr.bf16.gmra.mxu0 %v2003
      %v2337 = vpop.f32.mrf.mxu0
      %v2338 = vadd.f32 0.0, %v2337
      %v2339 = vpop.f32.mrf.mxu0
      %v2340 = vpop.f32.mrf.mxu0
      %v2341 = vadd.f32 0.0, %v2340
      %v2342 = vpop.f32.mrf.mxu0
      %2343 = vmatprep.mubr.bf16.mxu0 0
      %2344 = vmatmul.mubr.bf16.gmra.mxu0 %v2006
      %v2345 = vpop.f32.mrf.mxu0
      %v2346 = vadd.f32 0.0, %v2345
      %v2347 = vpop.f32.mrf.mxu0
      %v2348 = vpop.f32.mrf.mxu0
      %v2349 = vadd.f32 0.0, %v2348
      %v2350 = vpop.f32.mrf.mxu0
      %2351 = vmatprep.mubr.bf16.mxu0 0
      %2352 = vmatmul.mubr.bf16.gmra.mxu0 %v2290
      %v2353 = vpop.f32.mrf.mxu0
      %v2354 = vadd.f32 0.0, %v2353
      %v2355 = vpop.f32.mrf.mxu0
      %v2356 = vpop.f32.mrf.mxu0
      %v2357 = vadd.f32 0.0, %v2356
      %v2358 = vpop.f32.mrf.mxu0
      %2359 = vdwg.mxu0
      %v2360 = vadd.f32 %v2265, %v2330
      %v2361 = vadd.f32 %v2266, %v2333
      %v2362 = vadd.f32 %v2267, %v2338
      %v2363 = vadd.f32 %v2268, %v2341
      %v2364 = vadd.f32 %v2269, %v2346
      %v2365 = vadd.f32 %v2270, %v2349
      %v2366 = vadd.f32 %v2271, %v2354
      %v2367 = vadd.f32 %v2272, %v2357
      %v2373 = vunpack.c.l.b16 %v1679
      %v2374 = vunpack.c.l.b16 %v1680
      %v2375 = vunpack.c.l.b16 %v1681
      %v2376 = vunpack.c.l.b16 %v1682
      %v2377 = vunpack.c.l.b16 %v1683
      %v2378 = vpack.c.b16 %v2374, %v2373
      %v2379 = vpack.c.b16 %v2376, %v2375
      %v2380 = vpack.c.b16 %v2377, %v2377
      %v2384 = vsel %vm2008, %v2380, 0
      %2386 = vmatprep.subr.bf16.mxu0 0
      %2387 = vmatpush1.bf16.msra.mxu0 0
      %2388 = vmatprep.subr.bf16.mxu0 0
      %2389 = vmatpush1.bf16.msra.mxu0 0
      %2390 = vmatprep.subr.bf16.mxu0 0
      %2391 = vmatpush1.bf16.msra.mxu0 0
      %2392 = vmatprep.subr.bf16.mxu0 0
      %2393 = vmatpush1.bf16.msra.mxu0 0
      %2394 = vmatprep.subr.bf16.mxu0 0
      %2395 = vmatpush1.bf16.msra.mxu0 0
      %2396 = vmatprep.subr.bf16.mxu0 0
      %2397 = vmatpush1.bf16.msra.mxu0 %v2384
      %2398 = vmatprep.subr.bf16.mxu0 0
      %2399 = vmatpush1.bf16.msra.mxu0 %v2379
      %2400 = vmatprep.subr.bf16.mxu0 0
      %2401 = vmatpush1.bf16.msra.mxu0 %v2378
      %2402 = vmatprep.subr.bf16.mxu0 0
      %2403 = vmatpush2.bf16.msra.mxu0 0
      %2404 = vmatprep.subr.bf16.mxu0 0
      %2405 = vmatpush2.bf16.msra.mxu0 0
      %2406 = vmatprep.subr.bf16.mxu0 0
      %2407 = vmatpush2.bf16.msra.mxu0 0
      %2408 = vmatprep.subr.bf16.mxu0 0
      %2409 = vmatpush2.bf16.msra.mxu0 0
      %2410 = vmatprep.subr.bf16.mxu0 0
      %2411 = vmatpush2.bf16.msra.mxu0 0
      %2412 = vmatprep.subr.bf16.mxu0 0
      %2413 = vmatpush2.bf16.msra.mxu0 0
      %2414 = vmatprep.subr.bf16.mxu0 0
      %2415 = vmatpush2.bf16.msra.mxu0 0
      %2416 = vmatprep.subr.bf16.mxu0 0
      %2417 = vmatpush2.bf16.msra.mxu0 0
      %2418 = vmatprep.mubr.bf16.mxu0 0
      %2419 = vmatmul.mubr.bf16.gmra.mxu0 %v2103
      %v2420 = vpop.f32.mrf.mxu0
      %v2421 = vadd.f32 0.0, %v2420
      %v2422 = vpop.f32.mrf.mxu0
      %v2423 = vpop.f32.mrf.mxu0
      %v2424 = vadd.f32 0.0, %v2423
      %v2425 = vpop.f32.mrf.mxu0
      %2426 = vmatprep.mubr.bf16.mxu0 0
      %2427 = vmatmul.mubr.bf16.gmra.mxu0 %v2106
      %v2428 = vpop.f32.mrf.mxu0
      %v2429 = vadd.f32 0.0, %v2428
      %v2430 = vpop.f32.mrf.mxu0
      %v2431 = vpop.f32.mrf.mxu0
      %v2432 = vadd.f32 0.0, %v2431
      %v2433 = vpop.f32.mrf.mxu0
      %2434 = vmatprep.mubr.bf16.mxu0 0
      %2435 = vmatmul.mubr.bf16.gmra.mxu0 %v2195
      %v2436 = vpop.f32.mrf.mxu0
      %v2437 = vadd.f32 0.0, %v2436
      %v2438 = vpop.f32.mrf.mxu0
      %v2439 = vpop.f32.mrf.mxu0
      %v2440 = vadd.f32 0.0, %v2439
      %v2441 = vpop.f32.mrf.mxu0
      %2442 = vmatprep.mubr.bf16.mxu0 0
      %2443 = vmatmul.mubr.bf16.gmra.mxu0 %v2097
      %v2444 = vpop.f32.mrf.mxu0
      %v2445 = vadd.f32 0.0, %v2444
      %v2446 = vpop.f32.mrf.mxu0
      %v2447 = vpop.f32.mrf.mxu0
      %v2448 = vadd.f32 0.0, %v2447
      %v2449 = vpop.f32.mrf.mxu0
      %2450 = vdwg.mxu0
      %v2451 = vadd.f32 %v2360, %v2421
      %v2452 = vadd.f32 %v2361, %v2424
      %v2453 = vadd.f32 %v2362, %v2429
      %v2454 = vadd.f32 %v2363, %v2432
      %v2455 = vadd.f32 %v2364, %v2437
      %v2456 = vadd.f32 %v2365, %v2440
      %v2457 = vadd.f32 %v2366, %v2445
      %v2458 = vadd.f32 %v2367, %v2448
      %v2460 = vlaneseq
      %v2461 = vshrl.u32 %v2460, 7
      %v2462 = vsub.s32 0, %v2461
      %v2463 = vrot.slane %v1684, %v2462
      %v2465 = vadd.f32 %v2451, %v2463
      %v2466 = vadd.f32 %v2452, %v2463
      %v2467 = vadd.f32 %v2453, %v2463
      %v2468 = vadd.f32 %v2454, %v2463
      %v2469 = vadd.f32 %v2455, %v2463
      %v2470 = vadd.f32 %v2456, %v2463
      %v2471 = vadd.f32 %v2457, %v2463
      %v2472 = vadd.f32 %v2458, %v2463
      %v2473 = vmax.f32 %v2465, 0.0
      %v2474 = vmax.f32 %v2466, 0.0
      %v2475 = vmax.f32 %v2467, 0.0
      %v2476 = vmax.f32 %v2468, 0.0
      %v2477 = vmax.f32 %v2469, 0.0
      %v2478 = vmax.f32 %v2470, 0.0
      %v2479 = vmax.f32 %v2471, 0.0
      %v2480 = vmax.f32 %v2472, 0.0
      %v2481 = vcombine.high %v2473, 0.0
      %v2483 = vunpack.c.l.s4 1983009808
      %v2484 = vunpack.c.0.s8 %v2483
      %v2485 = vlaneseq
      %v2486 = vshrl.u32 %v2485, 7
      %v2487 = vsub.s32 %v2484, %v2486
      %v2488 = vrot.slane %v2473, %v2487
      %v2490 = vunpack.c.l.s4 1983009808
      %v2491 = vunpack.c.0.s8 %v2490
      %v2492 = vlaneseq
      %v2493 = vshrl.u32 %v2492, 7
      %v2494 = vsub.s32 %v2491, %v2493
      %v2495 = vrot.slane %v2481, %v2494
      %v2496 = vcombine.high %v2488, 0.0
      %v2498 = vunpack.c.l.s4 1934713408
      %v2499 = vunpack.c.0.s8 %v2498
      %v2500 = vlaneseq
      %v2501 = vshrl.u32 %v2500, 7
      %v2502 = vsub.s32 %v2499, %v2501
      %v2503 = vrot.slane %v2488, %v2502
      %v2505 = vunpack.c.l.s4 1934713408
      %v2506 = vunpack.c.0.s8 %v2505
      %v2507 = vlaneseq
      %v2508 = vshrl.u32 %v2507, 7
      %v2509 = vsub.s32 %v2506, %v2508
      %v2510 = vrot.slane %v2496, %v2509
      %v2511 = vcombine.high %v2495, 0.0
      %v2513 = vunpack.c.l.s4 1934713408
      %v2514 = vunpack.c.0.s8 %v2513
      %v2515 = vlaneseq
      %v2516 = vshrl.u32 %v2515, 7
      %v2517 = vsub.s32 %v2514, %v2516
      %v2518 = vrot.slane %v2495, %v2517
      %v2520 = vunpack.c.l.s4 1934713408
      %v2521 = vunpack.c.0.s8 %v2520
      %v2522 = vlaneseq
      %v2523 = vshrl.u32 %v2522, 7
      %v2524 = vsub.s32 %v2521, %v2523
      %v2525 = vrot.slane %v2511, %v2524
      %v2526 = vcombine.high %v2503, 0.0
      %v2527 = vcombine.high %v2510, 0.0
      %v2528 = vcombine.high %v2518, 0.0
      %v2529 = vcombine.high %v2525, 0.0
      %v2530 = vcombine.high %v2474, 0.0
      %v2532 = vunpack.c.l.s4 1983009808
      %v2533 = vunpack.c.0.s8 %v2532
      %v2534 = vlaneseq
      %v2535 = vshrl.u32 %v2534, 7
      %v2536 = vsub.s32 %v2533, %v2535
      %v2537 = vrot.slane %v2474, %v2536
      %v2539 = vunpack.c.l.s4 1983009808
      %v2540 = vunpack.c.0.s8 %v2539
      %v2541 = vlaneseq
      %v2542 = vshrl.u32 %v2541, 7
      %v2543 = vsub.s32 %v2540, %v2542
      %v2544 = vrot.slane %v2530, %v2543
      %v2545 = vcombine.high %v2537, 0.0
      %v2547 = vunpack.c.l.s4 1934713408
      %v2548 = vunpack.c.0.s8 %v2547
      %v2549 = vlaneseq
      %v2550 = vshrl.u32 %v2549, 7
      %v2551 = vsub.s32 %v2548, %v2550
      %v2552 = vrot.slane %v2537, %v2551
      %v2554 = vunpack.c.l.s4 1934713408
      %v2555 = vunpack.c.0.s8 %v2554
      %v2556 = vlaneseq
      %v2557 = vshrl.u32 %v2556, 7
      %v2558 = vsub.s32 %v2555, %v2557
      %v2559 = vrot.slane %v2545, %v2558
      %v2560 = vcombine.high %v2544, 0.0
      %v2562 = vunpack.c.l.s4 1934713408
      %v2563 = vunpack.c.0.s8 %v2562
      %v2564 = vlaneseq
      %v2565 = vshrl.u32 %v2564, 7
      %v2566 = vsub.s32 %v2563, %v2565
      %v2567 = vrot.slane %v2544, %v2566
      %v2569 = vunpack.c.l.s4 1934713408
      %v2570 = vunpack.c.0.s8 %v2569
      %v2571 = vlaneseq
      %v2572 = vshrl.u32 %v2571, 7
      %v2573 = vsub.s32 %v2570, %v2572
      %v2574 = vrot.slane %v2560, %v2573
      %v2575 = vcombine.high %v2552, 0.0
      %v2576 = vcombine.high %v2559, 0.0
      %v2577 = vcombine.high %v2567, 0.0
      %v2578 = vcombine.high %v2574, 0.0
      %v2579 = vcombine.high %v2475, 0.0
      %v2581 = vunpack.c.l.s4 1983009808
      %v2582 = vunpack.c.0.s8 %v2581
      %v2583 = vlaneseq
      %v2584 = vshrl.u32 %v2583, 7
      %v2585 = vsub.s32 %v2582, %v2584
      %v2586 = vrot.slane %v2475, %v2585
      %v2588 = vunpack.c.l.s4 1983009808
      %v2589 = vunpack.c.0.s8 %v2588
      %v2590 = vlaneseq
      %v2591 = vshrl.u32 %v2590, 7
      %v2592 = vsub.s32 %v2589, %v2591
      %v2593 = vrot.slane %v2579, %v2592
      %v2594 = vcombine.high %v2586, 0.0
      %v2596 = vunpack.c.l.s4 1934713408
      %v2597 = vunpack.c.0.s8 %v2596
      %v2598 = vlaneseq
      %v2599 = vshrl.u32 %v2598, 7
      %v2600 = vsub.s32 %v2597, %v2599
      %v2601 = vrot.slane %v2586, %v2600
      %v2603 = vunpack.c.l.s4 1934713408
      %v2604 = vunpack.c.0.s8 %v2603
      %v2605 = vlaneseq
      %v2606 = vshrl.u32 %v2605, 7
      %v2607 = vsub.s32 %v2604, %v2606
      %v2608 = vrot.slane %v2594, %v2607
      %v2609 = vcombine.high %v2593, 0.0
      %v2611 = vunpack.c.l.s4 1934713408
      %v2612 = vunpack.c.0.s8 %v2611
      %v2613 = vlaneseq
      %v2614 = vshrl.u32 %v2613, 7
      %v2615 = vsub.s32 %v2612, %v2614
      %v2616 = vrot.slane %v2593, %v2615
      %v2618 = vunpack.c.l.s4 1934713408
      %v2619 = vunpack.c.0.s8 %v2618
      %v2620 = vlaneseq
      %v2621 = vshrl.u32 %v2620, 7
      %v2622 = vsub.s32 %v2619, %v2621
      %v2623 = vrot.slane %v2609, %v2622
      %v2624 = vcombine.high %v2601, 0.0
      %v2625 = vcombine.high %v2608, 0.0
      %v2626 = vcombine.high %v2616, 0.0
      %v2627 = vcombine.high %v2623, 0.0
      %v2628 = vcombine.high %v2476, 0.0
      %v2630 = vunpack.c.l.s4 1983009808
      %v2631 = vunpack.c.0.s8 %v2630
      %v2632 = vlaneseq
      %v2633 = vshrl.u32 %v2632, 7
      %v2634 = vsub.s32 %v2631, %v2633
      %v2635 = vrot.slane %v2476, %v2634
      %v2637 = vunpack.c.l.s4 1983009808
      %v2638 = vunpack.c.0.s8 %v2637
      %v2639 = vlaneseq
      %v2640 = vshrl.u32 %v2639, 7
      %v2641 = vsub.s32 %v2638, %v2640
      %v2642 = vrot.slane %v2628, %v2641
      %v2643 = vcombine.high %v2635, 0.0
      %v2645 = vunpack.c.l.s4 1934713408
      %v2646 = vunpack.c.0.s8 %v2645
      %v2647 = vlaneseq
      %v2648 = vshrl.u32 %v2647, 7
      %v2649 = vsub.s32 %v2646, %v2648
      %v2650 = vrot.slane %v2635, %v2649
      %v2652 = vunpack.c.l.s4 1934713408
      %v2653 = vunpack.c.0.s8 %v2652
      %v2654 = vlaneseq
      %v2655 = vshrl.u32 %v2654, 7
      %v2656 = vsub.s32 %v2653, %v2655
      %v2657 = vrot.slane %v2643, %v2656
      %v2658 = vcombine.high %v2642, 0.0
      %v2660 = vunpack.c.l.s4 1934713408
      %v2661 = vunpack.c.0.s8 %v2660
      %v2662 = vlaneseq
      %v2663 = vshrl.u32 %v2662, 7
      %v2664 = vsub.s32 %v2661, %v2663
      %v2665 = vrot.slane %v2642, %v2664
      %v2667 = vunpack.c.l.s4 1934713408
      %v2668 = vunpack.c.0.s8 %v2667
      %v2669 = vlaneseq
      %v2670 = vshrl.u32 %v2669, 7
      %v2671 = vsub.s32 %v2668, %v2670
      %v2672 = vrot.slane %v2658, %v2671
      %v2673 = vcombine.high %v2650, 0.0
      %v2674 = vcombine.high %v2657, 0.0
      %v2675 = vcombine.high %v2665, 0.0
      %v2676 = vcombine.high %v2672, 0.0
      %v2677 = vcombine.high %v2477, 0.0
      %v2679 = vunpack.c.l.s4 1983009808
      %v2680 = vunpack.c.0.s8 %v2679
      %v2681 = vlaneseq
      %v2682 = vshrl.u32 %v2681, 7
      %v2683 = vsub.s32 %v2680, %v2682
      %v2684 = vrot.slane %v2477, %v2683
      %v2686 = vunpack.c.l.s4 1983009808
      %v2687 = vunpack.c.0.s8 %v2686
      %v2688 = vlaneseq
      %v2689 = vshrl.u32 %v2688, 7
      %v2690 = vsub.s32 %v2687, %v2689
      %v2691 = vrot.slane %v2677, %v2690
      %v2692 = vcombine.high %v2684, 0.0
      %v2694 = vunpack.c.l.s4 1934713408
      %v2695 = vunpack.c.0.s8 %v2694
      %v2696 = vlaneseq
      %v2697 = vshrl.u32 %v2696, 7
      %v2698 = vsub.s32 %v2695, %v2697
      %v2699 = vrot.slane %v2684, %v2698
      %v2701 = vunpack.c.l.s4 1934713408
      %v2702 = vunpack.c.0.s8 %v2701
      %v2703 = vlaneseq
      %v2704 = vshrl.u32 %v2703, 7
      %v2705 = vsub.s32 %v2702, %v2704
      %v2706 = vrot.slane %v2692, %v2705
      %v2707 = vcombine.high %v2691, 0.0
      %v2709 = vunpack.c.l.s4 1934713408
      %v2710 = vunpack.c.0.s8 %v2709
      %v2711 = vlaneseq
      %v2712 = vshrl.u32 %v2711, 7
      %v2713 = vsub.s32 %v2710, %v2712
      %v2714 = vrot.slane %v2691, %v2713
      %v2716 = vunpack.c.l.s4 1934713408
      %v2717 = vunpack.c.0.s8 %v2716
      %v2718 = vlaneseq
      %v2719 = vshrl.u32 %v2718, 7
      %v2720 = vsub.s32 %v2717, %v2719
      %v2721 = vrot.slane %v2707, %v2720
      %v2722 = vcombine.high %v2699, 0.0
      %v2723 = vcombine.high %v2706, 0.0
      %v2724 = vcombine.high %v2714, 0.0
      %v2725 = vcombine.high %v2721, 0.0
      %v2726 = vcombine.high %v2478, 0.0
      %v2728 = vunpack.c.l.s4 1983009808
      %v2729 = vunpack.c.0.s8 %v2728
      %v2730 = vlaneseq
      %v2731 = vshrl.u32 %v2730, 7
      %v2732 = vsub.s32 %v2729, %v2731
      %v2733 = vrot.slane %v2478, %v2732
      %v2735 = vunpack.c.l.s4 1983009808
      %v2736 = vunpack.c.0.s8 %v2735
      %v2737 = vlaneseq
      %v2738 = vshrl.u32 %v2737, 7
      %v2739 = vsub.s32 %v2736, %v2738
      %v2740 = vrot.slane %v2726, %v2739
      %v2741 = vcombine.high %v2733, 0.0
      %v2743 = vunpack.c.l.s4 1934713408
      %v2744 = vunpack.c.0.s8 %v2743
      %v2745 = vlaneseq
      %v2746 = vshrl.u32 %v2745, 7
      %v2747 = vsub.s32 %v2744, %v2746
      %v2748 = vrot.slane %v2733, %v2747
      %v2750 = vunpack.c.l.s4 1934713408
      %v2751 = vunpack.c.0.s8 %v2750
      %v2752 = vlaneseq
      %v2753 = vshrl.u32 %v2752, 7
      %v2754 = vsub.s32 %v2751, %v2753
      %v2755 = vrot.slane %v2741, %v2754
      %v2756 = vcombine.high %v2740, 0.0
      %v2758 = vunpack.c.l.s4 1934713408
      %v2759 = vunpack.c.0.s8 %v2758
      %v2760 = vlaneseq
      %v2761 = vshrl.u32 %v2760, 7
      %v2762 = vsub.s32 %v2759, %v2761
      %v2763 = vrot.slane %v2740, %v2762
      %v2765 = vunpack.c.l.s4 1934713408
      %v2766 = vunpack.c.0.s8 %v2765
      %v2767 = vlaneseq
      %v2768 = vshrl.u32 %v2767, 7
      %v2769 = vsub.s32 %v2766, %v2768
      %v2770 = vrot.slane %v2756, %v2769
      %v2771 = vcombine.high %v2748, 0.0
      %v2772 = vcombine.high %v2755, 0.0
      %v2773 = vcombine.high %v2763, 0.0
      %v2774 = vcombine.high %v2770, 0.0
      %v2775 = vcombine.high %v2479, 0.0
      %v2777 = vunpack.c.l.s4 1983009808
      %v2778 = vunpack.c.0.s8 %v2777
      %v2779 = vlaneseq
      %v2780 = vshrl.u32 %v2779, 7
      %v2781 = vsub.s32 %v2778, %v2780
      %v2782 = vrot.slane %v2479, %v2781
      %v2784 = vunpack.c.l.s4 1983009808
      %v2785 = vunpack.c.0.s8 %v2784
      %v2786 = vlaneseq
      %v2787 = vshrl.u32 %v2786, 7
      %v2788 = vsub.s32 %v2785, %v2787
      %v2789 = vrot.slane %v2775, %v2788
      %v2790 = vcombine.high %v2782, 0.0
      %v2792 = vunpack.c.l.s4 1934713408
      %v2793 = vunpack.c.0.s8 %v2792
      %v2794 = vlaneseq
      %v2795 = vshrl.u32 %v2794, 7
      %v2796 = vsub.s32 %v2793, %v2795
      %v2797 = vrot.slane %v2782, %v2796
      %v2799 = vunpack.c.l.s4 1934713408
      %v2800 = vunpack.c.0.s8 %v2799
      %v2801 = vlaneseq
      %v2802 = vshrl.u32 %v2801, 7
      %v2803 = vsub.s32 %v2800, %v2802
      %v2804 = vrot.slane %v2790, %v2803
      %v2805 = vcombine.high %v2789, 0.0
      %v2807 = vunpack.c.l.s4 1934713408
      %v2808 = vunpack.c.0.s8 %v2807
      %v2809 = vlaneseq
      %v2810 = vshrl.u32 %v2809, 7
      %v2811 = vsub.s32 %v2808, %v2810
      %v2812 = vrot.slane %v2789, %v2811
      %v2814 = vunpack.c.l.s4 1934713408
      %v2815 = vunpack.c.0.s8 %v2814
      %v2816 = vlaneseq
      %v2817 = vshrl.u32 %v2816, 7
      %v2818 = vsub.s32 %v2815, %v2817
      %v2819 = vrot.slane %v2805, %v2818
      %v2820 = vcombine.high %v2797, 0.0
      %v2821 = vcombine.high %v2804, 0.0
      %v2822 = vcombine.high %v2812, 0.0
      %v2823 = vcombine.high %v2819, 0.0
      %v2824 = vcombine.high %v2480, 0.0
      %v2826 = vunpack.c.l.s4 1983009808
      %v2827 = vunpack.c.0.s8 %v2826
      %v2828 = vlaneseq
      %v2829 = vshrl.u32 %v2828, 7
      %v2830 = vsub.s32 %v2827, %v2829
      %v2831 = vrot.slane %v2480, %v2830
      %v2833 = vunpack.c.l.s4 1983009808
      %v2834 = vunpack.c.0.s8 %v2833
      %v2835 = vlaneseq
      %v2836 = vshrl.u32 %v2835, 7
      %v2837 = vsub.s32 %v2834, %v2836
      %v2838 = vrot.slane %v2824, %v2837
      %v2839 = vcombine.high %v2831, 0.0
      %v2841 = vunpack.c.l.s4 1934713408
      %v2842 = vunpack.c.0.s8 %v2841
      %v2843 = vlaneseq
      %v2844 = vshrl.u32 %v2843, 7
      %v2845 = vsub.s32 %v2842, %v2844
      %v2846 = vrot.slane %v2831, %v2845
      %v2848 = vunpack.c.l.s4 1934713408
      %v2849 = vunpack.c.0.s8 %v2848
      %v2850 = vlaneseq
      %v2851 = vshrl.u32 %v2850, 7
      %v2852 = vsub.s32 %v2849, %v2851
      %v2853 = vrot.slane %v2839, %v2852
      %v2854 = vcombine.high %v2838, 0.0
      %v2856 = vunpack.c.l.s4 1934713408
      %v2857 = vunpack.c.0.s8 %v2856
      %v2858 = vlaneseq
      %v2859 = vshrl.u32 %v2858, 7
      %v2860 = vsub.s32 %v2857, %v2859
      %v2861 = vrot.slane %v2838, %v2860
      %v2863 = vunpack.c.l.s4 1934713408
      %v2864 = vunpack.c.0.s8 %v2863
      %v2865 = vlaneseq
      %v2866 = vshrl.u32 %v2865, 7
      %v2867 = vsub.s32 %v2864, %v2866
      %v2868 = vrot.slane %v2854, %v2867
      %v2869 = vcombine.high %v2846, 0.0
      %v2870 = vcombine.high %v2853, 0.0
      %v2871 = vcombine.high %v2861, 0.0
      %v2872 = vcombine.high %v2868, 0.0
      %2881 = vrot.lane.b32.xlu0 %v2526, 8
      %v2882 = vpop.permute.xlu0 %2881
      %2883 = vrot.lane.b32.xlu0 %v2575, 8
      %v2884 = vpop.permute.xlu0 %2883
      %2885 = vrot.lane.b32.xlu0 %v2624, 8
      %v2886 = vpop.permute.xlu0 %2885
      %2887 = vrot.lane.b32.xlu0 %v2673, 8
      %v2888 = vpop.permute.xlu0 %2887
      %2889 = vrot.lane.b32.xlu0 %v2722, 8
      %v2890 = vpop.permute.xlu0 %2889
      %2891 = vrot.lane.b32.xlu0 %v2771, 8
      %v2892 = vpop.permute.xlu0 %2891
      %2893 = vrot.lane.b32.xlu0 %v2820, 8
      %v2894 = vpop.permute.xlu0 %2893
      %2895 = vrot.lane.b32.xlu0 %v2869, 8
      %v2896 = vpop.permute.xlu0 %2895
      %2913 = vrot.lane.b32.xlu0 %v2510, 16
      %v2914 = vpop.permute.xlu0 %2913
      %2915 = vrot.lane.b32.xlu0 %v2559, 16
      %v2916 = vpop.permute.xlu0 %2915
      %2917 = vrot.lane.b32.xlu0 %v2608, 16
      %v2918 = vpop.permute.xlu0 %2917
      %2919 = vrot.lane.b32.xlu0 %v2657, 16
      %v2920 = vpop.permute.xlu0 %2919
      %2921 = vrot.lane.b32.xlu0 %v2706, 16
      %v2922 = vpop.permute.xlu0 %2921
      %2923 = vrot.lane.b32.xlu0 %v2755, 16
      %v2924 = vpop.permute.xlu0 %2923
      %2925 = vrot.lane.b32.xlu0 %v2804, 16
      %v2926 = vpop.permute.xlu0 %2925
      %2927 = vrot.lane.b32.xlu0 %v2853, 16
      %v2928 = vpop.permute.xlu0 %2927
      %2945 = vrot.lane.b32.xlu0 %v2527, 24
      %v2946 = vpop.permute.xlu0 %2945
      %2947 = vrot.lane.b32.xlu0 %v2576, 24
      %v2948 = vpop.permute.xlu0 %2947
      %2949 = vrot.lane.b32.xlu0 %v2625, 24
      %v2950 = vpop.permute.xlu0 %2949
      %2951 = vrot.lane.b32.xlu0 %v2674, 24
      %v2952 = vpop.permute.xlu0 %2951
      %2953 = vrot.lane.b32.xlu0 %v2723, 24
      %v2954 = vpop.permute.xlu0 %2953
      %2955 = vrot.lane.b32.xlu0 %v2772, 24
      %v2956 = vpop.permute.xlu0 %2955
      %2957 = vrot.lane.b32.xlu0 %v2821, 24
      %v2958 = vpop.permute.xlu0 %2957
      %2959 = vrot.lane.b32.xlu0 %v2870, 24
      %v2960 = vpop.permute.xlu0 %2959
      %2977 = vrot.lane.b32.xlu0 %v2518, 32
      %v2978 = vpop.permute.xlu0 %2977
      %2979 = vrot.lane.b32.xlu0 %v2567, 32
      %v2980 = vpop.permute.xlu0 %2979
      %2981 = vrot.lane.b32.xlu0 %v2616, 32
      %v2982 = vpop.permute.xlu0 %2981
      %2983 = vrot.lane.b32.xlu0 %v2665, 32
      %v2984 = vpop.permute.xlu0 %2983
      %2985 = vrot.lane.b32.xlu0 %v2714, 32
      %v2986 = vpop.permute.xlu0 %2985
      %2987 = vrot.lane.b32.xlu0 %v2763, 32
      %v2988 = vpop.permute.xlu0 %2987
      %2989 = vrot.lane.b32.xlu0 %v2812, 32
      %v2990 = vpop.permute.xlu0 %2989
      %2991 = vrot.lane.b32.xlu0 %v2861, 32
      %v2992 = vpop.permute.xlu0 %2991
      %3009 = vrot.lane.b32.xlu0 %v2528, 40
      %v3010 = vpop.permute.xlu0 %3009
      %3011 = vrot.lane.b32.xlu0 %v2577, 40
      %v3012 = vpop.permute.xlu0 %3011
      %3013 = vrot.lane.b32.xlu0 %v2626, 40
      %v3014 = vpop.permute.xlu0 %3013
      %3015 = vrot.lane.b32.xlu0 %v2675, 40
      %v3016 = vpop.permute.xlu0 %3015
      %3017 = vrot.lane.b32.xlu0 %v2724, 40
      %v3018 = vpop.permute.xlu0 %3017
      %3019 = vrot.lane.b32.xlu0 %v2773, 40
      %v3020 = vpop.permute.xlu0 %3019
      %3021 = vrot.lane.b32.xlu0 %v2822, 40
      %v3022 = vpop.permute.xlu0 %3021
      %3023 = vrot.lane.b32.xlu0 %v2871, 40
      %v3024 = vpop.permute.xlu0 %3023
      %3041 = vrot.lane.b32.xlu0 %v2525, 48
      %v3042 = vpop.permute.xlu0 %3041
      %3043 = vrot.lane.b32.xlu0 %v2574, 48
      %v3044 = vpop.permute.xlu0 %3043
      %3045 = vrot.lane.b32.xlu0 %v2623, 48
      %v3046 = vpop.permute.xlu0 %3045
      %3047 = vrot.lane.b32.xlu0 %v2672, 48
      %v3048 = vpop.permute.xlu0 %3047
      %3049 = vrot.lane.b32.xlu0 %v2721, 48
      %v3050 = vpop.permute.xlu0 %3049
      %3051 = vrot.lane.b32.xlu0 %v2770, 48
      %v3052 = vpop.permute.xlu0 %3051
      %3053 = vrot.lane.b32.xlu0 %v2819, 48
      %v3054 = vpop.permute.xlu0 %3053
      %3055 = vrot.lane.b32.xlu0 %v2868, 48
      %v3056 = vpop.permute.xlu0 %3055
      %3073 = vrot.lane.b32.xlu0 %v2529, 56
      %v3074 = vpop.permute.xlu0 %3073
      %3075 = vrot.lane.b32.xlu0 %v2578, 56
      %v3076 = vpop.permute.xlu0 %3075
      %3077 = vrot.lane.b32.xlu0 %v2627, 56
      %v3078 = vpop.permute.xlu0 %3077
      %3079 = vrot.lane.b32.xlu0 %v2676, 56
      %v3080 = vpop.permute.xlu0 %3079
      %3081 = vrot.lane.b32.xlu0 %v2725, 56
      %v3082 = vpop.permute.xlu0 %3081
      %3083 = vrot.lane.b32.xlu0 %v2774, 56
      %v3084 = vpop.permute.xlu0 %3083
      %3085 = vrot.lane.b32.xlu0 %v2823, 56
      %v3086 = vpop.permute.xlu0 %3085
      %3087 = vrot.lane.b32.xlu0 %v2872, 56
      %v3088 = vpop.permute.xlu0 %3087
      %v3097 = vsel %vm1886, %v2503, %v2882
      %v3098 = vsel %vm1886, %v2552, %v2884
      %v3099 = vsel %vm1886, %v2601, %v2886
      %v3100 = vsel %vm1886, %v2650, %v2888
      %v3101 = vsel %vm1886, %v2699, %v2890
      %v3102 = vsel %vm1886, %v2748, %v2892
      %v3103 = vsel %vm1886, %v2797, %v2894
      %v3104 = vsel %vm1886, %v2846, %v2896
      %v3105 = vsel %vm592, %v3097, %v2914
      %v3106 = vsel %vm592, %v3098, %v2916
      %v3107 = vsel %vm592, %v3099, %v2918
      %v3108 = vsel %vm592, %v3100, %v2920
      %v3109 = vsel %vm592, %v3101, %v2922
      %v3110 = vsel %vm592, %v3102, %v2924
      %v3111 = vsel %vm592, %v3103, %v2926
      %v3112 = vsel %vm592, %v3104, %v2928
      %v3113 = vsel %vm1923, %v3105, %v2946
      %v3114 = vsel %vm1923, %v3106, %v2948
      %v3115 = vsel %vm1923, %v3107, %v2950
      %v3116 = vsel %vm1923, %v3108, %v2952
      %v3117 = vsel %vm1923, %v3109, %v2954
      %v3118 = vsel %vm1923, %v3110, %v2956
      %v3119 = vsel %vm1923, %v3111, %v2958
      %v3120 = vsel %vm1923, %v3112, %v2960
      %v3121 = vsel %vm328, %v3113, %v2978
      %v3122 = vsel %vm328, %v3114, %v2980
      %v3123 = vsel %vm328, %v3115, %v2982
      %v3124 = vsel %vm328, %v3116, %v2984
      %v3125 = vsel %vm328, %v3117, %v2986
      %v3126 = vsel %vm328, %v3118, %v2988
      %v3127 = vsel %vm328, %v3119, %v2990
      %v3128 = vsel %vm328, %v3120, %v2992
      %v3129 = vsel %vm1995, %v3121, %v3010
      %v3130 = vsel %vm1995, %v3122, %v3012
      %v3131 = vsel %vm1995, %v3123, %v3014
      %v3132 = vsel %vm1995, %v3124, %v3016
      %v3133 = vsel %vm1995, %v3125, %v3018
      %v3134 = vsel %vm1995, %v3126, %v3020
      %v3135 = vsel %vm1995, %v3127, %v3022
      %v3136 = vsel %vm1995, %v3128, %v3024
      %v3137 = vsel %vm613, %v3129, %v3042
      %v3138 = vsel %vm613, %v3130, %v3044
      %v3139 = vsel %vm613, %v3131, %v3046
      %v3140 = vsel %vm613, %v3132, %v3048
      %v3141 = vsel %vm613, %v3133, %v3050
      %v3142 = vsel %vm613, %v3134, %v3052
      %v3143 = vsel %vm613, %v3135, %v3054
      %v3144 = vsel %vm613, %v3136, %v3056
      %vm3145 = vcmask 457728
      %v3146 = vsel %vm3145, %v3137, %v3074
      %v3147 = vsel %vm3145, %v3138, %v3076
      %v3148 = vsel %vm3145, %v3139, %v3078
      %v3149 = vsel %vm3145, %v3140, %v3080
      %v3150 = vsel %vm3145, %v3141, %v3082
      %v3151 = vsel %vm3145, %v3142, %v3084
      %v3152 = vsel %vm3145, %v3143, %v3086
      %v3153 = vsel %vm3145, %v3144, %v3088
      %3162 = vrot.lane.b32.xlu0 %v2473, 120
      %v3163 = vpop.permute.xlu0 %3162
      %3164 = vrot.lane.b32.xlu0 %v2474, 120
      %v3165 = vpop.permute.xlu0 %3164
      %3166 = vrot.lane.b32.xlu0 %v2475, 120
      %v3167 = vpop.permute.xlu0 %3166
      %3168 = vrot.lane.b32.xlu0 %v2476, 120
      %v3169 = vpop.permute.xlu0 %3168
      %3170 = vrot.lane.b32.xlu0 %v2477, 120
      %v3171 = vpop.permute.xlu0 %3170
      %3172 = vrot.lane.b32.xlu0 %v2478, 120
      %v3173 = vpop.permute.xlu0 %3172
      %3174 = vrot.lane.b32.xlu0 %v2479, 120
      %v3175 = vpop.permute.xlu0 %3174
      %3176 = vrot.lane.b32.xlu0 %v2480, 120
      %v3177 = vpop.permute.xlu0 %3176
      %v3186 = vcombine.high %v3163, 0.0
      %v3188 = vunpack.c.l.s4 1983009808
      %v3189 = vunpack.c.0.s8 %v3188
      %v3190 = vlaneseq
      %v3191 = vshrl.u32 %v3190, 7
      %v3192 = vsub.s32 %v3189, %v3191
      %v3193 = vrot.slane %v3163, %v3192
      %v3195 = vunpack.c.l.s4 1983009808
      %v3196 = vunpack.c.0.s8 %v3195
      %v3197 = vlaneseq
      %v3198 = vshrl.u32 %v3197, 7
      %v3199 = vsub.s32 %v3196, %v3198
      %v3200 = vrot.slane %v3186, %v3199
      %v3201 = vcombine.high %v3193, 0.0
      %v3203 = vunpack.c.l.s4 1934713408
      %v3204 = vunpack.c.0.s8 %v3203
      %v3205 = vlaneseq
      %v3206 = vshrl.u32 %v3205, 7
      %v3207 = vsub.s32 %v3204, %v3206
      %v3208 = vrot.slane %v3193, %v3207
      %v3210 = vunpack.c.l.s4 1934713408
      %v3211 = vunpack.c.0.s8 %v3210
      %v3212 = vlaneseq
      %v3213 = vshrl.u32 %v3212, 7
      %v3214 = vsub.s32 %v3211, %v3213
      %v3215 = vrot.slane %v3201, %v3214
      %v3216 = vcombine.high %v3200, 0.0
      %v3218 = vunpack.c.l.s4 1934713408
      %v3219 = vunpack.c.0.s8 %v3218
      %v3220 = vlaneseq
      %v3221 = vshrl.u32 %v3220, 7
      %v3222 = vsub.s32 %v3219, %v3221
      %v3223 = vrot.slane %v3200, %v3222
      %v3225 = vunpack.c.l.s4 1934713408
      %v3226 = vunpack.c.0.s8 %v3225
      %v3227 = vlaneseq
      %v3228 = vshrl.u32 %v3227, 7
      %v3229 = vsub.s32 %v3226, %v3228
      %v3230 = vrot.slane %v3216, %v3229
      %v3231 = vcombine.high %v3208, 0.0
      %v3232 = vcombine.high %v3215, 0.0
      %v3233 = vcombine.high %v3223, 0.0
      %v3234 = vcombine.high %v3230, 0.0
      %v3235 = vcombine.high %v3165, 0.0
      %v3237 = vunpack.c.l.s4 1983009808
      %v3238 = vunpack.c.0.s8 %v3237
      %v3239 = vlaneseq
      %v3240 = vshrl.u32 %v3239, 7
      %v3241 = vsub.s32 %v3238, %v3240
      %v3242 = vrot.slane %v3165, %v3241
      %v3244 = vunpack.c.l.s4 1983009808
      %v3245 = vunpack.c.0.s8 %v3244
      %v3246 = vlaneseq
      %v3247 = vshrl.u32 %v3246, 7
      %v3248 = vsub.s32 %v3245, %v3247
      %v3249 = vrot.slane %v3235, %v3248
      %v3250 = vcombine.high %v3242, 0.0
      %v3252 = vunpack.c.l.s4 1934713408
      %v3253 = vunpack.c.0.s8 %v3252
      %v3254 = vlaneseq
      %v3255 = vshrl.u32 %v3254, 7
      %v3256 = vsub.s32 %v3253, %v3255
      %v3257 = vrot.slane %v3242, %v3256
      %v3259 = vunpack.c.l.s4 1934713408
      %v3260 = vunpack.c.0.s8 %v3259
      %v3261 = vlaneseq
      %v3262 = vshrl.u32 %v3261, 7
      %v3263 = vsub.s32 %v3260, %v3262
      %v3264 = vrot.slane %v3250, %v3263
      %v3265 = vcombine.high %v3249, 0.0
      %v3267 = vunpack.c.l.s4 1934713408
      %v3268 = vunpack.c.0.s8 %v3267
      %v3269 = vlaneseq
      %v3270 = vshrl.u32 %v3269, 7
      %v3271 = vsub.s32 %v3268, %v3270
      %v3272 = vrot.slane %v3249, %v3271
      %v3274 = vunpack.c.l.s4 1934713408
      %v3275 = vunpack.c.0.s8 %v3274
      %v3276 = vlaneseq
      %v3277 = vshrl.u32 %v3276, 7
      %v3278 = vsub.s32 %v3275, %v3277
      %v3279 = vrot.slane %v3265, %v3278
      %v3280 = vcombine.high %v3257, 0.0
      %v3281 = vcombine.high %v3264, 0.0
      %v3282 = vcombine.high %v3272, 0.0
      %v3283 = vcombine.high %v3279, 0.0
      %v3284 = vcombine.high %v3167, 0.0
      %v3286 = vunpack.c.l.s4 1983009808
      %v3287 = vunpack.c.0.s8 %v3286
      %v3288 = vlaneseq
      %v3289 = vshrl.u32 %v3288, 7
      %v3290 = vsub.s32 %v3287, %v3289
      %v3291 = vrot.slane %v3167, %v3290
      %v3293 = vunpack.c.l.s4 1983009808
      %v3294 = vunpack.c.0.s8 %v3293
      %v3295 = vlaneseq
      %v3296 = vshrl.u32 %v3295, 7
      %v3297 = vsub.s32 %v3294, %v3296
      %v3298 = vrot.slane %v3284, %v3297
      %v3299 = vcombine.high %v3291, 0.0
      %v3301 = vunpack.c.l.s4 1934713408
      %v3302 = vunpack.c.0.s8 %v3301
      %v3303 = vlaneseq
      %v3304 = vshrl.u32 %v3303, 7
      %v3305 = vsub.s32 %v3302, %v3304
      %v3306 = vrot.slane %v3291, %v3305
      %v3308 = vunpack.c.l.s4 1934713408
      %v3309 = vunpack.c.0.s8 %v3308
      %v3310 = vlaneseq
      %v3311 = vshrl.u32 %v3310, 7
      %v3312 = vsub.s32 %v3309, %v3311
      %v3313 = vrot.slane %v3299, %v3312
      %v3314 = vcombine.high %v3298, 0.0
      %v3316 = vunpack.c.l.s4 1934713408
      %v3317 = vunpack.c.0.s8 %v3316
      %v3318 = vlaneseq
      %v3319 = vshrl.u32 %v3318, 7
      %v3320 = vsub.s32 %v3317, %v3319
      %v3321 = vrot.slane %v3298, %v3320
      %v3323 = vunpack.c.l.s4 1934713408
      %v3324 = vunpack.c.0.s8 %v3323
      %v3325 = vlaneseq
      %v3326 = vshrl.u32 %v3325, 7
      %v3327 = vsub.s32 %v3324, %v3326
      %v3328 = vrot.slane %v3314, %v3327
      %v3329 = vcombine.high %v3306, 0.0
      %v3330 = vcombine.high %v3313, 0.0
      %v3331 = vcombine.high %v3321, 0.0
      %v3332 = vcombine.high %v3328, 0.0
      %v3333 = vcombine.high %v3169, 0.0
      %v3335 = vunpack.c.l.s4 1983009808
      %v3336 = vunpack.c.0.s8 %v3335
      %v3337 = vlaneseq
      %v3338 = vshrl.u32 %v3337, 7
      %v3339 = vsub.s32 %v3336, %v3338
      %v3340 = vrot.slane %v3169, %v3339
      %v3342 = vunpack.c.l.s4 1983009808
      %v3343 = vunpack.c.0.s8 %v3342
      %v3344 = vlaneseq
      %v3345 = vshrl.u32 %v3344, 7
      %v3346 = vsub.s32 %v3343, %v3345
      %v3347 = vrot.slane %v3333, %v3346
      %v3348 = vcombine.high %v3340, 0.0
      %v3350 = vunpack.c.l.s4 1934713408
      %v3351 = vunpack.c.0.s8 %v3350
      %v3352 = vlaneseq
      %v3353 = vshrl.u32 %v3352, 7
      %v3354 = vsub.s32 %v3351, %v3353
      %v3355 = vrot.slane %v3340, %v3354
      %v3357 = vunpack.c.l.s4 1934713408
      %v3358 = vunpack.c.0.s8 %v3357
      %v3359 = vlaneseq
      %v3360 = vshrl.u32 %v3359, 7
      %v3361 = vsub.s32 %v3358, %v3360
      %v3362 = vrot.slane %v3348, %v3361
      %v3363 = vcombine.high %v3347, 0.0
      %v3365 = vunpack.c.l.s4 1934713408
      %v3366 = vunpack.c.0.s8 %v3365
      %v3367 = vlaneseq
      %v3368 = vshrl.u32 %v3367, 7
      %v3369 = vsub.s32 %v3366, %v3368
      %v3370 = vrot.slane %v3347, %v3369
      %v3372 = vunpack.c.l.s4 1934713408
      %v3373 = vunpack.c.0.s8 %v3372
      %v3374 = vlaneseq
      %v3375 = vshrl.u32 %v3374, 7
      %v3376 = vsub.s32 %v3373, %v3375
      %v3377 = vrot.slane %v3363, %v3376
      %v3378 = vcombine.high %v3355, 0.0
      %v3379 = vcombine.high %v3362, 0.0
      %v3380 = vcombine.high %v3370, 0.0
      %v3381 = vcombine.high %v3377, 0.0
      %v3382 = vcombine.high %v3171, 0.0
      %v3384 = vunpack.c.l.s4 1983009808
      %v3385 = vunpack.c.0.s8 %v3384
      %v3386 = vlaneseq
      %v3387 = vshrl.u32 %v3386, 7
      %v3388 = vsub.s32 %v3385, %v3387
      %v3389 = vrot.slane %v3171, %v3388
      %v3391 = vunpack.c.l.s4 1983009808
      %v3392 = vunpack.c.0.s8 %v3391
      %v3393 = vlaneseq
      %v3394 = vshrl.u32 %v3393, 7
      %v3395 = vsub.s32 %v3392, %v3394
      %v3396 = vrot.slane %v3382, %v3395
      %v3397 = vcombine.high %v3389, 0.0
      %v3399 = vunpack.c.l.s4 1934713408
      %v3400 = vunpack.c.0.s8 %v3399
      %v3401 = vlaneseq
      %v3402 = vshrl.u32 %v3401, 7
      %v3403 = vsub.s32 %v3400, %v3402
      %v3404 = vrot.slane %v3389, %v3403
      %v3406 = vunpack.c.l.s4 1934713408
      %v3407 = vunpack.c.0.s8 %v3406
      %v3408 = vlaneseq
      %v3409 = vshrl.u32 %v3408, 7
      %v3410 = vsub.s32 %v3407, %v3409
      %v3411 = vrot.slane %v3397, %v3410
      %v3412 = vcombine.high %v3396, 0.0
      %v3414 = vunpack.c.l.s4 1934713408
      %v3415 = vunpack.c.0.s8 %v3414
      %v3416 = vlaneseq
      %v3417 = vshrl.u32 %v3416, 7
      %v3418 = vsub.s32 %v3415, %v3417
      %v3419 = vrot.slane %v3396, %v3418
      %v3421 = vunpack.c.l.s4 1934713408
      %v3422 = vunpack.c.0.s8 %v3421
      %v3423 = vlaneseq
      %v3424 = vshrl.u32 %v3423, 7
      %v3425 = vsub.s32 %v3422, %v3424
      %v3426 = vrot.slane %v3412, %v3425
      %v3427 = vcombine.high %v3404, 0.0
      %v3428 = vcombine.high %v3411, 0.0
      %v3429 = vcombine.high %v3419, 0.0
      %v3430 = vcombine.high %v3426, 0.0
      %v3431 = vcombine.high %v3173, 0.0
      %v3433 = vunpack.c.l.s4 1983009808
      %v3434 = vunpack.c.0.s8 %v3433
      %v3435 = vlaneseq
      %v3436 = vshrl.u32 %v3435, 7
      %v3437 = vsub.s32 %v3434, %v3436
      %v3438 = vrot.slane %v3173, %v3437
      %v3440 = vunpack.c.l.s4 1983009808
      %v3441 = vunpack.c.0.s8 %v3440
      %v3442 = vlaneseq
      %v3443 = vshrl.u32 %v3442, 7
      %v3444 = vsub.s32 %v3441, %v3443
      %v3445 = vrot.slane %v3431, %v3444
      %v3446 = vcombine.high %v3438, 0.0
      %v3448 = vunpack.c.l.s4 1934713408
      %v3449 = vunpack.c.0.s8 %v3448
      %v3450 = vlaneseq
      %v3451 = vshrl.u32 %v3450, 7
      %v3452 = vsub.s32 %v3449, %v3451
      %v3453 = vrot.slane %v3438, %v3452
      %v3455 = vunpack.c.l.s4 1934713408
      %v3456 = vunpack.c.0.s8 %v3455
      %v3457 = vlaneseq
      %v3458 = vshrl.u32 %v3457, 7
      %v3459 = vsub.s32 %v3456, %v3458
      %v3460 = vrot.slane %v3446, %v3459
      %v3461 = vcombine.high %v3445, 0.0
      %v3463 = vunpack.c.l.s4 1934713408
      %v3464 = vunpack.c.0.s8 %v3463
      %v3465 = vlaneseq
      %v3466 = vshrl.u32 %v3465, 7
      %v3467 = vsub.s32 %v3464, %v3466
      %v3468 = vrot.slane %v3445, %v3467
      %v3470 = vunpack.c.l.s4 1934713408
      %v3471 = vunpack.c.0.s8 %v3470
      %v3472 = vlaneseq
      %v3473 = vshrl.u32 %v3472, 7
      %v3474 = vsub.s32 %v3471, %v3473
      %v3475 = vrot.slane %v3461, %v3474
      %v3476 = vcombine.high %v3453, 0.0
      %v3477 = vcombine.high %v3460, 0.0
      %v3478 = vcombine.high %v3468, 0.0
      %v3479 = vcombine.high %v3475, 0.0
      %v3480 = vcombine.high %v3175, 0.0
      %v3482 = vunpack.c.l.s4 1983009808
      %v3483 = vunpack.c.0.s8 %v3482
      %v3484 = vlaneseq
      %v3485 = vshrl.u32 %v3484, 7
      %v3486 = vsub.s32 %v3483, %v3485
      %v3487 = vrot.slane %v3175, %v3486
      %v3489 = vunpack.c.l.s4 1983009808
      %v3490 = vunpack.c.0.s8 %v3489
      %v3491 = vlaneseq
      %v3492 = vshrl.u32 %v3491, 7
      %v3493 = vsub.s32 %v3490, %v3492
      %v3494 = vrot.slane %v3480, %v3493
      %v3495 = vcombine.high %v3487, 0.0
      %v3497 = vunpack.c.l.s4 1934713408
      %v3498 = vunpack.c.0.s8 %v3497
      %v3499 = vlaneseq
      %v3500 = vshrl.u32 %v3499, 7
      %v3501 = vsub.s32 %v3498, %v3500
      %v3502 = vrot.slane %v3487, %v3501
      %v3504 = vunpack.c.l.s4 1934713408
      %v3505 = vunpack.c.0.s8 %v3504
      %v3506 = vlaneseq
      %v3507 = vshrl.u32 %v3506, 7
      %v3508 = vsub.s32 %v3505, %v3507
      %v3509 = vrot.slane %v3495, %v3508
      %v3510 = vcombine.high %v3494, 0.0
      %v3512 = vunpack.c.l.s4 1934713408
      %v3513 = vunpack.c.0.s8 %v3512
      %v3514 = vlaneseq
      %v3515 = vshrl.u32 %v3514, 7
      %v3516 = vsub.s32 %v3513, %v3515
      %v3517 = vrot.slane %v3494, %v3516
      %v3519 = vunpack.c.l.s4 1934713408
      %v3520 = vunpack.c.0.s8 %v3519
      %v3521 = vlaneseq
      %v3522 = vshrl.u32 %v3521, 7
      %v3523 = vsub.s32 %v3520, %v3522
      %v3524 = vrot.slane %v3510, %v3523
      %v3525 = vcombine.high %v3502, 0.0
      %v3526 = vcombine.high %v3509, 0.0
      %v3527 = vcombine.high %v3517, 0.0
      %v3528 = vcombine.high %v3524, 0.0
      %v3529 = vcombine.high %v3177, 0.0
      %v3531 = vunpack.c.l.s4 1983009808
      %v3532 = vunpack.c.0.s8 %v3531
      %v3533 = vlaneseq
      %v3534 = vshrl.u32 %v3533, 7
      %v3535 = vsub.s32 %v3532, %v3534
      %v3536 = vrot.slane %v3177, %v3535
      %v3538 = vunpack.c.l.s4 1983009808
      %v3539 = vunpack.c.0.s8 %v3538
      %v3540 = vlaneseq
      %v3541 = vshrl.u32 %v3540, 7
      %v3542 = vsub.s32 %v3539, %v3541
      %v3543 = vrot.slane %v3529, %v3542
      %v3544 = vcombine.high %v3536, 0.0
      %v3546 = vunpack.c.l.s4 1934713408
      %v3547 = vunpack.c.0.s8 %v3546
      %v3548 = vlaneseq
      %v3549 = vshrl.u32 %v3548, 7
      %v3550 = vsub.s32 %v3547, %v3549
      %v3551 = vrot.slane %v3536, %v3550
      %v3553 = vunpack.c.l.s4 1934713408
      %v3554 = vunpack.c.0.s8 %v3553
      %v3555 = vlaneseq
      %v3556 = vshrl.u32 %v3555, 7
      %v3557 = vsub.s32 %v3554, %v3556
      %v3558 = vrot.slane %v3544, %v3557
      %v3559 = vcombine.high %v3543, 0.0
      %v3561 = vunpack.c.l.s4 1934713408
      %v3562 = vunpack.c.0.s8 %v3561
      %v3563 = vlaneseq
      %v3564 = vshrl.u32 %v3563, 7
      %v3565 = vsub.s32 %v3562, %v3564
      %v3566 = vrot.slane %v3543, %v3565
      %v3568 = vunpack.c.l.s4 1934713408
      %v3569 = vunpack.c.0.s8 %v3568
      %v3570 = vlaneseq
      %v3571 = vshrl.u32 %v3570, 7
      %v3572 = vsub.s32 %v3569, %v3571
      %v3573 = vrot.slane %v3559, %v3572
      %v3574 = vcombine.high %v3551, 0.0
      %v3575 = vcombine.high %v3558, 0.0
      %v3576 = vcombine.high %v3566, 0.0
      %v3577 = vcombine.high %v3573, 0.0
      %3586 = vrot.lane.b32.xlu0 %v3231, 8
      %v3587 = vpop.permute.xlu0 %3586
      %3588 = vrot.lane.b32.xlu0 %v3280, 8
      %v3589 = vpop.permute.xlu0 %3588
      %3590 = vrot.lane.b32.xlu0 %v3329, 8
      %v3591 = vpop.permute.xlu0 %3590
      %3592 = vrot.lane.b32.xlu0 %v3378, 8
      %v3593 = vpop.permute.xlu0 %3592
      %3594 = vrot.lane.b32.xlu0 %v3427, 8
      %v3595 = vpop.permute.xlu0 %3594
      %3596 = vrot.lane.b32.xlu0 %v3476, 8
      %v3597 = vpop.permute.xlu0 %3596
      %3598 = vrot.lane.b32.xlu0 %v3525, 8
      %v3599 = vpop.permute.xlu0 %3598
      %3600 = vrot.lane.b32.xlu0 %v3574, 8
      %v3601 = vpop.permute.xlu0 %3600
      %3618 = vrot.lane.b32.xlu0 %v3215, 16
      %v3619 = vpop.permute.xlu0 %3618
      %3620 = vrot.lane.b32.xlu0 %v3264, 16
      %v3621 = vpop.permute.xlu0 %3620
      %3622 = vrot.lane.b32.xlu0 %v3313, 16
      %v3623 = vpop.permute.xlu0 %3622
      %3624 = vrot.lane.b32.xlu0 %v3362, 16
      %v3625 = vpop.permute.xlu0 %3624
      %3626 = vrot.lane.b32.xlu0 %v3411, 16
      %v3627 = vpop.permute.xlu0 %3626
      %3628 = vrot.lane.b32.xlu0 %v3460, 16
      %v3629 = vpop.permute.xlu0 %3628
      %3630 = vrot.lane.b32.xlu0 %v3509, 16
      %v3631 = vpop.permute.xlu0 %3630
      %3632 = vrot.lane.b32.xlu0 %v3558, 16
      %v3633 = vpop.permute.xlu0 %3632
      %3650 = vrot.lane.b32.xlu0 %v3232, 24
      %v3651 = vpop.permute.xlu0 %3650
      %3652 = vrot.lane.b32.xlu0 %v3281, 24
      %v3653 = vpop.permute.xlu0 %3652
      %3654 = vrot.lane.b32.xlu0 %v3330, 24
      %v3655 = vpop.permute.xlu0 %3654
      %3656 = vrot.lane.b32.xlu0 %v3379, 24
      %v3657 = vpop.permute.xlu0 %3656
      %3658 = vrot.lane.b32.xlu0 %v3428, 24
      %v3659 = vpop.permute.xlu0 %3658
      %3660 = vrot.lane.b32.xlu0 %v3477, 24
      %v3661 = vpop.permute.xlu0 %3660
      %3662 = vrot.lane.b32.xlu0 %v3526, 24
      %v3663 = vpop.permute.xlu0 %3662
      %3664 = vrot.lane.b32.xlu0 %v3575, 24
      %v3665 = vpop.permute.xlu0 %3664
      %3682 = vrot.lane.b32.xlu0 %v3223, 32
      %v3683 = vpop.permute.xlu0 %3682
      %3684 = vrot.lane.b32.xlu0 %v3272, 32
      %v3685 = vpop.permute.xlu0 %3684
      %3686 = vrot.lane.b32.xlu0 %v3321, 32
      %v3687 = vpop.permute.xlu0 %3686
      %3688 = vrot.lane.b32.xlu0 %v3370, 32
      %v3689 = vpop.permute.xlu0 %3688
      %3690 = vrot.lane.b32.xlu0 %v3419, 32
      %v3691 = vpop.permute.xlu0 %3690
      %3692 = vrot.lane.b32.xlu0 %v3468, 32
      %v3693 = vpop.permute.xlu0 %3692
      %3694 = vrot.lane.b32.xlu0 %v3517, 32
      %v3695 = vpop.permute.xlu0 %3694
      %3696 = vrot.lane.b32.xlu0 %v3566, 32
      %v3697 = vpop.permute.xlu0 %3696
      %3714 = vrot.lane.b32.xlu0 %v3233, 40
      %v3715 = vpop.permute.xlu0 %3714
      %3716 = vrot.lane.b32.xlu0 %v3282, 40
      %v3717 = vpop.permute.xlu0 %3716
      %3718 = vrot.lane.b32.xlu0 %v3331, 40
      %v3719 = vpop.permute.xlu0 %3718
      %3720 = vrot.lane.b32.xlu0 %v3380, 40
      %v3721 = vpop.permute.xlu0 %3720
      %3722 = vrot.lane.b32.xlu0 %v3429, 40
      %v3723 = vpop.permute.xlu0 %3722
      %3724 = vrot.lane.b32.xlu0 %v3478, 40
      %v3725 = vpop.permute.xlu0 %3724
      %3726 = vrot.lane.b32.xlu0 %v3527, 40
      %v3727 = vpop.permute.xlu0 %3726
      %3728 = vrot.lane.b32.xlu0 %v3576, 40
      %v3729 = vpop.permute.xlu0 %3728
      %3746 = vrot.lane.b32.xlu0 %v3230, 48
      %v3747 = vpop.permute.xlu0 %3746
      %3748 = vrot.lane.b32.xlu0 %v3279, 48
      %v3749 = vpop.permute.xlu0 %3748
      %3750 = vrot.lane.b32.xlu0 %v3328, 48
      %v3751 = vpop.permute.xlu0 %3750
      %3752 = vrot.lane.b32.xlu0 %v3377, 48
      %v3753 = vpop.permute.xlu0 %3752
      %3754 = vrot.lane.b32.xlu0 %v3426, 48
      %v3755 = vpop.permute.xlu0 %3754
      %3756 = vrot.lane.b32.xlu0 %v3475, 48
      %v3757 = vpop.permute.xlu0 %3756
      %3758 = vrot.lane.b32.xlu0 %v3524, 48
      %v3759 = vpop.permute.xlu0 %3758
      %3760 = vrot.lane.b32.xlu0 %v3573, 48
      %v3761 = vpop.permute.xlu0 %3760
      %3778 = vrot.lane.b32.xlu0 %v3234, 56
      %v3779 = vpop.permute.xlu0 %3778
      %3780 = vrot.lane.b32.xlu0 %v3283, 56
      %v3781 = vpop.permute.xlu0 %3780
      %3782 = vrot.lane.b32.xlu0 %v3332, 56
      %v3783 = vpop.permute.xlu0 %3782
      %3784 = vrot.lane.b32.xlu0 %v3381, 56
      %v3785 = vpop.permute.xlu0 %3784
      %3786 = vrot.lane.b32.xlu0 %v3430, 56
      %v3787 = vpop.permute.xlu0 %3786
      %3788 = vrot.lane.b32.xlu0 %v3479, 56
      %v3789 = vpop.permute.xlu0 %3788
      %3790 = vrot.lane.b32.xlu0 %v3528, 56
      %v3791 = vpop.permute.xlu0 %3790
      %3792 = vrot.lane.b32.xlu0 %v3577, 56
      %v3793 = vpop.permute.xlu0 %3792
      %v3802 = vsel %vm1886, %v3208, %v3587
      %v3803 = vsel %vm1886, %v3257, %v3589
      %v3804 = vsel %vm1886, %v3306, %v3591
      %v3805 = vsel %vm1886, %v3355, %v3593
      %v3806 = vsel %vm1886, %v3404, %v3595
      %v3807 = vsel %vm1886, %v3453, %v3597
      %v3808 = vsel %vm1886, %v3502, %v3599
      %v3809 = vsel %vm1886, %v3551, %v3601
      %v3810 = vsel %vm592, %v3802, %v3619
      %v3811 = vsel %vm592, %v3803, %v3621
      %v3812 = vsel %vm592, %v3804, %v3623
      %v3813 = vsel %vm592, %v3805, %v3625
      %v3814 = vsel %vm592, %v3806, %v3627
      %v3815 = vsel %vm592, %v3807, %v3629
      %v3816 = vsel %vm592, %v3808, %v3631
      %v3817 = vsel %vm592, %v3809, %v3633
      %v3818 = vsel %vm1923, %v3810, %v3651
      %v3819 = vsel %vm1923, %v3811, %v3653
      %v3820 = vsel %vm1923, %v3812, %v3655
      %v3821 = vsel %vm1923, %v3813, %v3657
      %v3822 = vsel %vm1923, %v3814, %v3659
      %v3823 = vsel %vm1923, %v3815, %v3661
      %v3824 = vsel %vm1923, %v3816, %v3663
      %v3825 = vsel %vm1923, %v3817, %v3665
      %v3826 = vsel %vm328, %v3818, %v3683
      %v3827 = vsel %vm328, %v3819, %v3685
      %v3828 = vsel %vm328, %v3820, %v3687
      %v3829 = vsel %vm328, %v3821, %v3689
      %v3830 = vsel %vm328, %v3822, %v3691
      %v3831 = vsel %vm328, %v3823, %v3693
      %v3832 = vsel %vm328, %v3824, %v3695
      %v3833 = vsel %vm328, %v3825, %v3697
      %v3834 = vsel %vm1995, %v3826, %v3715
      %v3835 = vsel %vm1995, %v3827, %v3717
      %v3836 = vsel %vm1995, %v3828, %v3719
      %v3837 = vsel %vm1995, %v3829, %v3721
      %v3838 = vsel %vm1995, %v3830, %v3723
      %v3839 = vsel %vm1995, %v3831, %v3725
      %v3840 = vsel %vm1995, %v3832, %v3727
      %v3841 = vsel %vm1995, %v3833, %v3729
      %v3842 = vsel %vm613, %v3834, %v3747
      %v3843 = vsel %vm613, %v3835, %v3749
      %v3844 = vsel %vm613, %v3836, %v3751
      %v3845 = vsel %vm613, %v3837, %v3753
      %v3846 = vsel %vm613, %v3838, %v3755
      %v3847 = vsel %vm613, %v3839, %v3757
      %v3848 = vsel %vm613, %v3840, %v3759
      %v3849 = vsel %vm613, %v3841, %v3761
      %v3850 = vsel %vm3145, %v3842, %v3779
      %v3851 = vsel %vm3145, %v3843, %v3781
      %v3852 = vsel %vm3145, %v3844, %v3783
      %v3853 = vsel %vm3145, %v3845, %v3785
      %v3854 = vsel %vm3145, %v3846, %v3787
      %v3855 = vsel %vm3145, %v3847, %v3789
      %v3856 = vsel %vm3145, %v3848, %v3791
      %v3857 = vsel %vm3145, %v3849, %v3793
      %v3866 = vrot.slane %v3850, 7
      %v3867 = vrot.slane %v3851, 7
      %v3868 = vrot.slane %v3852, 7
      %v3869 = vrot.slane %v3853, 7
      %v3870 = vrot.slane %v3854, 7
      %v3871 = vrot.slane %v3855, 7
      %v3872 = vrot.slane %v3856, 7
      %v3873 = vrot.slane %v3857, 7
      %v3882 = vsel %vm477, %v3146, %v3866
      %v3883 = vsel %vm477, %v3147, %v3867
      %v3884 = vsel %vm477, %v3148, %v3868
      %v3885 = vsel %vm477, %v3149, %v3869
      %v3886 = vsel %vm477, %v3150, %v3870
      %v3887 = vsel %vm477, %v3151, %v3871
      %v3888 = vsel %vm477, %v3152, %v3872
      %v3889 = vsel %vm477, %v3153, %v3873
      %v3898 = vcombine.low %v3882, %v3883
      %v3899 = vcombine.low %v3884, %v3885
      %v3901 = vunpack.c.l.s4 1983009808
      %v3902 = vunpack.c.0.s8 %v3901
      %v3903 = vlaneseq
      %v3904 = vshrl.u32 %v3903, 7
      %v3905 = vsub.s32 %v3902, %v3904
      %v3906 = vrot.slane %v3898, %v3905
      %v3908 = vunpack.c.l.s4 1983009808
      %v3909 = vunpack.c.0.s8 %v3908
      %v3910 = vlaneseq
      %v3911 = vshrl.u32 %v3910, 7
      %v3912 = vsub.s32 %v3909, %v3911
      %v3913 = vrot.slane %v3899, %v3912
      %v3914 = vcombine.low %v3906, %v3913
      %v3915 = vcombine.low %v3886, %v3887
      %v3916 = vcombine.low %v3888, %v3889
      %v3918 = vunpack.c.l.s4 1983009808
      %v3919 = vunpack.c.0.s8 %v3918
      %v3920 = vlaneseq
      %v3921 = vshrl.u32 %v3920, 7
      %v3922 = vsub.s32 %v3919, %v3921
      %v3923 = vrot.slane %v3915, %v3922
      %v3925 = vunpack.c.l.s4 1983009808
      %v3926 = vunpack.c.0.s8 %v3925
      %v3927 = vlaneseq
      %v3928 = vshrl.u32 %v3927, 7
      %v3929 = vsub.s32 %v3926, %v3928
      %v3930 = vrot.slane %v3916, %v3929
      %v3931 = vcombine.low %v3923, %v3930
      %3934 = vst.msk [vmem:[%s278] sm:$0xff] %vm624, %v3914
      %3935 = vst.msk [vmem:[%s278 + $0x8] sm:$0xff] %vm624, %v3931
      %p3936 = scmp.lt.s32.totalorder %s18, 1
      %s3937 = scalar_select %p3936, %s18, 1
      %s3938 = smul.addr %s3937, 2
      %s3939 = smul.addr %s3938, 8
      %s3940 = scalar_lea.vmem %s7, %s3939
      // Predicated region
      $region49: #{convolutional_decoder_forward.1} parent=47 // pred_check
        %p3941 = pneg %p188
      $region50: #{convolutional_decoder_forward.1} parent=47 // pred_check_branch
        %3943 = sbr.rel (%p3941) target = $region52
      $region51: #{convolutional_decoder_forward.1} parent=47 // pred_region
        _
      $region52: #{convolutional_decoder_forward.1} parent=47 // pred_fallthru
        _
    $region48: #{convolutional_decoder_forward.1} parent=5 // pred_fallthru
      _
    %p3944 = scmp.le.s32.totalorder 2, %s13
    // Predicated region
    $region53: #{convolutional_decoder_forward.1} parent=5 // pred_check
      %p3945 = pneg %p3944
    $region54: #{convolutional_decoder_forward.1} parent=5 // pred_check_branch
      %3947 = sbr.rel (%p3945) target = $region56
    $region55: #{convolutional_decoder_forward.1} parent=5 // pred_region
      %s3948 = ssub.s32 %s13, 2
      // Predicated region
      $region57: #{convolutional_decoder_forward.1} parent=55 // pred_check
        %p3949 = pneg %p194
      $region58: #{convolutional_decoder_forward.1} parent=55 // pred_check_branch
        %3951 = sbr.rel (%p3949) target = $region60
      $region59: #{convolutional_decoder_forward.1} parent=55 // pred_region
        %p3952 = scmp.lt.s32.totalorder %s19, 1
        %s3953 = scalar_select %p3952, %s19, 1
        %s3954 = smul.addr %s3953, 2
        %s3955 = smul.addr %s3954, 8
        %s3956 = scalar_lea.vmem %s7, %s3955
      $region60: #{convolutional_decoder_forward.1} parent=55 // pred_fallthru
        _
    $region56: #{convolutional_decoder_forward.1} parent=5 // pred_fallthru
      _
  $region6: #{convolutional_decoder_forward.1} parent=0 // loop_footer
    %s17 = sadd.s32 1, %s13
  $region7: #{convolutional_decoder_forward.1} parent=0 // loop_footer_branch
    %12 = sbr.rel target = $region3
  $region8: #{convolutional_decoder_forward.1} parent=0 // loop_exit
    _

</llo_original>
